<compile_context>
chip_gen: v7x
topology: tpu7x:2x2x1
jax: 0.10.0
libtpu: 0.0.40
codegen_flags: <defaults>
</compile_context>

<pallas_src>
import numpy as np
import jax
import jax.numpy as jnp
from jax import lax
from jax.experimental import pallas as pl
from jax.experimental.pallas import tpu as pltpu

# ----------------------------- geometry ------------------------------------ #
LENGTH = 321     # module-level `length` (originally 11361); also the input sequence length
COORDS = 4       # in_channels of the first conv
HIDDEN = 32      # hidden_dim
OUT_DIM = 7      # forced by `.view(1, length, 7)` in forward
N_OUT = LENGTH * OUT_DIM


def _conv_out_len(L, k, s, p):
    return (L + 2 * p - k) // s + 1


# Per-layer lengths (LENGTH=11361 -> L_FINAL=177; LENGTH=321 -> L_FINAL=5).
L1 = _conv_out_len(LENGTH, 3, 2, 1)   # fc_conv1 conv a
L2 = _conv_out_len(L1, 3, 2, 1)       # fc_conv1 conv b
L3 = L2 // 2                          # fc_conv1 MaxPool1d(2,2)
L4 = _conv_out_len(L3, 2, 1, 1)       # fc_conv2 conv a
L5 = _conv_out_len(L4, 2, 2, 1)       # fc_conv2 conv b
L6 = L5 // 2                          # fc_conv2 MaxPool1d(2,2)
L7 = _conv_out_len(L6, 1, 1, 0)       # fc_conv3 conv
L_FINAL = L7 // 2                     # fc_conv3 MaxPool1d(2,2)
IN_FEATS = HIDDEN * L_FINAL


# ------------------------- in-kernel building blocks ------------------------ #

def _conv_relu(x, w_st, k, stride, pad, c_out, decim=None, bias=None):
    """PyTorch Conv1d (cross-correlation, zero padding) + fused ReLU on (C_in, L_in).

    w_st: (k*C_out, C_in) -- the k taps' weight matrices stacked along rows
          (row j*C_out + co  ==  torch_weight[co, :, j]).
    Scheme (one MXU matmul for all taps, shift-and-add, one decimation matmul):
        xp   = [0_pad | x | 0_pad]                      (single lane concat)
        Y    = w_st @ xp                                (k*C_out, L_in + 2*pad)
        z[m] = sum_j Y[tap j][:, m + j]                 (static lane-offset slices)
        out  = z @ decim                                (decim[m, i] = [m == stride*i])
    No per-tap gather matmuls and no in-kernel iota/select sel-matrix builds.
    """
    c_in, l_in = x.shape
    l_out = (l_in + 2 * pad - k) // stride + 1
    w_width = stride * (l_out - 1) + 1
    if pad > 0:
        zp = jnp.zeros((c_in, pad), jnp.float32)
        x = jnp.concatenate([zp, x, zp], axis=-1)            # (C_in, L_in + 2*pad)
    y = jnp.dot(w_st, x, preferred_element_type=jnp.float32)  # (k*C_out, L_in + 2*pad)
    z = y[0:c_out, 0:w_width]
    for j in range(1, k):
        z = z + y[j * c_out:(j + 1) * c_out, j:j + w_width]
    if stride > 1:
        z = jnp.dot(z, decim, preferred_element_type=jnp.float32)   # (C_out, l_out)
    if bias is not None:
        z = z + bias                                          # (C_out, 1) lane broadcast
    return jnp.maximum(z, 0.0)                                # every conv here is ReLU'd


def _maxpool2(x, decim):
    """MaxPool1d(kernel_size=2, stride=2): max of adjacent lanes, keep even positions."""
    l_in = x.shape[1]
    m = jnp.maximum(x[:, :l_in - 1], x[:, 1:])
    return jnp.dot(m, decim, preferred_element_type=jnp.float32)


# --------------------------------- kernel ----------------------------------- #

def _rans_kernel(t_ref, w1a_ref, d1_ref, w1b_ref, d2_ref, dp1_ref,
                 w2a_ref, w2b_ref, d3_ref, dp2_ref,
                 w3_ref, b3_ref, dp3_ref, coeffs_ref,
                 w1p_ref, w23_ref, bhead_ref, o_ref):
    """Whole forward pass fused; every intermediate stays in VMEM/vregs."""
    x = t_ref[0]                                              # (COORDS, LENGTH)

    # fc_conv1: Conv(k3,s2,p1) ReLU [Dropout(.2)=id] Conv(k3,s2,p1) ReLU MaxPool(2,2)
    # TODO(synk): training-mode stochastic dropout not implemented (eval semantics).
    x = _conv_relu(x, w1a_ref[...], 3, 2, 1, HIDDEN, decim=d1_ref[...])
    x = _conv_relu(x, w1b_ref[...], 3, 2, 1, HIDDEN, decim=d2_ref[...])
    x = _maxpool2(x, dp1_ref[...])

    # fc_conv2: Conv(k2,s1,p1) ReLU Conv(k2,s2,p1) [Dropout(.1)=id] ReLU MaxPool(2,2)
    x = _conv_relu(x, w2a_ref[...], 2, 1, 1, HIDDEN)          # stride 1: no decimation
    x = _conv_relu(x, w2b_ref[...], 2, 2, 1, HIDDEN, decim=d3_ref[...])
    x = _maxpool2(x, dp2_ref[...])

    # fc_conv3: Conv(k1,s1,p0,bias=True) ReLU MaxPool(2,2)
    x = _conv_relu(x, w3_ref[...], 1, 1, 0, HIDDEN, bias=b3_ref[...])
    x = _maxpool2(x, dp3_ref[...])                            # (HIDDEN, L_FINAL)

    # t = t + F.pad(fixed_coeffs, ...): coeffs pre-padded to (HIDDEN, L_FINAL) at init.
    x = x + coeffs_ref[...]

    # preds head (Flatten -> Linear -> Linear -> Linear), fused and folded:
    #   y1  = Flatten(x) @ W1^T  contracted directly over (c, l) -- no in-kernel reshape
    #   out = y1 @ (W2^T @ W3^T) + ((b1 @ W2^T + b2) @ W3^T + b3)
    acc = x[:, 0:1] * w1p_ref[0]
    for l in range(1, L_FINAL):
        acc = acc + x[:, l:l + 1] * w1p_ref[l]                # (HIDDEN, HIDDEN//2)
    y1 = jnp.sum(acc, axis=0, keepdims=True)                  # (1, HIDDEN//2)
    out = jnp.dot(y1, w23_ref[...], preferred_element_type=jnp.float32) + bhead_ref[...]
    o_ref[...] = out.astype(o_ref.dtype)                      # (1, LENGTH*7), lane-dense


# --------------------------------- wrapper ----------------------------------- #

_VMEM = pl.BlockSpec(memory_space=pltpu.MemorySpace.VMEM)     # whole array in VMEM


@jax.jit
def rans_forward(ops, t):
    """t: (1, COORDS, LENGTH) f32 (PyTorch NCL) -> (1, LENGTH, 7)."""
    y = pl.pallas_call(
        _rans_kernel,
        out_shape=jax.ShapeDtypeStruct((1, N_OUT), jnp.float32),
        in_specs=[_VMEM] * 17,
        out_specs=_VMEM,
    )(t, ops['w1a'], ops['d1'], ops['w1b'], ops['d2'], ops['dp1'],
      ops['w2a'], ops['w2b'], ops['d3'], ops['dp2'],
      ops['w3'], ops['b3'], ops['dp3'], ops['coeffs'],
      ops['w1p'], ops['w23'], ops['bhead'])
    return y.reshape(1, LENGTH, OUT_DIM)          # .view(1, length, 7): metadata reshape


# --------------------------- parameters / repacking --------------------------- #

def init_params(key):
    """Parameters in the original PyTorch layouts."""
    ks = jax.random.split(key, 12)

    def rn(k, shape, scale=0.05):
        return jax.random.normal(k, shape, jnp.float32) * scale

    return {
        'conv1a_w': rn(ks[0], (HIDDEN, COORDS, 3)),       # Conv1d(coords->hidden, k3 s2 p1)
        'conv1b_w': rn(ks[1], (HIDDEN, HIDDEN, 3)),       # Conv1d(hidden->hidden, k3 s2 p1)
        'conv2a_w': rn(ks[2], (HIDDEN, HIDDEN, 2)),       # Conv1d(hidden->hidden, k2 s1 p1)
        'conv2b_w': rn(ks[3], (HIDDEN, HIDDEN, 2)),       # Conv1d(hidden->hidden, k2 s2 p1)
        'conv3_w':  rn(ks[4], (HIDDEN, HIDDEN, 1)),       # Conv1d(hidden->hidden, k1 s1 p0, bias)
        'conv3_b':  rn(ks[5], (HIDDEN,)),
        'lin1_w': rn(ks[6], (HIDDEN // 2, IN_FEATS)),     # Linear(hidden*L_FINAL, hidden//2)
        'lin1_b': rn(ks[7], (HIDDEN // 2,)),
        'lin2_w': rn(ks[8], (HIDDEN // 4, HIDDEN // 2)),  # Linear(hidden//2, hidden//4)
        'lin2_b': rn(ks[9], (HIDDEN // 4,)),
        'lin3_w': rn(ks[10], (N_OUT, HIDDEN // 4)),       # Linear(hidden//4, length*7)
        'lin3_b': rn(ks[11], (N_OUT,)),
    }


def prepare_operands(params, fixed_coeffs):
    """One-time repacking: stack conv taps, pre-pad the coeffs buffer, fold the
    bias-only Linear chain, and precompute the 0/1 decimation matrices (passed as
    kernel operands instead of being rebuilt in-kernel from iota/compare)."""

    def stack_taps(w):                       # (C_out, C_in, K) -> (K*C_out, C_in)
        c_out, c_in, k = w.shape
        return jnp.transpose(w, (2, 0, 1)).reshape(k * c_out, c_in)

    def decim(width, l_out, stride=2):       # 0/1 matrix: d[m, i] = [m == stride*i]
        d = np.zeros((width, l_out), np.float32)
        d[np.arange(l_out) * stride, np.arange(l_out)] = 1.0
        return jnp.asarray(d)

    lw1, lb1 = params['lin1_w'], params['lin1_b']
    lw2, lb2 = params['lin2_w'], params['lin2_b']
    lw3, lb3 = params['lin3_w'], params['lin3_b']

    # Head folds (exact up to f32 rounding; no nonlinearities in `preds`):
    #   w1p[l, c, o] = W1[o, c*L_FINAL + l]  (so the flatten never happens at runtime)
    w1p = jnp.transpose(lw1.reshape(HIDDEN // 2, HIDDEN, L_FINAL), (2, 1, 0))
    w23 = lw2.T @ lw3.T                                        # (HIDDEN//2, N_OUT)
    bhead = ((lb1 @ lw2.T + lb2) @ lw3.T + lb3)[None, :]       # (1, N_OUT)

    # F.pad(fixed_coeffs, (0, dL, 0, dC)) done once (registered buffer, static shapes).
    coeffs = jnp.zeros((HIDDEN, L_FINAL), jnp.float32)
    coeffs = coeffs.at[:fixed_coeffs.shape[1], :fixed_coeffs.shape[2]].set(fixed_coeffs[0])

    return {
        'w1a': stack_taps(params['conv1a_w']), 'd1': decim(2 * (L1 - 1) + 1, L1),
        'w1b': stack_taps(params['conv1b_w']), 'd2': decim(2 * (L2 - 1) + 1, L2),
        'dp1': decim(L2 - 1, L3),
        'w2a': stack_taps(params['conv2a_w']),
        'w2b': stack_taps(params['conv2b_w']), 'd3': decim(2 * (L5 - 1) + 1, L5),
        'dp2': decim(L5 - 1, L6),
        'w3': stack_taps(params['conv3_w']), 'b3': params['conv3_b'][:, None],
        'dp3': decim(L7 - 1, L_FINAL),
        'coeffs': coeffs, 'w1p': w1p, 'w23': w23, 'bhead': bhead,
    }


# ------------------------------ pure-JAX reference ---------------------------- #

@jax.jit
def _ref_forward(params, fixed_coeffs, t):
    """Reference mirroring the PyTorch module (eval mode), for a sanity check."""
    def conv1d(x, w, stride, pad, b=None):
        y = lax.conv_general_dilated(x[None], w, window_strides=(stride,),
                                     padding=[(pad, pad)],
                                     dimension_numbers=('NCH', 'OIH', 'NCH'))[0]
        return y if b is None else y + b[:, None]

    def maxpool2(x):
        l2 = x.shape[1] // 2
        return jnp.max(x[:, :2 * l2].reshape(x.shape[0], l2, 2), axis=2)

    relu = lambda v: jnp.maximum(v, 0.0)
    x = t[0]
    x = maxpool2(relu(conv1d(relu(conv1d(x, params['conv1a_w'], 2, 1)),
                             params['conv1b_w'], 2, 1)))
    x = maxpool2(relu(conv1d(relu(conv1d(x, params['conv2a_w'], 1, 1)),
                             params['conv2b_w'], 2, 1)))
    x = maxpool2(relu(conv1d(x, params['conv3_w'], 1, 0, params['conv3_b'])))
    coeffs = jnp.pad(fixed_coeffs[0],
                     ((0, x.shape[0] - fixed_coeffs.shape[1]),
                      (0, x.shape[1] - fixed_coeffs.shape[2])))
    x = x + coeffs
    y = x.reshape(1, -1)
    y = y @ params['lin1_w'].T + params['lin1_b']
    y = y @ params['lin2_w'].T + params['lin2_b']
    y = y @ params['lin3_w'].T + params['lin3_b']
    return y.reshape(1, LENGTH, OUT_DIM)


# ------------------------------------ main ------------------------------------ #

if __name__ == "__main__":
    key = jax.random.PRNGKey(0)
    k_in, k_par, k_coef = jax.random.split(key, 3)

    params = init_params(k_par)
    fixed_coeffs = jax.random.normal(k_coef, (1, 4, 3), jnp.float32)   # registered buffer
    t = jax.random.normal(k_in, (1, COORDS, LENGTH), jnp.float32)      # NCL input

    ops = prepare_operands(params, fixed_coeffs)
    out = rans_forward(ops, t)
    out = jax.block_until_ready(out)

    assert out.shape == (1, LENGTH, OUT_DIM), out.shape
    assert out.dtype == jnp.float32
    assert bool(jnp.all(jnp.isfinite(out)))

    # Loose sanity check vs. the pure-JAX reference (folded head + MXU matmul
    # precision differ only by rounding; structural bugs would be order-1 errors).
    ref = jax.block_until_ready(_ref_forward(params, fixed_coeffs, t))
    err = float(jnp.max(jnp.abs(out - ref)))
    scale = float(jnp.max(jnp.abs(ref)))
    assert err <= 2e-2 * scale + 1e-4, (err, scale)

    print("KERNEL_OK")
</pallas_src>

<mosaic_0001>
module attributes {stable_mosaic.version = 11 : i64} {
  func.func @_rans_kernel(%arg0: memref<1x4x321xf32, #tpu.memory_space<vmem>>, %arg1: memref<96x4xf32, #tpu.memory_space<vmem>>, %arg2: memref<321x161xf32, #tpu.memory_space<vmem>>, %arg3: memref<96x32xf32, #tpu.memory_space<vmem>>, %arg4: memref<161x81xf32, #tpu.memory_space<vmem>>, %arg5: memref<80x40xf32, #tpu.memory_space<vmem>>, %arg6: memref<64x32xf32, #tpu.memory_space<vmem>>, %arg7: memref<64x32xf32, #tpu.memory_space<vmem>>, %arg8: memref<41x21xf32, #tpu.memory_space<vmem>>, %arg9: memref<20x10xf32, #tpu.memory_space<vmem>>, %arg10: memref<32x32xf32, #tpu.memory_space<vmem>>, %arg11: memref<32x1xf32, #tpu.memory_space<vmem>>, %arg12: memref<9x5xf32, #tpu.memory_space<vmem>>, %arg13: memref<32x5xf32, #tpu.memory_space<vmem>>, %arg14: memref<5x32x16xf32, #tpu.memory_space<vmem>>, %arg15: memref<16x2247xf32, #tpu.memory_space<vmem>>, %arg16: memref<1x2247xf32, #tpu.memory_space<vmem>>, %arg17: memref<1x2247xf32, #tpu.memory_space<vmem>>) attributes {dimension_semantics = [], scalar_prefetch = 0 : i64, scratch_operands = 0 : i64, tpu.core_type = #tpu.core_type<tc>} {
    %c0 = arith.constant 0 : index
    %c0_0 = arith.constant 0 : index
    %c0_1 = arith.constant 0 : index
    %0 = vector.load %arg0[%c0, %c0_0, %c0_1] : memref<1x4x321xf32, #tpu.memory_space<vmem>>, vector<1x4x321xf32>
    %1 = vector.shape_cast %0 : vector<1x4x321xf32> to vector<4x321xf32>
    %c0_2 = arith.constant 0 : index
    %c0_3 = arith.constant 0 : index
    %2 = vector.load %arg1[%c0_2, %c0_3] : memref<96x4xf32, #tpu.memory_space<vmem>>, vector<96x4xf32>
    %c0_4 = arith.constant 0 : index
    %c0_5 = arith.constant 0 : index
    %3 = vector.load %arg2[%c0_4, %c0_5] : memref<321x161xf32, #tpu.memory_space<vmem>>, vector<321x161xf32>
    %cst = arith.constant 0.000000e+00 : f32
    %4 = vector.broadcast %cst : f32 to vector<4x1xf32>
    %5 = tpu.concatenate %4, %1, %4 in 1 : vector<4x1xf32>, vector<4x321xf32>, vector<4x1xf32> -> vector<4x323xf32>
    %cst_6 = arith.constant dense<0.000000e+00> : vector<96x323xf32>
    %6 = tpu.matmul %2, %5, %cst_6 {dimension_numbers = #tpu.dot_dimension_numbers<[1], [0], [0], [1], [0, 0, 1, 1], [], []>} : vector<96x4xf32>, vector<4x323xf32>, vector<96x323xf32> -> vector<96x323xf32>
    %7 = vector.extract_strided_slice %6 {offsets = [0, 0], sizes = [32, 321], strides = [1, 1]} : vector<96x323xf32> to vector<32x321xf32>
    %8 = vector.extract_strided_slice %6 {offsets = [32, 1], sizes = [32, 321], strides = [1, 1]} : vector<96x323xf32> to vector<32x321xf32>
    %9 = arith.addf %7, %8 : vector<32x321xf32>
    %10 = vector.extract_strided_slice %6 {offsets = [64, 2], sizes = [32, 321], strides = [1, 1]} : vector<96x323xf32> to vector<32x321xf32>
    %11 = arith.addf %9, %10 : vector<32x321xf32>
    %cst_7 = arith.constant dense<0.000000e+00> : vector<32x161xf32>
    %12 = tpu.matmul %11, %3, %cst_7 {dimension_numbers = #tpu.dot_dimension_numbers<[1], [0], [0], [1], [0, 0, 1, 1], [], []>} : vector<32x321xf32>, vector<321x161xf32>, vector<32x161xf32> -> vector<32x161xf32>
    %cst_8 = arith.constant 0.000000e+00 : f32
    %13 = vector.broadcast %cst_8 : f32 to vector<32x161xf32>
    %14 = arith.maximumf %12, %13 : vector<32x161xf32>
    %c0_9 = arith.constant 0 : index
    %c0_10 = arith.constant 0 : index
    %15 = vector.load %arg3[%c0_9, %c0_10] : memref<96x32xf32, #tpu.memory_space<vmem>>, vector<96x32xf32>
    %c0_11 = arith.constant 0 : index
    %c0_12 = arith.constant 0 : index
    %16 = vector.load %arg4[%c0_11, %c0_12] : memref<161x81xf32, #tpu.memory_space<vmem>>, vector<161x81xf32>
    %cst_13 = arith.constant 0.000000e+00 : f32
    %17 = vector.broadcast %cst_13 : f32 to vector<32x1xf32>
    %18 = tpu.concatenate %17, %14, %17 in 1 : vector<32x1xf32>, vector<32x161xf32>, vector<32x1xf32> -> vector<32x163xf32>
    %cst_14 = arith.constant dense<0.000000e+00> : vector<96x163xf32>
    %19 = tpu.matmul %15, %18, %cst_14 {dimension_numbers = #tpu.dot_dimension_numbers<[1], [0], [0], [1], [0, 0, 1, 1], [], []>} : vector<96x32xf32>, vector<32x163xf32>, vector<96x163xf32> -> vector<96x163xf32>
    %20 = vector.extract_strided_slice %19 {offsets = [0, 0], sizes = [32, 161], strides = [1, 1]} : vector<96x163xf32> to vector<32x161xf32>
    %21 = vector.extract_strided_slice %19 {offsets = [32, 1], sizes = [32, 161], strides = [1, 1]} : vector<96x163xf32> to vector<32x161xf32>
    %22 = arith.addf %20, %21 : vector<32x161xf32>
    %23 = vector.extract_strided_slice %19 {offsets = [64, 2], sizes = [32, 161], strides = [1, 1]} : vector<96x163xf32> to vector<32x161xf32>
    %24 = arith.addf %22, %23 : vector<32x161xf32>
    %cst_15 = arith.constant dense<0.000000e+00> : vector<32x81xf32>
    %25 = tpu.matmul %24, %16, %cst_15 {dimension_numbers = #tpu.dot_dimension_numbers<[1], [0], [0], [1], [0, 0, 1, 1], [], []>} : vector<32x161xf32>, vector<161x81xf32>, vector<32x81xf32> -> vector<32x81xf32>
    %cst_16 = arith.constant 0.000000e+00 : f32
    %26 = vector.broadcast %cst_16 : f32 to vector<32x81xf32>
    %27 = arith.maximumf %25, %26 : vector<32x81xf32>
    %c0_17 = arith.constant 0 : index
    %c0_18 = arith.constant 0 : index
    %28 = vector.load %arg5[%c0_17, %c0_18] : memref<80x40xf32, #tpu.memory_space<vmem>>, vector<80x40xf32>
    %29 = vector.extract_strided_slice %27 {offsets = [0, 0], sizes = [32, 80], strides = [1, 1]} : vector<32x81xf32> to vector<32x80xf32>
    %30 = vector.extract_strided_slice %27 {offsets = [0, 1], sizes = [32, 80], strides = [1, 1]} : vector<32x81xf32> to vector<32x80xf32>
    %31 = arith.maximumf %29, %30 : vector<32x80xf32>
    %cst_19 = arith.constant dense<0.000000e+00> : vector<32x40xf32>
    %32 = tpu.matmul %31, %28, %cst_19 {dimension_numbers = #tpu.dot_dimension_numbers<[1], [0], [0], [1], [0, 0, 1, 1], [], []>} : vector<32x80xf32>, vector<80x40xf32>, vector<32x40xf32> -> vector<32x40xf32>
    %c0_20 = arith.constant 0 : index
    %c0_21 = arith.constant 0 : index
    %33 = vector.load %arg6[%c0_20, %c0_21] : memref<64x32xf32, #tpu.memory_space<vmem>>, vector<64x32xf32>
    %cst_22 = arith.constant 0.000000e+00 : f32
    %34 = vector.broadcast %cst_22 : f32 to vector<32x1xf32>
    %35 = tpu.concatenate %34, %32, %34 in 1 : vector<32x1xf32>, vector<32x40xf32>, vector<32x1xf32> -> vector<32x42xf32>
    %cst_23 = arith.constant dense<0.000000e+00> : vector<64x42xf32>
    %36 = tpu.matmul %33, %35, %cst_23 {dimension_numbers = #tpu.dot_dimension_numbers<[1], [0], [0], [1], [0, 0, 1, 1], [], []>} : vector<64x32xf32>, vector<32x42xf32>, vector<64x42xf32> -> vector<64x42xf32>
    %37 = vector.extract_strided_slice %36 {offsets = [0, 0], sizes = [32, 41], strides = [1, 1]} : vector<64x42xf32> to vector<32x41xf32>
    %38 = vector.extract_strided_slice %36 {offsets = [32, 1], sizes = [32, 41], strides = [1, 1]} : vector<64x42xf32> to vector<32x41xf32>
    %39 = arith.addf %37, %38 : vector<32x41xf32>
    %cst_24 = arith.constant 0.000000e+00 : f32
    %40 = vector.broadcast %cst_24 : f32 to vector<32x41xf32>
    %41 = arith.maximumf %39, %40 : vector<32x41xf32>
    %c0_25 = arith.constant 0 : index
    %c0_26 = arith.constant 0 : index
    %42 = vector.load %arg7[%c0_25, %c0_26] : memref<64x32xf32, #tpu.memory_space<vmem>>, vector<64x32xf32>
    %c0_27 = arith.constant 0 : index
    %c0_28 = arith.constant 0 : index
    %43 = vector.load %arg8[%c0_27, %c0_28] : memref<41x21xf32, #tpu.memory_space<vmem>>, vector<41x21xf32>
    %cst_29 = arith.constant 0.000000e+00 : f32
    %44 = vector.broadcast %cst_29 : f32 to vector<32x1xf32>
    %45 = tpu.concatenate %44, %41, %44 in 1 : vector<32x1xf32>, vector<32x41xf32>, vector<32x1xf32> -> vector<32x43xf32>
    %cst_30 = arith.constant dense<0.000000e+00> : vector<64x43xf32>
    %46 = tpu.matmul %42, %45, %cst_30 {dimension_numbers = #tpu.dot_dimension_numbers<[1], [0], [0], [1], [0, 0, 1, 1], [], []>} : vector<64x32xf32>, vector<32x43xf32>, vector<64x43xf32> -> vector<64x43xf32>
    %47 = vector.extract_strided_slice %46 {offsets = [0, 0], sizes = [32, 41], strides = [1, 1]} : vector<64x43xf32> to vector<32x41xf32>
    %48 = vector.extract_strided_slice %46 {offsets = [32, 1], sizes = [32, 41], strides = [1, 1]} : vector<64x43xf32> to vector<32x41xf32>
    %49 = arith.addf %47, %48 : vector<32x41xf32>
    %cst_31 = arith.constant dense<0.000000e+00> : vector<32x21xf32>
    %50 = tpu.matmul %49, %43, %cst_31 {dimension_numbers = #tpu.dot_dimension_numbers<[1], [0], [0], [1], [0, 0, 1, 1], [], []>} : vector<32x41xf32>, vector<41x21xf32>, vector<32x21xf32> -> vector<32x21xf32>
    %cst_32 = arith.constant 0.000000e+00 : f32
    %51 = vector.broadcast %cst_32 : f32 to vector<32x21xf32>
    %52 = arith.maximumf %50, %51 : vector<32x21xf32>
    %c0_33 = arith.constant 0 : index
    %c0_34 = arith.constant 0 : index
    %53 = vector.load %arg9[%c0_33, %c0_34] : memref<20x10xf32, #tpu.memory_space<vmem>>, vector<20x10xf32>
    %54 = vector.extract_strided_slice %52 {offsets = [0, 0], sizes = [32, 20], strides = [1, 1]} : vector<32x21xf32> to vector<32x20xf32>
    %55 = vector.extract_strided_slice %52 {offsets = [0, 1], sizes = [32, 20], strides = [1, 1]} : vector<32x21xf32> to vector<32x20xf32>
    %56 = arith.maximumf %54, %55 : vector<32x20xf32>
    %cst_35 = arith.constant dense<0.000000e+00> : vector<32x10xf32>
    %57 = tpu.matmul %56, %53, %cst_35 {dimension_numbers = #tpu.dot_dimension_numbers<[1], [0], [0], [1], [0, 0, 1, 1], [], []>} : vector<32x20xf32>, vector<20x10xf32>, vector<32x10xf32> -> vector<32x10xf32>
    %c0_36 = arith.constant 0 : index
    %c0_37 = arith.constant 0 : index
    %58 = vector.load %arg10[%c0_36, %c0_37] : memref<32x32xf32, #tpu.memory_space<vmem>>, vector<32x32xf32>
    %c0_38 = arith.constant 0 : index
    %c0_39 = arith.constant 0 : index
    %59 = vector.load %arg11[%c0_38, %c0_39] : memref<32x1xf32, #tpu.memory_space<vmem>>, vector<32x1xf32>
    %cst_40 = arith.constant dense<0.000000e+00> : vector<32x10xf32>
    %60 = tpu.matmul %58, %57, %cst_40 {dimension_numbers = #tpu.dot_dimension_numbers<[1], [0], [0], [1], [0, 0, 1, 1], [], []>} : vector<32x32xf32>, vector<32x10xf32>, vector<32x10xf32> -> vector<32x10xf32>
    %61 = vector.broadcast %59 : vector<32x1xf32> to vector<32x10xf32>
    %62 = arith.addf %60, %61 : vector<32x10xf32>
    %cst_41 = arith.constant 0.000000e+00 : f32
    %63 = vector.broadcast %cst_41 : f32 to vector<32x10xf32>
    %64 = arith.maximumf %62, %63 : vector<32x10xf32>
    %c0_42 = arith.constant 0 : index
    %c0_43 = arith.constant 0 : index
    %65 = vector.load %arg12[%c0_42, %c0_43] : memref<9x5xf32, #tpu.memory_space<vmem>>, vector<9x5xf32>
    %66 = vector.extract_strided_slice %64 {offsets = [0, 0], sizes = [32, 9], strides = [1, 1]} : vector<32x10xf32> to vector<32x9xf32>
    %67 = vector.extract_strided_slice %64 {offsets = [0, 1], sizes = [32, 9], strides = [1, 1]} : vector<32x10xf32> to vector<32x9xf32>
    %68 = arith.maximumf %66, %67 : vector<32x9xf32>
    %cst_44 = arith.constant dense<0.000000e+00> : vector<32x5xf32>
    %69 = tpu.matmul %68, %65, %cst_44 {dimension_numbers = #tpu.dot_dimension_numbers<[1], [0], [0], [1], [0, 0, 1, 1], [], []>} : vector<32x9xf32>, vector<9x5xf32>, vector<32x5xf32> -> vector<32x5xf32>
    %c0_45 = arith.constant 0 : index
    %c0_46 = arith.constant 0 : index
    %70 = vector.load %arg13[%c0_45, %c0_46] : memref<32x5xf32, #tpu.memory_space<vmem>>, vector<32x5xf32>
    %71 = arith.addf %69, %70 : vector<32x5xf32>
    %72 = vector.extract_strided_slice %71 {offsets = [0, 0], sizes = [32, 1], strides = [1, 1]} : vector<32x5xf32> to vector<32x1xf32>
    %c0_47 = arith.constant 0 : index
    %c0_48 = arith.constant 0 : index
    %c0_49 = arith.constant 0 : index
    %73 = vector.load %arg14[%c0_47, %c0_48, %c0_49] : memref<5x32x16xf32, #tpu.memory_space<vmem>>, vector<1x32x16xf32>
    %74 = vector.shape_cast %73 : vector<1x32x16xf32> to vector<32x16xf32>
    %75 = vector.broadcast %72 : vector<32x1xf32> to vector<32x16xf32>
    %76 = arith.mulf %75, %74 : vector<32x16xf32>
    %77 = vector.extract_strided_slice %71 {offsets = [0, 1], sizes = [32, 1], strides = [1, 1]} : vector<32x5xf32> to vector<32x1xf32>
    %c1 = arith.constant 1 : index
    %c0_50 = arith.constant 0 : index
    %c0_51 = arith.constant 0 : index
    %78 = vector.load %arg14[%c1, %c0_50, %c0_51] : memref<5x32x16xf32, #tpu.memory_space<vmem>>, vector<1x32x16xf32>
    %79 = vector.shape_cast %78 : vector<1x32x16xf32> to vector<32x16xf32>
    %80 = vector.broadcast %77 : vector<32x1xf32> to vector<32x16xf32>
    %81 = arith.mulf %80, %79 : vector<32x16xf32>
    %82 = arith.addf %76, %81 : vector<32x16xf32>
    %83 = vector.extract_strided_slice %71 {offsets = [0, 2], sizes = [32, 1], strides = [1, 1]} : vector<32x5xf32> to vector<32x1xf32>
    %c2 = arith.constant 2 : index
    %c0_52 = arith.constant 0 : index
    %c0_53 = arith.constant 0 : index
    %84 = vector.load %arg14[%c2, %c0_52, %c0_53] : memref<5x32x16xf32, #tpu.memory_space<vmem>>, vector<1x32x16xf32>
    %85 = vector.shape_cast %84 : vector<1x32x16xf32> to vector<32x16xf32>
    %86 = vector.broadcast %83 : vector<32x1xf32> to vector<32x16xf32>
    %87 = arith.mulf %86, %85 : vector<32x16xf32>
    %88 = arith.addf %82, %87 : vector<32x16xf32>
    %89 = vector.extract_strided_slice %71 {offsets = [0, 3], sizes = [32, 1], strides = [1, 1]} : vector<32x5xf32> to vector<32x1xf32>
    %c3 = arith.constant 3 : index
    %c0_54 = arith.constant 0 : index
    %c0_55 = arith.constant 0 : index
    %90 = vector.load %arg14[%c3, %c0_54, %c0_55] : memref<5x32x16xf32, #tpu.memory_space<vmem>>, vector<1x32x16xf32>
    %91 = vector.shape_cast %90 : vector<1x32x16xf32> to vector<32x16xf32>
    %92 = vector.broadcast %89 : vector<32x1xf32> to vector<32x16xf32>
    %93 = arith.mulf %92, %91 : vector<32x16xf32>
    %94 = arith.addf %88, %93 : vector<32x16xf32>
    %95 = vector.extract_strided_slice %71 {offsets = [0, 4], sizes = [32, 1], strides = [1, 1]} : vector<32x5xf32> to vector<32x1xf32>
    %c4 = arith.constant 4 : index
    %c0_56 = arith.constant 0 : index
    %c0_57 = arith.constant 0 : index
    %96 = vector.load %arg14[%c4, %c0_56, %c0_57] : memref<5x32x16xf32, #tpu.memory_space<vmem>>, vector<1x32x16xf32>
    %97 = vector.shape_cast %96 : vector<1x32x16xf32> to vector<32x16xf32>
    %98 = vector.broadcast %95 : vector<32x1xf32> to vector<32x16xf32>
    %99 = arith.mulf %98, %97 : vector<32x16xf32>
    %100 = arith.addf %94, %99 : vector<32x16xf32>
    %cst_58 = arith.constant dense<0.000000e+00> : vector<16xf32>
    %101 = vector.multi_reduction <add>, %100, %cst_58 [0] : vector<32x16xf32> to vector<16xf32>
    %102 = vector.shape_cast %101 : vector<16xf32> to vector<1x16xf32>
    %c0_59 = arith.constant 0 : index
    %c0_60 = arith.constant 0 : index
    %103 = vector.load %arg15[%c0_59, %c0_60] : memref<16x2247xf32, #tpu.memory_space<vmem>>, vector<16x2247xf32>
    %cst_61 = arith.constant dense<0.000000e+00> : vector<1x2247xf32>
    %104 = tpu.matmul %102, %103, %cst_61 {dimension_numbers = #tpu.dot_dimension_numbers<[1], [0], [0], [1], [0, 0, 1, 1], [], []>} : vector<1x16xf32>, vector<16x2247xf32>, vector<1x2247xf32> -> vector<1x2247xf32>
    %c0_62 = arith.constant 0 : index
    %c0_63 = arith.constant 0 : index
    %105 = vector.load %arg16[%c0_62, %c0_63] : memref<1x2247xf32, #tpu.memory_space<vmem>>, vector<1x2247xf32>
    %106 = arith.addf %104, %105 : vector<1x2247xf32>
    %c0_64 = arith.constant 0 : index
    %c0_65 = arith.constant 0 : index
    %107 = vector.load %arg17[%c0_64, %c0_65] : memref<1x2247xf32, #tpu.memory_space<vmem>>, vector<1x2247xf32>
    tpu.vector_store %arg17[%c0_64, %c0_65], %106 {strides = array<i32>} : memref<1x2247xf32, #tpu.memory_space<vmem>>, vector<1x2247xf32>,
    return
  }
}

</mosaic_0001>

<llo_original>
// kernel: rans_forward.1
$region0: #{rans_forward.1}
  #allocation0 [shape = 'u32[]', space=smem, size = 0x4, offset = 0x4, fixed_abs, tag = 'smem constant byte address 0x4 - core index']
  #allocation1 [shape = 'u32[144,128]{1,0:T(1,128)}', space=vmem, size = 0x12000, scoped, tag = 'internal scratch']
  %s0 = inlined_call_operand.vmem [shape: f32[1,4,321], index: 0, kind: input, shape index: {}]
  %s1 = inlined_call_operand.vmem [shape: f32[96,4], index: 1, kind: input, shape index: {}]
  %s2 = inlined_call_operand.vmem [shape: f32[321,161], index: 2, kind: input, shape index: {}]
  %s3 = inlined_call_operand.vmem [shape: f32[96,32], index: 3, kind: input, shape index: {}]
  %s4 = inlined_call_operand.vmem [shape: f32[161,81], index: 4, kind: input, shape index: {}]
  %s5 = inlined_call_operand.vmem [shape: f32[80,40], index: 5, kind: input, shape index: {}]
  %s6 = inlined_call_operand.vmem [shape: f32[64,32], index: 6, kind: input, shape index: {}]
  %s7 = inlined_call_operand.vmem [shape: f32[64,32], index: 7, kind: input, shape index: {}]
  %s8 = inlined_call_operand.vmem [shape: f32[41,21], index: 8, kind: input, shape index: {}]
  %s9 = inlined_call_operand.vmem [shape: f32[20,10], index: 9, kind: input, shape index: {}]
  %s10 = inlined_call_operand.vmem [shape: f32[32,32], index: 10, kind: input, shape index: {}]
  %s11 = inlined_call_operand.vmem [shape: f32[32,1], index: 11, kind: input, shape index: {}]
  %s12 = inlined_call_operand.vmem [shape: f32[9,5], index: 12, kind: input, shape index: {}]
  %s13 = inlined_call_operand.vmem [shape: f32[32,5], index: 13, kind: input, shape index: {}]
  %s14 = inlined_call_operand.vmem [shape: f32[5,32,16], index: 14, kind: input, shape index: {}]
  %s15 = inlined_call_operand.vmem [shape: f32[16,2247], index: 15, kind: input, shape index: {}]
  %s16 = inlined_call_operand.vmem [shape: f32[1,2247], index: 16, kind: input, shape index: {}]
  %s17 = inlined_call_operand.vmem [shape: f32[1,2247], index: 17, kind: output, shape index: {}]
  %s18 = sld [smem:[#allocation0]]
  $region78: #{rans_forward.1} parent=0
    _
  %s20 = ssub.s32 1, %s18
  %s21 = scalar_select 0, %s20, %s18
  // Predicated region
  $region2: #{rans_forward.1} parent=0 // pred_check
    _
  $region3: #{rans_forward.1} parent=0 // pred_check_branch
    %23 = sbr.rel (0) target = $region5
  $region4: #{rans_forward.1} parent=0 // pred_region
    _
  $region5: #{rans_forward.1} parent=0 // pred_fallthru
    _
  // Predicated region
  $region6: #{rans_forward.1} parent=0 // pred_check
    _
  $region7: #{rans_forward.1} parent=0 // pred_check_branch
    %25 = sbr.rel (0) target = $region9
  $region8: #{rans_forward.1} parent=0 // pred_region
    _
  $region9: #{rans_forward.1} parent=0 // pred_fallthru
    _
  // Predicated region
  $region10: #{rans_forward.1} parent=0 // pred_check
    _
  $region11: #{rans_forward.1} parent=0 // pred_check_branch
    %27 = sbr.rel (0) target = $region13
  $region12: #{rans_forward.1} parent=0 // pred_region
    _
  $region13: #{rans_forward.1} parent=0 // pred_fallthru
    _
  // Predicated region
  $region14: #{rans_forward.1} parent=0 // pred_check
    _
  $region15: #{rans_forward.1} parent=0 // pred_check_branch
    %29 = sbr.rel (0) target = $region17
  $region16: #{rans_forward.1} parent=0 // pred_region
    _
  $region17: #{rans_forward.1} parent=0 // pred_fallthru
    _
  // Predicated region
  $region18: #{rans_forward.1} parent=0 // pred_check
    _
  $region19: #{rans_forward.1} parent=0 // pred_check_branch
    %31 = sbr.rel (0) target = $region21
  $region20: #{rans_forward.1} parent=0 // pred_region
    _
  $region21: #{rans_forward.1} parent=0 // pred_fallthru
    _
  // Predicated region
  $region22: #{rans_forward.1} parent=0 // pred_check
    _
  $region23: #{rans_forward.1} parent=0 // pred_check_branch
    %33 = sbr.rel (0) target = $region25
  $region24: #{rans_forward.1} parent=0 // pred_region
    _
  $region25: #{rans_forward.1} parent=0 // pred_fallthru
    _
  // Predicated region
  $region26: #{rans_forward.1} parent=0 // pred_check
    _
  $region27: #{rans_forward.1} parent=0 // pred_check_branch
    %35 = sbr.rel (0) target = $region29
  $region28: #{rans_forward.1} parent=0 // pred_region
    _
  $region29: #{rans_forward.1} parent=0 // pred_fallthru
    _
  // Predicated region
  $region30: #{rans_forward.1} parent=0 // pred_check
    _
  $region31: #{rans_forward.1} parent=0 // pred_check_branch
    %37 = sbr.rel (0) target = $region33
  $region32: #{rans_forward.1} parent=0 // pred_region
    _
  $region33: #{rans_forward.1} parent=0 // pred_fallthru
    _
  // Predicated region
  $region34: #{rans_forward.1} parent=0 // pred_check
    _
  $region35: #{rans_forward.1} parent=0 // pred_check_branch
    %39 = sbr.rel (0) target = $region37
  $region36: #{rans_forward.1} parent=0 // pred_region
    _
  $region37: #{rans_forward.1} parent=0 // pred_fallthru
    _
  // Predicated region
  $region38: #{rans_forward.1} parent=0 // pred_check
    _
  $region39: #{rans_forward.1} parent=0 // pred_check_branch
    %41 = sbr.rel (0) target = $region41
  $region40: #{rans_forward.1} parent=0 // pred_region
    _
  $region41: #{rans_forward.1} parent=0 // pred_fallthru
    _
  // Predicated region
  $region42: #{rans_forward.1} parent=0 // pred_check
    _
  $region43: #{rans_forward.1} parent=0 // pred_check_branch
    %43 = sbr.rel (0) target = $region45
  $region44: #{rans_forward.1} parent=0 // pred_region
    _
  $region45: #{rans_forward.1} parent=0 // pred_fallthru
    _
  // Predicated region
  $region46: #{rans_forward.1} parent=0 // pred_check
    _
  $region47: #{rans_forward.1} parent=0 // pred_check_branch
    %45 = sbr.rel (0) target = $region49
  $region48: #{rans_forward.1} parent=0 // pred_region
    _
  $region49: #{rans_forward.1} parent=0 // pred_fallthru
    _
  // Predicated region
  $region50: #{rans_forward.1} parent=0 // pred_check
    _
  $region51: #{rans_forward.1} parent=0 // pred_check_branch
    %47 = sbr.rel (0) target = $region53
  $region52: #{rans_forward.1} parent=0 // pred_region
    _
  $region53: #{rans_forward.1} parent=0 // pred_fallthru
    _
  // Predicated region
  $region54: #{rans_forward.1} parent=0 // pred_check
    _
  $region55: #{rans_forward.1} parent=0 // pred_check_branch
    %49 = sbr.rel (0) target = $region57
  $region56: #{rans_forward.1} parent=0 // pred_region
    _
  $region57: #{rans_forward.1} parent=0 // pred_fallthru
    _
  // Predicated region
  $region58: #{rans_forward.1} parent=0 // pred_check
    _
  $region59: #{rans_forward.1} parent=0 // pred_check_branch
    %51 = sbr.rel (0) target = $region61
  $region60: #{rans_forward.1} parent=0 // pred_region
    _
  $region61: #{rans_forward.1} parent=0 // pred_fallthru
    _
  // Predicated region
  $region62: #{rans_forward.1} parent=0 // pred_check
    _
  $region63: #{rans_forward.1} parent=0 // pred_check_branch
    %53 = sbr.rel (0) target = $region65
  $region64: #{rans_forward.1} parent=0 // pred_region
    _
  $region65: #{rans_forward.1} parent=0 // pred_fallthru
    _
  // Predicated region
  $region66: #{rans_forward.1} parent=0 // pred_check
    _
  $region67: #{rans_forward.1} parent=0 // pred_check_branch
    %55 = sbr.rel (0) target = $region69
  $region68: #{rans_forward.1} parent=0 // pred_region
    _
  $region69: #{rans_forward.1} parent=0 // pred_fallthru
    _
  %v56 = vld [vmem:[%s0] sm:$0xff]
  %v57 = vld [vmem:[%s0 + $0x8] sm:$0xf]
  %v58 = vld [vmem:[%s1] sm:$0xff]
  %v59 = vld [vmem:[%s1 + $0x8] sm:$0xff]
  %v60 = vld [vmem:[%s1 + $0x10] sm:$0xff]
  %v61 = vld [vmem:[%s1 + $0x18] sm:$0xff]
  %v62 = vld [vmem:[%s1 + $0x20] sm:$0xff]
  %v63 = vld [vmem:[%s1 + $0x28] sm:$0xff]
  %v64 = vld [vmem:[%s1 + $0x30] sm:$0xff]
  %v65 = vld [vmem:[%s1 + $0x38] sm:$0xff]
  %v66 = vld [vmem:[%s1 + $0x40] sm:$0xff]
  %v67 = vld [vmem:[%s1 + $0x48] sm:$0xff]
  %v68 = vld [vmem:[%s1 + $0x50] sm:$0xff]
  %v69 = vld [vmem:[%s1 + $0x58] sm:$0xff]
  %v70 = vld [vmem:[%s2] sm:$0xff]
  %v71 = vld [vmem:[%s2 + $0x8] sm:$0xff]
  %v72 = vld [vmem:[%s2 + $0x10] sm:$0xff]
  %v73 = vld [vmem:[%s2 + $0x18] sm:$0xff]
  %v74 = vld [vmem:[%s2 + $0x20] sm:$0xff]
  %v75 = vld [vmem:[%s2 + $0x28] sm:$0xff]
  %v76 = vld [vmem:[%s2 + $0x30] sm:$0xff]
  %v77 = vld [vmem:[%s2 + $0x38] sm:$0xff]
  %v78 = vld [vmem:[%s2 + $0x40] sm:$0xff]
  %v79 = vld [vmem:[%s2 + $0x48] sm:$0xff]
  %v80 = vld [vmem:[%s2 + $0x50] sm:$0xff]
  %v81 = vld [vmem:[%s2 + $0x58] sm:$0xff]
  %v82 = vld [vmem:[%s2 + $0x60] sm:$0xff]
  %v83 = vld [vmem:[%s2 + $0x68] sm:$0xff]
  %v84 = vld [vmem:[%s2 + $0x70] sm:$0xff]
  %v85 = vld [vmem:[%s2 + $0x78] sm:$0xff]
  %v86 = vld [vmem:[%s2 + $0x80] sm:$0xff]
  %v87 = vld [vmem:[%s2 + $0x88] sm:$0xff]
  %v88 = vld [vmem:[%s2 + $0x90] sm:$0xff]
  %v89 = vld [vmem:[%s2 + $0x98] sm:$0xff]
  %v90 = vld [vmem:[%s2 + $0xa0] sm:$0xff]
  %v91 = vld [vmem:[%s2 + $0xa8] sm:$0xff]
  %v92 = vld [vmem:[%s2 + $0xb0] sm:$0xff]
  %v93 = vld [vmem:[%s2 + $0xb8] sm:$0xff]
  %v94 = vld [vmem:[%s2 + $0xc0] sm:$0xff]
  %v95 = vld [vmem:[%s2 + $0xc8] sm:$0xff]
  %v96 = vld [vmem:[%s2 + $0xd0] sm:$0xff]
  %v97 = vld [vmem:[%s2 + $0xd8] sm:$0xff]
  %v98 = vld [vmem:[%s2 + $0xe0] sm:$0xff]
  %v99 = vld [vmem:[%s2 + $0xe8] sm:$0xff]
  %v100 = vld [vmem:[%s2 + $0xf0] sm:$0xff]
  %v101 = vld [vmem:[%s2 + $0xf8] sm:$0xff]
  %v102 = vld [vmem:[%s2 + $0x100] sm:$0xff]
  %v103 = vld [vmem:[%s2 + $0x108] sm:$0xff]
  %v104 = vld [vmem:[%s2 + $0x110] sm:$0xff]
  %v105 = vld [vmem:[%s2 + $0x118] sm:$0xff]
  %v106 = vld [vmem:[%s2 + $0x120] sm:$0xff]
  %v107 = vld [vmem:[%s2 + $0x128] sm:$0xff]
  %v108 = vld [vmem:[%s2 + $0x130] sm:$0xff]
  %v109 = vld [vmem:[%s2 + $0x138] sm:$0xff]
  %v110 = vld [vmem:[%s2 + $0x140] sm:$0xff]
  %v111 = vld [vmem:[%s2 + $0x148] sm:$0xff]
  %v112 = vld [vmem:[%s2 + $0x150] sm:$0xff]
  %v113 = vld [vmem:[%s2 + $0x158] sm:$0xff]
  %v114 = vld [vmem:[%s2 + $0x160] sm:$0xff]
  %v115 = vld [vmem:[%s2 + $0x168] sm:$0xff]
  %v116 = vld [vmem:[%s2 + $0x170] sm:$0xff]
  %v117 = vld [vmem:[%s2 + $0x178] sm:$0xff]
  %v118 = vld [vmem:[%s2 + $0x180] sm:$0xff]
  %v119 = vld [vmem:[%s2 + $0x188] sm:$0xff]
  %v120 = vld [vmem:[%s2 + $0x190] sm:$0xff]
  %v121 = vld [vmem:[%s2 + $0x198] sm:$0xff]
  %v122 = vld [vmem:[%s2 + $0x1a0] sm:$0xff]
  %v123 = vld [vmem:[%s2 + $0x1a8] sm:$0xff]
  %v124 = vld [vmem:[%s2 + $0x1b0] sm:$0xff]
  %v125 = vld [vmem:[%s2 + $0x1b8] sm:$0xff]
  %v126 = vld [vmem:[%s2 + $0x1c0] sm:$0xff]
  %v127 = vld [vmem:[%s2 + $0x1c8] sm:$0xff]
  %v128 = vld [vmem:[%s2 + $0x1d0] sm:$0xff]
  %v129 = vld [vmem:[%s2 + $0x1d8] sm:$0xff]
  %v130 = vld [vmem:[%s2 + $0x1e0] sm:$0xff]
  %v131 = vld [vmem:[%s2 + $0x1e8] sm:$0xff]
  %v132 = vld [vmem:[%s2 + $0x1f0] sm:$0xff]
  %v133 = vld [vmem:[%s2 + $0x1f8] sm:$0xff]
  %v134 = vld [vmem:[%s2 + $0x200] sm:$0xff]
  %v135 = vld [vmem:[%s2 + $0x208] sm:$0xff]
  %v136 = vld [vmem:[%s2 + $0x210] sm:$0xff]
  %v137 = vld [vmem:[%s2 + $0x218] sm:$0xff]
  %v138 = vld [vmem:[%s2 + $0x220] sm:$0xff]
  %v139 = vld [vmem:[%s2 + $0x228] sm:$0xff]
  %v140 = vld [vmem:[%s2 + $0x230] sm:$0xff]
  %v141 = vld [vmem:[%s2 + $0x238] sm:$0xff]
  %v142 = vld [vmem:[%s2 + $0x240] sm:$0xff]
  %v143 = vld [vmem:[%s2 + $0x248] sm:$0xff]
  %v144 = vld [vmem:[%s2 + $0x250] sm:$0xff]
  %v145 = vld [vmem:[%s2 + $0x258] sm:$0xff]
  %v146 = vld [vmem:[%s2 + $0x260] sm:$0xff]
  %v147 = vld [vmem:[%s2 + $0x268] sm:$0xff]
  %v148 = vld [vmem:[%s2 + $0x270] sm:$0xff]
  %v149 = vld [vmem:[%s2 + $0x278] sm:$0xff]
  %v150 = vld [vmem:[%s2 + $0x280] sm:$0x1]
  %v151 = vld [vmem:[%s2 + $0x288] sm:$0x1]
  %v154 = vcombine.high %v56, %v56
  %155 = vrot.lane.b32.xlu0 %v56, 1
  %v156 = vpop.permute.xlu0 %155
  %157 = vrot.lane.b32.xlu0 %v154, 1
  %v158 = vpop.permute.xlu0 %157
  %159 = vrot.lane.b32.xlu0 %v57, 1
  %v160 = vpop.permute.xlu0 %159
  %vm161 = vcmask 7168
  %v162 = vsel %vm161, %v156, %v158
  %v163 = vsel %vm161, %v158, %v160
  %v166 = vsel %vm161, 0.0, %v156
  %vm167 = vcmask 539648
  %v168 = vsel %vm167, %v163, 0.0
  %vm169 = vcmask 31744
  %v171 = vsel %vm169, %v58, 0
  %v174 = vsel %vm169, %v59, 0
  %v177 = vsel %vm169, %v60, 0
  %v180 = vsel %vm169, %v61, 0
  %v183 = vsel %vm169, %v62, 0
  %v186 = vsel %vm169, %v63, 0
  %v189 = vsel %vm169, %v64, 0
  %v192 = vsel %vm169, %v65, 0
  %v195 = vsel %vm169, %v66, 0
  %v198 = vsel %vm169, %v67, 0
  %v201 = vsel %vm169, %v68, 0
  %v204 = vsel %vm169, %v69, 0
  %vm206 = vcmask 1043456
  %v208 = vsel %vm206, %v166, 0
  %v210 = vsel %vm206, %v162, 0
  %v213 = vsel %vm206, %v168, 0
  %215 = vmatprep.subr.mxu0 %v210
  %216 = vmatpush1.msra.mxu0 %v208
  %217 = vmatprep.subr.mxu0 0.0
  %218 = vmatpush1.msra.mxu0 0.0
  %219 = vmatprep.subr.mxu0 0.0
  %220 = vmatpush1.msra.mxu0 0.0
  %221 = vmatprep.subr.mxu0 0.0
  %222 = vmatpush1.msra.mxu0 0.0
  %223 = vmatprep.subr.mxu0 0.0
  %224 = vmatpush1.msra.mxu0 0.0
  %225 = vmatprep.subr.mxu0 0.0
  %226 = vmatpush1.msra.mxu0 0.0
  %227 = vmatprep.subr.mxu0 0.0
  %228 = vmatpush1.msra.mxu0 0.0
  %229 = vmatprep.subr.mxu0 0.0
  %230 = vmatpush1.msra.mxu0 0.0
  %231 = vmatprep.subr.mxu0 0.0
  %232 = vmatpush1.msra.mxu0 0.0
  %233 = vmatprep.subr.mxu0 0.0
  %234 = vmatpush1.msra.mxu0 0.0
  %235 = vmatprep.subr.mxu0 0.0
  %236 = vmatpush1.msra.mxu0 0.0
  %237 = vmatprep.subr.mxu0 0.0
  %238 = vmatpush1.msra.mxu0 0.0
  %239 = vmatprep.subr.mxu0 0.0
  %240 = vmatpush1.msra.mxu0 0.0
  %241 = vmatprep.subr.mxu0 0.0
  %242 = vmatpush1.msra.mxu0 0.0
  %243 = vmatprep.subr.mxu0 0.0
  %244 = vmatpush1.msra.mxu0 0.0
  %245 = vmatprep.subr.mxu0 0.0
  %246 = vmatpush1.msra.mxu0 0.0
  %247 = vmatprep.subr.mxu0 0.0
  %248 = vmatpush1.msra.mxu0 0.0
  %249 = vmatprep.subr.mxu0 0.0
  %250 = vmatpush1.msra.mxu0 0.0
  %251 = vmatprep.subr.mxu0 0.0
  %252 = vmatpush1.msra.mxu0 0.0
  %253 = vmatprep.subr.mxu0 0.0
  %254 = vmatpush1.msra.mxu0 0.0
  %255 = vmatprep.subr.mxu0 0.0
  %256 = vmatpush1.msra.mxu0 0.0
  %257 = vmatprep.subr.mxu0 0.0
  %258 = vmatpush1.msra.mxu0 0.0
  %259 = vmatprep.subr.mxu0 0.0
  %260 = vmatpush1.msra.mxu0 0.0
  %261 = vmatprep.subr.mxu0 0.0
  %262 = vmatpush1.msra.mxu0 0.0
  %263 = vmatprep.subr.mxu0 0.0
  %264 = vmatpush1.msra.mxu0 0.0
  %265 = vmatprep.subr.mxu0 0.0
  %266 = vmatpush1.msra.mxu0 0.0
  %267 = vmatprep.subr.mxu0 0.0
  %268 = vmatpush1.msra.mxu0 0.0
  %269 = vmatprep.subr.mxu0 0.0
  %270 = vmatpush1.msra.mxu0 0.0
  %271 = vmatprep.subr.mxu0 0.0
  %272 = vmatpush1.msra.mxu0 0.0
  %273 = vmatprep.subr.mxu0 0.0
  %274 = vmatpush1.msra.mxu0 0.0
  %275 = vmatprep.subr.mxu0 0.0
  %276 = vmatpush1.msra.mxu0 0.0
  %277 = vmatprep.subr.mxu0 0.0
  %278 = vmatpush1.msra.mxu0 0.0
  %279 = vmatprep.mubr.f32.mxu0 0.0
  %280 = vmatmul.mubr.f32.gmra.mrb[0].mxu0 %v171
  %v281 = vpop.f32.mrb[0].mxu0
  %v282 = vadd.f32 0.0, %v281
  %v283 = vpop.f32.mrb[0].mxu0
  %v284 = vadd.f32 0.0, %v283
  %285 = vmatprep.mubr.f32.mxu0 0.0
  %286 = vmatmul.mubr.f32.gmra.mrb[0].mxu0 %v174
  %v287 = vpop.f32.mrb[0].mxu0
  %v288 = vadd.f32 0.0, %v287
  %v289 = vpop.f32.mrb[0].mxu0
  %v290 = vadd.f32 0.0, %v289
  %291 = vmatprep.mubr.f32.mxu0 0.0
  %292 = vmatmul.mubr.f32.gmra.mrb[0].mxu0 %v177
  %v293 = vpop.f32.mrb[0].mxu0
  %v294 = vadd.f32 0.0, %v293
  %v295 = vpop.f32.mrb[0].mxu0
  %v296 = vadd.f32 0.0, %v295
  %297 = vmatprep.mubr.f32.mxu0 0.0
  %298 = vmatmul.mubr.f32.gmra.mrb[0].mxu0 %v180
  %v299 = vpop.f32.mrb[0].mxu0
  %v300 = vadd.f32 0.0, %v299
  %v301 = vpop.f32.mrb[0].mxu0
  %v302 = vadd.f32 0.0, %v301
  %303 = vmatprep.mubr.f32.mxu0 0.0
  %304 = vmatmul.mubr.f32.gmra.mrb[0].mxu0 %v183
  %v305 = vpop.f32.mrb[0].mxu0
  %v306 = vadd.f32 0.0, %v305
  %v307 = vpop.f32.mrb[0].mxu0
  %v308 = vadd.f32 0.0, %v307
  %309 = vmatprep.mubr.f32.mxu0 0.0
  %310 = vmatmul.mubr.f32.gmra.mrb[0].mxu0 %v186
  %v311 = vpop.f32.mrb[0].mxu0
  %v312 = vadd.f32 0.0, %v311
  %v313 = vpop.f32.mrb[0].mxu0
  %v314 = vadd.f32 0.0, %v313
  %315 = vmatprep.mubr.f32.mxu0 0.0
  %316 = vmatmul.mubr.f32.gmra.mrb[0].mxu0 %v189
  %v317 = vpop.f32.mrb[0].mxu0
  %v318 = vadd.f32 0.0, %v317
  %v319 = vpop.f32.mrb[0].mxu0
  %v320 = vadd.f32 0.0, %v319
  %321 = vmatprep.mubr.f32.mxu0 0.0
  %322 = vmatmul.mubr.f32.gmra.mrb[0].mxu0 %v192
  %v323 = vpop.f32.mrb[0].mxu0
  %v324 = vadd.f32 0.0, %v323
  %v325 = vpop.f32.mrb[0].mxu0
  %v326 = vadd.f32 0.0, %v325
  %327 = vmatprep.mubr.f32.mxu0 0.0
  %328 = vmatmul.mubr.f32.gmra.mrb[0].mxu0 %v195
  %v329 = vpop.f32.mrb[0].mxu0
  %v330 = vadd.f32 0.0, %v329
  %v331 = vpop.f32.mrb[0].mxu0
  %v332 = vadd.f32 0.0, %v331
  %333 = vmatprep.mubr.f32.mxu0 0.0
  %334 = vmatmul.mubr.f32.gmra.mrb[0].mxu0 %v198
  %v335 = vpop.f32.mrb[0].mxu0
  %v336 = vadd.f32 0.0, %v335
  %v337 = vpop.f32.mrb[0].mxu0
  %v338 = vadd.f32 0.0, %v337
  %339 = vmatprep.mubr.f32.mxu0 0.0
  %340 = vmatmul.mubr.f32.gmra.mrb[0].mxu0 %v201
  %v341 = vpop.f32.mrb[0].mxu0
  %v342 = vadd.f32 0.0, %v341
  %v343 = vpop.f32.mrb[0].mxu0
  %v344 = vadd.f32 0.0, %v343
  %345 = vmatprep.mubr.f32.mxu0 0.0
  %346 = vmatmul.mubr.f32.gmra.mrb[0].mxu0 %v204
  %v347 = vpop.f32.mrb[0].mxu0
  %v348 = vadd.f32 0.0, %v347
  %v349 = vpop.f32.mrb[0].mxu0
  %v350 = vadd.f32 0.0, %v349
  %351 = vdwg.mxu0
  %352 = vmatprep.subr.mxu0 0.0
  %353 = vmatpush1.msra.mxu0 %v213
  %354 = vmatprep.subr.mxu0 0.0
  %355 = vmatpush1.msra.mxu0 0.0
  %356 = vmatprep.subr.mxu0 0.0
  %357 = vmatpush1.msra.mxu0 0.0
  %358 = vmatprep.subr.mxu0 0.0
  %359 = vmatpush1.msra.mxu0 0.0
  %360 = vmatprep.subr.mxu0 0.0
  %361 = vmatpush1.msra.mxu0 0.0
  %362 = vmatprep.subr.mxu0 0.0
  %363 = vmatpush1.msra.mxu0 0.0
  %364 = vmatprep.subr.mxu0 0.0
  %365 = vmatpush1.msra.mxu0 0.0
  %366 = vmatprep.subr.mxu0 0.0
  %367 = vmatpush1.msra.mxu0 0.0
  %368 = vmatprep.subr.mxu0 0.0
  %369 = vmatpush1.msra.mxu0 0.0
  %370 = vmatprep.subr.mxu0 0.0
  %371 = vmatpush1.msra.mxu0 0.0
  %372 = vmatprep.subr.mxu0 0.0
  %373 = vmatpush1.msra.mxu0 0.0
  %374 = vmatprep.subr.mxu0 0.0
  %375 = vmatpush1.msra.mxu0 0.0
  %376 = vmatprep.subr.mxu0 0.0
  %377 = vmatpush1.msra.mxu0 0.0
  %378 = vmatprep.subr.mxu0 0.0
  %379 = vmatpush1.msra.mxu0 0.0
  %380 = vmatprep.subr.mxu0 0.0
  %381 = vmatpush1.msra.mxu0 0.0
  %382 = vmatprep.subr.mxu0 0.0
  %383 = vmatpush1.msra.mxu0 0.0
  %384 = vmatprep.subr.mxu0 0.0
  %385 = vmatpush1.msra.mxu0 0.0
  %386 = vmatprep.subr.mxu0 0.0
  %387 = vmatpush1.msra.mxu0 0.0
  %388 = vmatprep.subr.mxu0 0.0
  %389 = vmatpush1.msra.mxu0 0.0
  %390 = vmatprep.subr.mxu0 0.0
  %391 = vmatpush1.msra.mxu0 0.0
  %392 = vmatprep.subr.mxu0 0.0
  %393 = vmatpush1.msra.mxu0 0.0
  %394 = vmatprep.subr.mxu0 0.0
  %395 = vmatpush1.msra.mxu0 0.0
  %396 = vmatprep.subr.mxu0 0.0
  %397 = vmatpush1.msra.mxu0 0.0
  %398 = vmatprep.subr.mxu0 0.0
  %399 = vmatpush1.msra.mxu0 0.0
  %400 = vmatprep.subr.mxu0 0.0
  %401 = vmatpush1.msra.mxu0 0.0
  %402 = vmatprep.subr.mxu0 0.0
  %403 = vmatpush1.msra.mxu0 0.0
  %404 = vmatprep.subr.mxu0 0.0
  %405 = vmatpush1.msra.mxu0 0.0
  %406 = vmatprep.subr.mxu0 0.0
  %407 = vmatpush1.msra.mxu0 0.0
  %408 = vmatprep.subr.mxu0 0.0
  %409 = vmatpush1.msra.mxu0 0.0
  %410 = vmatprep.subr.mxu0 0.0
  %411 = vmatpush1.msra.mxu0 0.0
  %412 = vmatprep.subr.mxu0 0.0
  %413 = vmatpush1.msra.mxu0 0.0
  %414 = vmatprep.subr.mxu0 0.0
  %415 = vmatpush1.msra.mxu0 0.0
  %416 = vmatprep.mubr.f32.mxu0 0.0
  %417 = vmatmul.mubr.f32.gmra.mrb[0].mxu0 %v171
  %v418 = vpop.f32.mrb[0].mxu0
  %v419 = vadd.f32 0.0, %v418
  %v420 = vpop.f32.mrb[0].mxu0
  %421 = vmatprep.mubr.f32.mxu0 0.0
  %422 = vmatmul.mubr.f32.gmra.mrb[0].mxu0 %v174
  %v423 = vpop.f32.mrb[0].mxu0
  %v424 = vadd.f32 0.0, %v423
  %v425 = vpop.f32.mrb[0].mxu0
  %426 = vmatprep.mubr.f32.mxu0 0.0
  %427 = vmatmul.mubr.f32.gmra.mrb[0].mxu0 %v177
  %v428 = vpop.f32.mrb[0].mxu0
  %v429 = vadd.f32 0.0, %v428
  %v430 = vpop.f32.mrb[0].mxu0
  %431 = vmatprep.mubr.f32.mxu0 0.0
  %432 = vmatmul.mubr.f32.gmra.mrb[0].mxu0 %v180
  %v433 = vpop.f32.mrb[0].mxu0
  %v434 = vadd.f32 0.0, %v433
  %v435 = vpop.f32.mrb[0].mxu0
  %436 = vmatprep.mubr.f32.mxu0 0.0
  %437 = vmatmul.mubr.f32.gmra.mrb[0].mxu0 %v183
  %v438 = vpop.f32.mrb[0].mxu0
  %v439 = vadd.f32 0.0, %v438
  %v440 = vpop.f32.mrb[0].mxu0
  %441 = vmatprep.mubr.f32.mxu0 0.0
  %442 = vmatmul.mubr.f32.gmra.mrb[0].mxu0 %v186
  %v443 = vpop.f32.mrb[0].mxu0
  %v444 = vadd.f32 0.0, %v443
  %v445 = vpop.f32.mrb[0].mxu0
  %446 = vmatprep.mubr.f32.mxu0 0.0
  %447 = vmatmul.mubr.f32.gmra.mrb[0].mxu0 %v189
  %v448 = vpop.f32.mrb[0].mxu0
  %v449 = vadd.f32 0.0, %v448
  %v450 = vpop.f32.mrb[0].mxu0
  %451 = vmatprep.mubr.f32.mxu0 0.0
  %452 = vmatmul.mubr.f32.gmra.mrb[0].mxu0 %v192
  %v453 = vpop.f32.mrb[0].mxu0
  %v454 = vadd.f32 0.0, %v453
  %v455 = vpop.f32.mrb[0].mxu0
  %456 = vmatprep.mubr.f32.mxu0 0.0
  %457 = vmatmul.mubr.f32.gmra.mrb[0].mxu0 %v195
  %v458 = vpop.f32.mrb[0].mxu0
  %v459 = vadd.f32 0.0, %v458
  %v460 = vpop.f32.mrb[0].mxu0
  %461 = vmatprep.mubr.f32.mxu0 0.0
  %462 = vmatmul.mubr.f32.gmra.mrb[0].mxu0 %v198
  %v463 = vpop.f32.mrb[0].mxu0
  %v464 = vadd.f32 0.0, %v463
  %v465 = vpop.f32.mrb[0].mxu0
  %466 = vmatprep.mubr.f32.mxu0 0.0
  %467 = vmatmul.mubr.f32.gmra.mrb[0].mxu0 %v201
  %v468 = vpop.f32.mrb[0].mxu0
  %v469 = vadd.f32 0.0, %v468
  %v470 = vpop.f32.mrb[0].mxu0
  %471 = vmatprep.mubr.f32.mxu0 0.0
  %472 = vmatmul.mubr.f32.gmra.mrb[0].mxu0 %v204
  %v473 = vpop.f32.mrb[0].mxu0
  %v474 = vadd.f32 0.0, %v473
  %v475 = vpop.f32.mrb[0].mxu0
  %476 = vdwg.mxu0
  %489 = vrot.lane.b32.xlu0 %v306, 127
  %v490 = vpop.permute.xlu0 %489
  %491 = vrot.lane.b32.xlu0 %v308, 127
  %v492 = vpop.permute.xlu0 %491
  %493 = vrot.lane.b32.xlu0 %v439, 127
  %v494 = vpop.permute.xlu0 %493
  %495 = vrot.lane.b32.xlu0 %v312, 127
  %v496 = vpop.permute.xlu0 %495
  %497 = vrot.lane.b32.xlu0 %v314, 127
  %v498 = vpop.permute.xlu0 %497
  %499 = vrot.lane.b32.xlu0 %v444, 127
  %v500 = vpop.permute.xlu0 %499
  %501 = vrot.lane.b32.xlu0 %v318, 127
  %v502 = vpop.permute.xlu0 %501
  %503 = vrot.lane.b32.xlu0 %v320, 127
  %v504 = vpop.permute.xlu0 %503
  %505 = vrot.lane.b32.xlu0 %v449, 127
  %v506 = vpop.permute.xlu0 %505
  %507 = vrot.lane.b32.xlu0 %v324, 127
  %v508 = vpop.permute.xlu0 %507
  %509 = vrot.lane.b32.xlu0 %v326, 127
  %v510 = vpop.permute.xlu0 %509
  %511 = vrot.lane.b32.xlu0 %v454, 127
  %v512 = vpop.permute.xlu0 %511
  %vm513 = vcmask 1039360
  %v514 = vsel %vm513, %v490, %v492
  %v515 = vsel %vm513, %v492, %v494
  %v516 = vsel %vm513, %v496, %v498
  %v517 = vsel %vm513, %v498, %v500
  %v518 = vsel %vm513, %v502, %v504
  %v519 = vsel %vm513, %v504, %v506
  %v520 = vsel %vm513, %v508, %v510
  %v521 = vsel %vm513, %v510, %v512
  %v534 = vadd.f32 %v282, %v514
  %v535 = vadd.f32 %v284, %v515
  %v536 = vadd.f32 %v419, %v494
  %v537 = vadd.f32 %v288, %v516
  %v538 = vadd.f32 %v290, %v517
  %v539 = vadd.f32 %v424, %v500
  %v540 = vadd.f32 %v294, %v518
  %v541 = vadd.f32 %v296, %v519
  %v542 = vadd.f32 %v429, %v506
  %v543 = vadd.f32 %v300, %v520
  %v544 = vadd.f32 %v302, %v521
  %v545 = vadd.f32 %v434, %v512
  %558 = vrot.lane.b32.xlu0 %v330, 126
  %v559 = vpop.permute.xlu0 %558
  %560 = vrot.lane.b32.xlu0 %v332, 126
  %v561 = vpop.permute.xlu0 %560
  %562 = vrot.lane.b32.xlu0 %v459, 126
  %v563 = vpop.permute.xlu0 %562
  %564 = vrot.lane.b32.xlu0 %v336, 126
  %v565 = vpop.permute.xlu0 %564
  %566 = vrot.lane.b32.xlu0 %v338, 126
  %v567 = vpop.permute.xlu0 %566
  %568 = vrot.lane.b32.xlu0 %v464, 126
  %v569 = vpop.permute.xlu0 %568
  %570 = vrot.lane.b32.xlu0 %v342, 126
  %v571 = vpop.permute.xlu0 %570
  %572 = vrot.lane.b32.xlu0 %v344, 126
  %v573 = vpop.permute.xlu0 %572
  %574 = vrot.lane.b32.xlu0 %v469, 126
  %v575 = vpop.permute.xlu0 %574
  %576 = vrot.lane.b32.xlu0 %v348, 126
  %v577 = vpop.permute.xlu0 %576
  %578 = vrot.lane.b32.xlu0 %v350, 126
  %v579 = vpop.permute.xlu0 %578
  %580 = vrot.lane.b32.xlu0 %v474, 126
  %v581 = vpop.permute.xlu0 %580
  %vm582 = vcmask 1031168
  %v583 = vsel %vm582, %v559, %v561
  %v584 = vsel %vm582, %v561, %v563
  %v585 = vsel %vm582, %v565, %v567
  %v586 = vsel %vm582, %v567, %v569
  %v587 = vsel %vm582, %v571, %v573
  %v588 = vsel %vm582, %v573, %v575
  %v589 = vsel %vm582, %v577, %v579
  %v590 = vsel %vm582, %v579, %v581
  %v603 = vadd.f32 %v534, %v583
  %v604 = vadd.f32 %v535, %v584
  %v605 = vadd.f32 %v536, %v563
  %v606 = vadd.f32 %v537, %v585
  %v607 = vadd.f32 %v538, %v586
  %v608 = vadd.f32 %v539, %v569
  %v609 = vadd.f32 %v540, %v587
  %v610 = vadd.f32 %v541, %v588
  %v611 = vadd.f32 %v542, %v575
  %v612 = vadd.f32 %v543, %v589
  %v613 = vadd.f32 %v544, %v590
  %v614 = vadd.f32 %v545, %v581
  %vm615 = vcmask 531456
  %v617 = vsel %vm615, %v605, 0
  %v620 = vsel %vm615, %v608, 0
  %v623 = vsel %vm615, %v611, 0
  %v626 = vsel %vm615, %v614, 0
  %vm628 = vcmask 1040384
  %v630 = vsel %vm628, %v150, 0
  %v633 = vsel %vm628, %v151, 0
  %635 = vmatprep.subr.mxu0 %v71
  %636 = vmatpush1.msra.mxu0 %v70
  %637 = vmatprep.subr.mxu0 %v73
  %638 = vmatpush1.msra.mxu0 %v72
  %639 = vmatprep.subr.mxu0 %v75
  %640 = vmatpush1.msra.mxu0 %v74
  %641 = vmatprep.subr.mxu0 %v77
  %642 = vmatpush1.msra.mxu0 %v76
  %643 = vmatprep.subr.mxu0 %v79
  %644 = vmatpush1.msra.mxu0 %v78
  %645 = vmatprep.subr.mxu0 %v81
  %646 = vmatpush1.msra.mxu0 %v80
  %647 = vmatprep.subr.mxu0 %v83
  %648 = vmatpush1.msra.mxu0 %v82
  %649 = vmatprep.subr.mxu0 %v85
  %650 = vmatpush1.msra.mxu0 %v84
  %651 = vmatprep.subr.mxu0 %v87
  %652 = vmatpush1.msra.mxu0 %v86
  %653 = vmatprep.subr.mxu0 %v89
  %654 = vmatpush1.msra.mxu0 %v88
  %655 = vmatprep.subr.mxu0 %v91
  %656 = vmatpush1.msra.mxu0 %v90
  %657 = vmatprep.subr.mxu0 %v93
  %658 = vmatpush1.msra.mxu0 %v92
  %659 = vmatprep.subr.mxu0 %v95
  %660 = vmatpush1.msra.mxu0 %v94
  %661 = vmatprep.subr.mxu0 %v97
  %662 = vmatpush1.msra.mxu0 %v96
  %663 = vmatprep.subr.mxu0 %v99
  %664 = vmatpush1.msra.mxu0 %v98
  %665 = vmatprep.subr.mxu0 %v101
  %666 = vmatpush1.msra.mxu0 %v100
  %667 = vmatprep.subr.mxu0 %v103
  %668 = vmatpush1.msra.mxu0 %v102
  %669 = vmatprep.subr.mxu0 %v105
  %670 = vmatpush1.msra.mxu0 %v104
  %671 = vmatprep.subr.mxu0 %v107
  %672 = vmatpush1.msra.mxu0 %v106
  %673 = vmatprep.subr.mxu0 %v109
  %674 = vmatpush1.msra.mxu0 %v108
  %675 = vmatprep.subr.mxu0 %v111
  %676 = vmatpush1.msra.mxu0 %v110
  %677 = vmatprep.subr.mxu0 %v113
  %678 = vmatpush1.msra.mxu0 %v112
  %679 = vmatprep.subr.mxu0 %v115
  %680 = vmatpush1.msra.mxu0 %v114
  %681 = vmatprep.subr.mxu0 %v117
  %682 = vmatpush1.msra.mxu0 %v116
  %683 = vmatprep.subr.mxu0 %v119
  %684 = vmatpush1.msra.mxu0 %v118
  %685 = vmatprep.subr.mxu0 %v121
  %686 = vmatpush1.msra.mxu0 %v120
  %687 = vmatprep.subr.mxu0 %v123
  %688 = vmatpush1.msra.mxu0 %v122
  %689 = vmatprep.subr.mxu0 %v125
  %690 = vmatpush1.msra.mxu0 %v124
  %691 = vmatprep.subr.mxu0 %v127
  %692 = vmatpush1.msra.mxu0 %v126
  %693 = vmatprep.subr.mxu0 %v129
  %694 = vmatpush1.msra.mxu0 %v128
  %695 = vmatprep.subr.mxu0 %v131
  %696 = vmatpush1.msra.mxu0 %v130
  %697 = vmatprep.subr.mxu0 %v133
  %698 = vmatpush1.msra.mxu0 %v132
  %699 = vmatprep.mubr.f32.mxu0 %v604
  %700 = vmatmul.mubr.f32.gmra.mrb[0].mxu0 %v603
  %v701 = vpop.f32.mrb[0].mxu0
  %v702 = vadd.f32 0.0, %v701
  %v703 = vpop.f32.mrb[0].mxu0
  %v704 = vadd.f32 0.0, %v703
  %705 = vmatprep.mubr.f32.mxu0 %v607
  %706 = vmatmul.mubr.f32.gmra.mrb[0].mxu0 %v606
  %v707 = vpop.f32.mrb[0].mxu0
  %v708 = vadd.f32 0.0, %v707
  %v709 = vpop.f32.mrb[0].mxu0
  %v710 = vadd.f32 0.0, %v709
  %711 = vmatprep.mubr.f32.mxu0 %v610
  %712 = vmatmul.mubr.f32.gmra.mrb[0].mxu0 %v609
  %v713 = vpop.f32.mrb[0].mxu0
  %v714 = vadd.f32 0.0, %v713
  %v715 = vpop.f32.mrb[0].mxu0
  %v716 = vadd.f32 0.0, %v715
  %717 = vmatprep.mubr.f32.mxu0 %v613
  %718 = vmatmul.mubr.f32.gmra.mrb[0].mxu0 %v612
  %v719 = vpop.f32.mrb[0].mxu0
  %v720 = vadd.f32 0.0, %v719
  %v721 = vpop.f32.mrb[0].mxu0
  %v722 = vadd.f32 0.0, %v721
  %723 = vdwg.mxu0
  %724 = vmatprep.subr.mxu0 %v135
  %725 = vmatpush1.msra.mxu0 %v134
  %726 = vmatprep.subr.mxu0 %v137
  %727 = vmatpush1.msra.mxu0 %v136
  %728 = vmatprep.subr.mxu0 %v139
  %729 = vmatpush1.msra.mxu0 %v138
  %730 = vmatprep.subr.mxu0 %v141
  %731 = vmatpush1.msra.mxu0 %v140
  %732 = vmatprep.subr.mxu0 %v143
  %733 = vmatpush1.msra.mxu0 %v142
  %734 = vmatprep.subr.mxu0 %v145
  %735 = vmatpush1.msra.mxu0 %v144
  %736 = vmatprep.subr.mxu0 %v147
  %737 = vmatpush1.msra.mxu0 %v146
  %738 = vmatprep.subr.mxu0 %v149
  %739 = vmatpush1.msra.mxu0 %v148
  %740 = vmatprep.subr.mxu0 %v633
  %741 = vmatpush1.msra.mxu0 %v630
  %742 = vmatprep.subr.mxu0 0.0
  %743 = vmatpush1.msra.mxu0 0.0
  %744 = vmatprep.subr.mxu0 0.0
  %745 = vmatpush1.msra.mxu0 0.0
  %746 = vmatprep.subr.mxu0 0.0
  %747 = vmatpush1.msra.mxu0 0.0
  %748 = vmatprep.subr.mxu0 0.0
  %749 = vmatpush1.msra.mxu0 0.0
  %750 = vmatprep.subr.mxu0 0.0
  %751 = vmatpush1.msra.mxu0 0.0
  %752 = vmatprep.subr.mxu0 0.0
  %753 = vmatpush1.msra.mxu0 0.0
  %754 = vmatprep.subr.mxu0 0.0
  %755 = vmatpush1.msra.mxu0 0.0
  %756 = vmatprep.subr.mxu0 0.0
  %757 = vmatpush1.msra.mxu0 0.0
  %758 = vmatprep.subr.mxu0 0.0
  %759 = vmatpush1.msra.mxu0 0.0
  %760 = vmatprep.subr.mxu0 0.0
  %761 = vmatpush1.msra.mxu0 0.0
  %762 = vmatprep.subr.mxu0 0.0
  %763 = vmatpush1.msra.mxu0 0.0
  %764 = vmatprep.subr.mxu0 0.0
  %765 = vmatpush1.msra.mxu0 0.0
  %766 = vmatprep.subr.mxu0 0.0
  %767 = vmatpush1.msra.mxu0 0.0
  %768 = vmatprep.subr.mxu0 0.0
  %769 = vmatpush1.msra.mxu0 0.0
  %770 = vmatprep.subr.mxu0 0.0
  %771 = vmatpush1.msra.mxu0 0.0
  %772 = vmatprep.subr.mxu0 0.0
  %773 = vmatpush1.msra.mxu0 0.0
  %774 = vmatprep.subr.mxu0 0.0
  %775 = vmatpush1.msra.mxu0 0.0
  %776 = vmatprep.subr.mxu0 0.0
  %777 = vmatpush1.msra.mxu0 0.0
  %778 = vmatprep.subr.mxu0 0.0
  %779 = vmatpush1.msra.mxu0 0.0
  %780 = vmatprep.subr.mxu0 0.0
  %781 = vmatpush1.msra.mxu0 0.0
  %782 = vmatprep.subr.mxu0 0.0
  %783 = vmatpush1.msra.mxu0 0.0
  %784 = vmatprep.subr.mxu0 0.0
  %785 = vmatpush1.msra.mxu0 0.0
  %786 = vmatprep.subr.mxu0 0.0
  %787 = vmatpush1.msra.mxu0 0.0
  %788 = vmatprep.mubr.f32.mxu0 0.0
  %789 = vmatmul.mubr.f32.gmra.mrb[0].mxu0 %v617
  %v790 = vpop.f32.mrb[0].mxu0
  %v791 = vadd.f32 %v702, %v790
  %v792 = vpop.f32.mrb[0].mxu0
  %v793 = vadd.f32 %v704, %v792
  %794 = vmatprep.mubr.f32.mxu0 0.0
  %795 = vmatmul.mubr.f32.gmra.mrb[0].mxu0 %v620
  %v796 = vpop.f32.mrb[0].mxu0
  %v797 = vadd.f32 %v708, %v796
  %v798 = vpop.f32.mrb[0].mxu0
  %v799 = vadd.f32 %v710, %v798
  %800 = vmatprep.mubr.f32.mxu0 0.0
  %801 = vmatmul.mubr.f32.gmra.mrb[0].mxu0 %v623
  %v802 = vpop.f32.mrb[0].mxu0
  %v803 = vadd.f32 %v714, %v802
  %v804 = vpop.f32.mrb[0].mxu0
  %v805 = vadd.f32 %v716, %v804
  %806 = vmatprep.mubr.f32.mxu0 0.0
  %807 = vmatmul.mubr.f32.gmra.mrb[0].mxu0 %v626
  %v808 = vpop.f32.mrb[0].mxu0
  %v809 = vadd.f32 %v720, %v808
  %v810 = vpop.f32.mrb[0].mxu0
  %v811 = vadd.f32 %v722, %v810
  %812 = vdwg.mxu0
  %v813 = vmax.f32 %v791, 0.0
  %v814 = vmax.f32 %v793, 0.0
  %v815 = vmax.f32 %v797, 0.0
  %v816 = vmax.f32 %v799, 0.0
  %v817 = vmax.f32 %v803, 0.0
  %v818 = vmax.f32 %v805, 0.0
  %v819 = vmax.f32 %v809, 0.0
  %v820 = vmax.f32 %v811, 0.0
  %v821 = vld [vmem:[%s3] sm:$0xff]
  %v822 = vld [vmem:[%s3 + $0x8] sm:$0xff]
  %v823 = vld [vmem:[%s3 + $0x10] sm:$0xff]
  %v824 = vld [vmem:[%s3 + $0x18] sm:$0xff]
  %v825 = vld [vmem:[%s3 + $0x20] sm:$0xff]
  %v826 = vld [vmem:[%s3 + $0x28] sm:$0xff]
  %v827 = vld [vmem:[%s3 + $0x30] sm:$0xff]
  %v828 = vld [vmem:[%s3 + $0x38] sm:$0xff]
  %v829 = vld [vmem:[%s3 + $0x40] sm:$0xff]
  %v830 = vld [vmem:[%s3 + $0x48] sm:$0xff]
  %v831 = vld [vmem:[%s3 + $0x50] sm:$0xff]
  %v832 = vld [vmem:[%s3 + $0x58] sm:$0xff]
  %v833 = vld [vmem:[%s4] sm:$0xff]
  %v834 = vld [vmem:[%s4 + $0x8] sm:$0xff]
  %v835 = vld [vmem:[%s4 + $0x10] sm:$0xff]
  %v836 = vld [vmem:[%s4 + $0x18] sm:$0xff]
  %v837 = vld [vmem:[%s4 + $0x20] sm:$0xff]
  %v838 = vld [vmem:[%s4 + $0x28] sm:$0xff]
  %v839 = vld [vmem:[%s4 + $0x30] sm:$0xff]
  %v840 = vld [vmem:[%s4 + $0x38] sm:$0xff]
  %v841 = vld [vmem:[%s4 + $0x40] sm:$0xff]
  %v842 = vld [vmem:[%s4 + $0x48] sm:$0xff]
  %v843 = vld [vmem:[%s4 + $0x50] sm:$0xff]
  %v844 = vld [vmem:[%s4 + $0x58] sm:$0xff]
  %v845 = vld [vmem:[%s4 + $0x60] sm:$0xff]
  %v846 = vld [vmem:[%s4 + $0x68] sm:$0xff]
  %v847 = vld [vmem:[%s4 + $0x70] sm:$0xff]
  %v848 = vld [vmem:[%s4 + $0x78] sm:$0xff]
  %v849 = vld [vmem:[%s4 + $0x80] sm:$0xff]
  %v850 = vld [vmem:[%s4 + $0x88] sm:$0xff]
  %v851 = vld [vmem:[%s4 + $0x90] sm:$0xff]
  %v852 = vld [vmem:[%s4 + $0x98] sm:$0xff]
  %v853 = vld [vmem:[%s4 + $0xa0] sm:$0x1]
  %862 = vrot.lane.b32.xlu0 %v813, 1
  %v863 = vpop.permute.xlu0 %862
  %864 = vrot.lane.b32.xlu0 %v814, 1
  %v865 = vpop.permute.xlu0 %864
  %866 = vrot.lane.b32.xlu0 %v815, 1
  %v867 = vpop.permute.xlu0 %866
  %868 = vrot.lane.b32.xlu0 %v816, 1
  %v869 = vpop.permute.xlu0 %868
  %870 = vrot.lane.b32.xlu0 %v817, 1
  %v871 = vpop.permute.xlu0 %870
  %872 = vrot.lane.b32.xlu0 %v818, 1
  %v873 = vpop.permute.xlu0 %872
  %874 = vrot.lane.b32.xlu0 %v819, 1
  %v875 = vpop.permute.xlu0 %874
  %876 = vrot.lane.b32.xlu0 %v820, 1
  %v877 = vpop.permute.xlu0 %876
  %v878 = vsel %vm161, %v863, %v865
  %v879 = vsel %vm161, %v867, %v869
  %v880 = vsel %vm161, %v871, %v873
  %v881 = vsel %vm161, %v875, %v877
  %v890 = vsel %vm161, 0.0, %v863
  %v891 = vsel %vm161, 0.0, %v867
  %v892 = vsel %vm161, 0.0, %v871
  %v893 = vsel %vm161, 0.0, %v875
  %vm894 = vcmask 277504
  %v895 = vsel %vm894, %v878, 0.0
  %v896 = vsel %vm894, %v879, 0.0
  %v897 = vsel %vm894, %v880, 0.0
  %v898 = vsel %vm894, %v881, 0.0
  %vm899 = vcmask 261120
  %v901 = vsel %vm899, %v821, 0
  %v904 = vsel %vm899, %v822, 0
  %v907 = vsel %vm899, %v823, 0
  %v910 = vsel %vm899, %v824, 0
  %v913 = vsel %vm899, %v825, 0
  %v916 = vsel %vm899, %v826, 0
  %v919 = vsel %vm899, %v827, 0
  %v922 = vsel %vm899, %v828, 0
  %v925 = vsel %vm899, %v829, 0
  %v928 = vsel %vm899, %v830, 0
  %v931 = vsel %vm899, %v831, 0
  %v934 = vsel %vm899, %v832, 0
  %936 = vmatprep.subr.mxu0 %v895
  %937 = vmatpush1.msra.mxu0 %v890
  %938 = vmatprep.subr.mxu0 %v896
  %939 = vmatpush1.msra.mxu0 %v891
  %940 = vmatprep.subr.mxu0 %v897
  %941 = vmatpush1.msra.mxu0 %v892
  %942 = vmatprep.subr.mxu0 %v898
  %943 = vmatpush1.msra.mxu0 %v893
  %944 = vmatprep.subr.mxu0 0.0
  %945 = vmatpush1.msra.mxu0 0.0
  %946 = vmatprep.subr.mxu0 0.0
  %947 = vmatpush1.msra.mxu0 0.0
  %948 = vmatprep.subr.mxu0 0.0
  %949 = vmatpush1.msra.mxu0 0.0
  %950 = vmatprep.subr.mxu0 0.0
  %951 = vmatpush1.msra.mxu0 0.0
  %952 = vmatprep.subr.mxu0 0.0
  %953 = vmatpush1.msra.mxu0 0.0
  %954 = vmatprep.subr.mxu0 0.0
  %955 = vmatpush1.msra.mxu0 0.0
  %956 = vmatprep.subr.mxu0 0.0
  %957 = vmatpush1.msra.mxu0 0.0
  %958 = vmatprep.subr.mxu0 0.0
  %959 = vmatpush1.msra.mxu0 0.0
  %960 = vmatprep.subr.mxu0 0.0
  %961 = vmatpush1.msra.mxu0 0.0
  %962 = vmatprep.subr.mxu0 0.0
  %963 = vmatpush1.msra.mxu0 0.0
  %964 = vmatprep.subr.mxu0 0.0
  %965 = vmatpush1.msra.mxu0 0.0
  %966 = vmatprep.subr.mxu0 0.0
  %967 = vmatpush1.msra.mxu0 0.0
  %968 = vmatprep.subr.mxu0 0.0
  %969 = vmatpush1.msra.mxu0 0.0
  %970 = vmatprep.subr.mxu0 0.0
  %971 = vmatpush1.msra.mxu0 0.0
  %972 = vmatprep.subr.mxu0 0.0
  %973 = vmatpush1.msra.mxu0 0.0
  %974 = vmatprep.subr.mxu0 0.0
  %975 = vmatpush1.msra.mxu0 0.0
  %976 = vmatprep.subr.mxu0 0.0
  %977 = vmatpush1.msra.mxu0 0.0
  %978 = vmatprep.subr.mxu0 0.0
  %979 = vmatpush1.msra.mxu0 0.0
  %980 = vmatprep.subr.mxu0 0.0
  %981 = vmatpush1.msra.mxu0 0.0
  %982 = vmatprep.subr.mxu0 0.0
  %983 = vmatpush1.msra.mxu0 0.0
  %984 = vmatprep.subr.mxu0 0.0
  %985 = vmatpush1.msra.mxu0 0.0
  %986 = vmatprep.subr.mxu0 0.0
  %987 = vmatpush1.msra.mxu0 0.0
  %988 = vmatprep.subr.mxu0 0.0
  %989 = vmatpush1.msra.mxu0 0.0
  %990 = vmatprep.subr.mxu0 0.0
  %991 = vmatpush1.msra.mxu0 0.0
  %992 = vmatprep.subr.mxu0 0.0
  %993 = vmatpush1.msra.mxu0 0.0
  %994 = vmatprep.subr.mxu0 0.0
  %995 = vmatpush1.msra.mxu0 0.0
  %996 = vmatprep.subr.mxu0 0.0
  %997 = vmatpush1.msra.mxu0 0.0
  %998 = vmatprep.subr.mxu0 0.0
  %999 = vmatpush1.msra.mxu0 0.0
  %1000 = vmatprep.mubr.f32.mxu0 0.0
  %1001 = vmatmul.mubr.f32.gmra.mrb[0].mxu0 %v901
  %v1002 = vpop.f32.mrb[0].mxu0
  %v1003 = vadd.f32 0.0, %v1002
  %v1004 = vpop.f32.mrb[0].mxu0
  %v1005 = vadd.f32 0.0, %v1004
  %1006 = vmatprep.mubr.f32.mxu0 0.0
  %1007 = vmatmul.mubr.f32.gmra.mrb[0].mxu0 %v904
  %v1008 = vpop.f32.mrb[0].mxu0
  %v1009 = vadd.f32 0.0, %v1008
  %v1010 = vpop.f32.mrb[0].mxu0
  %v1011 = vadd.f32 0.0, %v1010
  %1012 = vmatprep.mubr.f32.mxu0 0.0
  %1013 = vmatmul.mubr.f32.gmra.mrb[0].mxu0 %v907
  %v1014 = vpop.f32.mrb[0].mxu0
  %v1015 = vadd.f32 0.0, %v1014
  %v1016 = vpop.f32.mrb[0].mxu0
  %v1017 = vadd.f32 0.0, %v1016
  %1018 = vmatprep.mubr.f32.mxu0 0.0
  %1019 = vmatmul.mubr.f32.gmra.mrb[0].mxu0 %v910
  %v1020 = vpop.f32.mrb[0].mxu0
  %v1021 = vadd.f32 0.0, %v1020
  %v1022 = vpop.f32.mrb[0].mxu0
  %v1023 = vadd.f32 0.0, %v1022
  %1024 = vmatprep.mubr.f32.mxu0 0.0
  %1025 = vmatmul.mubr.f32.gmra.mrb[0].mxu0 %v913
  %v1026 = vpop.f32.mrb[0].mxu0
  %v1027 = vadd.f32 0.0, %v1026
  %v1028 = vpop.f32.mrb[0].mxu0
  %v1029 = vadd.f32 0.0, %v1028
  %1030 = vmatprep.mubr.f32.mxu0 0.0
  %1031 = vmatmul.mubr.f32.gmra.mrb[0].mxu0 %v916
  %v1032 = vpop.f32.mrb[0].mxu0
  %v1033 = vadd.f32 0.0, %v1032
  %v1034 = vpop.f32.mrb[0].mxu0
  %v1035 = vadd.f32 0.0, %v1034
  %1036 = vmatprep.mubr.f32.mxu0 0.0
  %1037 = vmatmul.mubr.f32.gmra.mrb[0].mxu0 %v919
  %v1038 = vpop.f32.mrb[0].mxu0
  %v1039 = vadd.f32 0.0, %v1038
  %v1040 = vpop.f32.mrb[0].mxu0
  %v1041 = vadd.f32 0.0, %v1040
  %1042 = vmatprep.mubr.f32.mxu0 0.0
  %1043 = vmatmul.mubr.f32.gmra.mrb[0].mxu0 %v922
  %v1044 = vpop.f32.mrb[0].mxu0
  %v1045 = vadd.f32 0.0, %v1044
  %v1046 = vpop.f32.mrb[0].mxu0
  %v1047 = vadd.f32 0.0, %v1046
  %1048 = vmatprep.mubr.f32.mxu0 0.0
  %1049 = vmatmul.mubr.f32.gmra.mrb[0].mxu0 %v925
  %v1050 = vpop.f32.mrb[0].mxu0
  %v1051 = vadd.f32 0.0, %v1050
  %v1052 = vpop.f32.mrb[0].mxu0
  %v1053 = vadd.f32 0.0, %v1052
  %1054 = vmatprep.mubr.f32.mxu0 0.0
  %1055 = vmatmul.mubr.f32.gmra.mrb[0].mxu0 %v928
  %v1056 = vpop.f32.mrb[0].mxu0
  %v1057 = vadd.f32 0.0, %v1056
  %v1058 = vpop.f32.mrb[0].mxu0
  %v1059 = vadd.f32 0.0, %v1058
  %1060 = vmatprep.mubr.f32.mxu0 0.0
  %1061 = vmatmul.mubr.f32.gmra.mrb[0].mxu0 %v931
  %v1062 = vpop.f32.mrb[0].mxu0
  %v1063 = vadd.f32 0.0, %v1062
  %v1064 = vpop.f32.mrb[0].mxu0
  %v1065 = vadd.f32 0.0, %v1064
  %1066 = vmatprep.mubr.f32.mxu0 0.0
  %1067 = vmatmul.mubr.f32.gmra.mrb[0].mxu0 %v934
  %v1068 = vpop.f32.mrb[0].mxu0
  %v1069 = vadd.f32 0.0, %v1068
  %v1070 = vpop.f32.mrb[0].mxu0
  %v1071 = vadd.f32 0.0, %v1070
  %1072 = vdwg.mxu0
  %1081 = vrot.lane.b32.xlu0 %v1027, 127
  %v1082 = vpop.permute.xlu0 %1081
  %1083 = vrot.lane.b32.xlu0 %v1029, 127
  %v1084 = vpop.permute.xlu0 %1083
  %1085 = vrot.lane.b32.xlu0 %v1033, 127
  %v1086 = vpop.permute.xlu0 %1085
  %1087 = vrot.lane.b32.xlu0 %v1035, 127
  %v1088 = vpop.permute.xlu0 %1087
  %1089 = vrot.lane.b32.xlu0 %v1039, 127
  %v1090 = vpop.permute.xlu0 %1089
  %1091 = vrot.lane.b32.xlu0 %v1041, 127
  %v1092 = vpop.permute.xlu0 %1091
  %1093 = vrot.lane.b32.xlu0 %v1045, 127
  %v1094 = vpop.permute.xlu0 %1093
  %1095 = vrot.lane.b32.xlu0 %v1047, 127
  %v1096 = vpop.permute.xlu0 %1095
  %v1097 = vsel %vm513, %v1082, %v1084
  %v1098 = vsel %vm513, %v1086, %v1088
  %v1099 = vsel %vm513, %v1090, %v1092
  %v1100 = vsel %vm513, %v1094, %v1096
  %v1109 = vadd.f32 %v1003, %v1097
  %v1110 = vadd.f32 %v1005, %v1084
  %v1111 = vadd.f32 %v1009, %v1098
  %v1112 = vadd.f32 %v1011, %v1088
  %v1113 = vadd.f32 %v1015, %v1099
  %v1114 = vadd.f32 %v1017, %v1092
  %v1115 = vadd.f32 %v1021, %v1100
  %v1116 = vadd.f32 %v1023, %v1096
  %1125 = vrot.lane.b32.xlu0 %v1051, 126
  %v1126 = vpop.permute.xlu0 %1125
  %1127 = vrot.lane.b32.xlu0 %v1053, 126
  %v1128 = vpop.permute.xlu0 %1127
  %1129 = vrot.lane.b32.xlu0 %v1057, 126
  %v1130 = vpop.permute.xlu0 %1129
  %1131 = vrot.lane.b32.xlu0 %v1059, 126
  %v1132 = vpop.permute.xlu0 %1131
  %1133 = vrot.lane.b32.xlu0 %v1063, 126
  %v1134 = vpop.permute.xlu0 %1133
  %1135 = vrot.lane.b32.xlu0 %v1065, 126
  %v1136 = vpop.permute.xlu0 %1135
  %1137 = vrot.lane.b32.xlu0 %v1069, 126
  %v1138 = vpop.permute.xlu0 %1137
  %1139 = vrot.lane.b32.xlu0 %v1071, 126
  %v1140 = vpop.permute.xlu0 %1139
  %v1141 = vsel %vm582, %v1126, %v1128
  %v1142 = vsel %vm582, %v1130, %v1132
  %v1143 = vsel %vm582, %v1134, %v1136
  %v1144 = vsel %vm582, %v1138, %v1140
  %v1153 = vadd.f32 %v1109, %v1141
  %v1154 = vadd.f32 %v1110, %v1128
  %v1155 = vadd.f32 %v1111, %v1142
  %v1156 = vadd.f32 %v1112, %v1132
  %v1157 = vadd.f32 %v1113, %v1143
  %v1158 = vadd.f32 %v1114, %v1136
  %v1159 = vadd.f32 %v1115, %v1144
  %v1160 = vadd.f32 %v1116, %v1140
  %vm1161 = vcmask 269312
  %v1163 = vsel %vm1161, %v1154, 0
  %v1166 = vsel %vm1161, %v1156, 0
  %v1169 = vsel %vm1161, %v1158, 0
  %v1172 = vsel %vm1161, %v1160, 0
  %v1175 = vsel %vm628, %v853, 0
  %1177 = vmatprep.subr.mxu0 0.0
  %1178 = vmatpush1.msra.mxu0 %v833
  %1179 = vmatprep.subr.mxu0 0.0
  %1180 = vmatpush1.msra.mxu0 %v834
  %1181 = vmatprep.subr.mxu0 0.0
  %1182 = vmatpush1.msra.mxu0 %v835
  %1183 = vmatprep.subr.mxu0 0.0
  %1184 = vmatpush1.msra.mxu0 %v836
  %1185 = vmatprep.subr.mxu0 0.0
  %1186 = vmatpush1.msra.mxu0 %v837
  %1187 = vmatprep.subr.mxu0 0.0
  %1188 = vmatpush1.msra.mxu0 %v838
  %1189 = vmatprep.subr.mxu0 0.0
  %1190 = vmatpush1.msra.mxu0 %v839
  %1191 = vmatprep.subr.mxu0 0.0
  %1192 = vmatpush1.msra.mxu0 %v840
  %1193 = vmatprep.subr.mxu0 0.0
  %1194 = vmatpush1.msra.mxu0 %v841
  %1195 = vmatprep.subr.mxu0 0.0
  %1196 = vmatpush1.msra.mxu0 %v842
  %1197 = vmatprep.subr.mxu0 0.0
  %1198 = vmatpush1.msra.mxu0 %v843
  %1199 = vmatprep.subr.mxu0 0.0
  %1200 = vmatpush1.msra.mxu0 %v844
  %1201 = vmatprep.subr.mxu0 0.0
  %1202 = vmatpush1.msra.mxu0 %v845
  %1203 = vmatprep.subr.mxu0 0.0
  %1204 = vmatpush1.msra.mxu0 %v846
  %1205 = vmatprep.subr.mxu0 0.0
  %1206 = vmatpush1.msra.mxu0 %v847
  %1207 = vmatprep.subr.mxu0 0.0
  %1208 = vmatpush1.msra.mxu0 %v848
  %1209 = vmatprep.subr.mxu0 0.0
  %1210 = vmatpush1.msra.mxu0 %v849
  %1211 = vmatprep.subr.mxu0 0.0
  %1212 = vmatpush1.msra.mxu0 %v850
  %1213 = vmatprep.subr.mxu0 0.0
  %1214 = vmatpush1.msra.mxu0 %v851
  %1215 = vmatprep.subr.mxu0 0.0
  %1216 = vmatpush1.msra.mxu0 %v852
  %1217 = vmatprep.subr.mxu0 0.0
  %1218 = vmatpush1.msra.mxu0 %v1175
  %1219 = vmatprep.subr.mxu0 0.0
  %1220 = vmatpush1.msra.mxu0 0.0
  %1221 = vmatprep.subr.mxu0 0.0
  %1222 = vmatpush1.msra.mxu0 0.0
  %1223 = vmatprep.subr.mxu0 0.0
  %1224 = vmatpush1.msra.mxu0 0.0
  %1225 = vmatprep.subr.mxu0 0.0
  %1226 = vmatpush1.msra.mxu0 0.0
  %1227 = vmatprep.subr.mxu0 0.0
  %1228 = vmatpush1.msra.mxu0 0.0
  %1229 = vmatprep.subr.mxu0 0.0
  %1230 = vmatpush1.msra.mxu0 0.0
  %1231 = vmatprep.subr.mxu0 0.0
  %1232 = vmatpush1.msra.mxu0 0.0
  %1233 = vmatprep.subr.mxu0 0.0
  %1234 = vmatpush1.msra.mxu0 0.0
  %1235 = vmatprep.subr.mxu0 0.0
  %1236 = vmatpush1.msra.mxu0 0.0
  %1237 = vmatprep.subr.mxu0 0.0
  %1238 = vmatpush1.msra.mxu0 0.0
  %1239 = vmatprep.subr.mxu0 0.0
  %1240 = vmatpush1.msra.mxu0 0.0
  %1241 = vmatprep.mubr.f32.mxu0 %v1163
  %1242 = vmatmul.mubr.f32.gmra.mrb[0].mxu0 %v1153
  %v1243 = vpop.f32.mrb[0].mxu0
  %v1244 = vadd.f32 0.0, %v1243
  %v1245 = vpop.f32.mrb[0].mxu0
  %1246 = vmatprep.mubr.f32.mxu0 %v1166
  %1247 = vmatmul.mubr.f32.gmra.mrb[0].mxu0 %v1155
  %v1248 = vpop.f32.mrb[0].mxu0
  %v1249 = vadd.f32 0.0, %v1248
  %v1250 = vpop.f32.mrb[0].mxu0
  %1251 = vmatprep.mubr.f32.mxu0 %v1169
  %1252 = vmatmul.mubr.f32.gmra.mrb[0].mxu0 %v1157
  %v1253 = vpop.f32.mrb[0].mxu0
  %v1254 = vadd.f32 0.0, %v1253
  %v1255 = vpop.f32.mrb[0].mxu0
  %1256 = vmatprep.mubr.f32.mxu0 %v1172
  %1257 = vmatmul.mubr.f32.gmra.mrb[0].mxu0 %v1159
  %v1258 = vpop.f32.mrb[0].mxu0
  %v1259 = vadd.f32 0.0, %v1258
  %v1260 = vpop.f32.mrb[0].mxu0
  %1261 = vdwg.mxu0
  %v1262 = vmax.f32 %v1244, 0.0
  %v1263 = vmax.f32 %v1249, 0.0
  %v1264 = vmax.f32 %v1254, 0.0
  %v1265 = vmax.f32 %v1259, 0.0
  %v1266 = vld [vmem:[%s5] sm:$0xff]
  %v1267 = vld [vmem:[%s5 + $0x8] sm:$0xff]
  %v1268 = vld [vmem:[%s5 + $0x10] sm:$0xff]
  %v1269 = vld [vmem:[%s5 + $0x18] sm:$0xff]
  %v1270 = vld [vmem:[%s5 + $0x20] sm:$0xff]
  %v1271 = vld [vmem:[%s5 + $0x28] sm:$0xff]
  %v1272 = vld [vmem:[%s5 + $0x30] sm:$0xff]
  %v1273 = vld [vmem:[%s5 + $0x38] sm:$0xff]
  %v1274 = vld [vmem:[%s5 + $0x40] sm:$0xff]
  %v1275 = vld [vmem:[%s5 + $0x48] sm:$0xff]
  %1280 = vrot.lane.b32.xlu0 %v1262, 127
  %v1281 = vpop.permute.xlu0 %1280
  %1282 = vrot.lane.b32.xlu0 %v1263, 127
  %v1283 = vpop.permute.xlu0 %1282
  %1284 = vrot.lane.b32.xlu0 %v1264, 127
  %v1285 = vpop.permute.xlu0 %1284
  %1286 = vrot.lane.b32.xlu0 %v1265, 127
  %v1287 = vpop.permute.xlu0 %1286
  %v1292 = vmax.f32 %v1262, %v1281
  %v1293 = vmax.f32 %v1263, %v1283
  %v1294 = vmax.f32 %v1264, %v1285
  %v1295 = vmax.f32 %v1265, %v1287
  %vm1296 = vcmask 654336
  %v1298 = vsel %vm1296, %v1292, 0
  %v1301 = vsel %vm1296, %v1293, 0
  %v1304 = vsel %vm1296, %v1294, 0
  %v1307 = vsel %vm1296, %v1295, 0
  %1309 = vmatprep.subr.mxu0 0.0
  %1310 = vmatpush1.msra.mxu0 %v1266
  %1311 = vmatprep.subr.mxu0 0.0
  %1312 = vmatpush1.msra.mxu0 %v1267
  %1313 = vmatprep.subr.mxu0 0.0
  %1314 = vmatpush1.msra.mxu0 %v1268
  %1315 = vmatprep.subr.mxu0 0.0
  %1316 = vmatpush1.msra.mxu0 %v1269
  %1317 = vmatprep.subr.mxu0 0.0
  %1318 = vmatpush1.msra.mxu0 %v1270
  %1319 = vmatprep.subr.mxu0 0.0
  %1320 = vmatpush1.msra.mxu0 %v1271
  %1321 = vmatprep.subr.mxu0 0.0
  %1322 = vmatpush1.msra.mxu0 %v1272
  %1323 = vmatprep.subr.mxu0 0.0
  %1324 = vmatpush1.msra.mxu0 %v1273
  %1325 = vmatprep.subr.mxu0 0.0
  %1326 = vmatpush1.msra.mxu0 %v1274
  %1327 = vmatprep.subr.mxu0 0.0
  %1328 = vmatpush1.msra.mxu0 %v1275
  %1329 = vmatprep.subr.mxu0 0.0
  %1330 = vmatpush1.msra.mxu0 0.0
  %1331 = vmatprep.subr.mxu0 0.0
  %1332 = vmatpush1.msra.mxu0 0.0
  %1333 = vmatprep.subr.mxu0 0.0
  %1334 = vmatpush1.msra.mxu0 0.0
  %1335 = vmatprep.subr.mxu0 0.0
  %1336 = vmatpush1.msra.mxu0 0.0
  %1337 = vmatprep.subr.mxu0 0.0
  %1338 = vmatpush1.msra.mxu0 0.0
  %1339 = vmatprep.subr.mxu0 0.0
  %1340 = vmatpush1.msra.mxu0 0.0
  %1341 = vmatprep.subr.mxu0 0.0
  %1342 = vmatpush1.msra.mxu0 0.0
  %1343 = vmatprep.subr.mxu0 0.0
  %1344 = vmatpush1.msra.mxu0 0.0
  %1345 = vmatprep.subr.mxu0 0.0
  %1346 = vmatpush1.msra.mxu0 0.0
  %1347 = vmatprep.subr.mxu0 0.0
  %1348 = vmatpush1.msra.mxu0 0.0
  %1349 = vmatprep.subr.mxu0 0.0
  %1350 = vmatpush1.msra.mxu0 0.0
  %1351 = vmatprep.subr.mxu0 0.0
  %1352 = vmatpush1.msra.mxu0 0.0
  %1353 = vmatprep.subr.mxu0 0.0
  %1354 = vmatpush1.msra.mxu0 0.0
  %1355 = vmatprep.subr.mxu0 0.0
  %1356 = vmatpush1.msra.mxu0 0.0
  %1357 = vmatprep.subr.mxu0 0.0
  %1358 = vmatpush1.msra.mxu0 0.0
  %1359 = vmatprep.subr.mxu0 0.0
  %1360 = vmatpush1.msra.mxu0 0.0
  %1361 = vmatprep.subr.mxu0 0.0
  %1362 = vmatpush1.msra.mxu0 0.0
  %1363 = vmatprep.subr.mxu0 0.0
  %1364 = vmatpush1.msra.mxu0 0.0
  %1365 = vmatprep.subr.mxu0 0.0
  %1366 = vmatpush1.msra.mxu0 0.0
  %1367 = vmatprep.subr.mxu0 0.0
  %1368 = vmatpush1.msra.mxu0 0.0
  %1369 = vmatprep.subr.mxu0 0.0
  %1370 = vmatpush1.msra.mxu0 0.0
  %1371 = vmatprep.subr.mxu0 0.0
  %1372 = vmatpush1.msra.mxu0 0.0
  %1373 = vmatprep.mubr.f32.mxu0 0.0
  %1374 = vmatmul.mubr.f32.gmra.mrb[0].mxu0 %v1298
  %v1375 = vpop.f32.mrb[0].mxu0
  %v1376 = vadd.f32 0.0, %v1375
  %v1377 = vpop.f32.mrb[0].mxu0
  %1378 = vmatprep.mubr.f32.mxu0 0.0
  %1379 = vmatmul.mubr.f32.gmra.mrb[0].mxu0 %v1301
  %v1380 = vpop.f32.mrb[0].mxu0
  %v1381 = vadd.f32 0.0, %v1380
  %v1382 = vpop.f32.mrb[0].mxu0
  %1383 = vmatprep.mubr.f32.mxu0 0.0
  %1384 = vmatmul.mubr.f32.gmra.mrb[0].mxu0 %v1304
  %v1385 = vpop.f32.mrb[0].mxu0
  %v1386 = vadd.f32 0.0, %v1385
  %v1387 = vpop.f32.mrb[0].mxu0
  %1388 = vmatprep.mubr.f32.mxu0 0.0
  %1389 = vmatmul.mubr.f32.gmra.mrb[0].mxu0 %v1307
  %v1390 = vpop.f32.mrb[0].mxu0
  %v1391 = vadd.f32 0.0, %v1390
  %v1392 = vpop.f32.mrb[0].mxu0
  %1393 = vdwg.mxu0
  %v1394 = vld [vmem:[%s6] sm:$0xff]
  %v1395 = vld [vmem:[%s6 + $0x8] sm:$0xff]
  %v1396 = vld [vmem:[%s6 + $0x10] sm:$0xff]
  %v1397 = vld [vmem:[%s6 + $0x18] sm:$0xff]
  %v1398 = vld [vmem:[%s6 + $0x20] sm:$0xff]
  %v1399 = vld [vmem:[%s6 + $0x28] sm:$0xff]
  %v1400 = vld [vmem:[%s6 + $0x30] sm:$0xff]
  %v1401 = vld [vmem:[%s6 + $0x38] sm:$0xff]
  %1406 = vrot.lane.b32.xlu0 %v1376, 1
  %v1407 = vpop.permute.xlu0 %1406
  %1408 = vrot.lane.b32.xlu0 %v1381, 1
  %v1409 = vpop.permute.xlu0 %1408
  %1410 = vrot.lane.b32.xlu0 %v1386, 1
  %v1411 = vpop.permute.xlu0 %1410
  %1412 = vrot.lane.b32.xlu0 %v1391, 1
  %v1413 = vpop.permute.xlu0 %1412
  %v1418 = vsel %vm161, 0.0, %v1407
  %v1419 = vsel %vm161, 0.0, %v1409
  %v1420 = vsel %vm161, 0.0, %v1411
  %v1421 = vsel %vm161, 0.0, %v1413
  %vm1422 = vcmask 334848
  %v1423 = vsel %vm1422, %v1418, 0.0
  %v1424 = vsel %vm1422, %v1419, 0.0
  %v1425 = vsel %vm1422, %v1420, 0.0
  %v1426 = vsel %vm1422, %v1421, 0.0
  %v1428 = vsel %vm899, %v1394, 0
  %v1431 = vsel %vm899, %v1395, 0
  %v1434 = vsel %vm899, %v1396, 0
  %v1437 = vsel %vm899, %v1397, 0
  %v1440 = vsel %vm899, %v1398, 0
  %v1443 = vsel %vm899, %v1399, 0
  %v1446 = vsel %vm899, %v1400, 0
  %v1449 = vsel %vm899, %v1401, 0
  %1451 = vmatprep.subr.mxu0 0.0
  %1452 = vmatpush1.msra.mxu0 %v1423
  %1453 = vmatprep.subr.mxu0 0.0
  %1454 = vmatpush1.msra.mxu0 %v1424
  %1455 = vmatprep.subr.mxu0 0.0
  %1456 = vmatpush1.msra.mxu0 %v1425
  %1457 = vmatprep.subr.mxu0 0.0
  %1458 = vmatpush1.msra.mxu0 %v1426
  %1459 = vmatprep.subr.mxu0 0.0
  %1460 = vmatpush1.msra.mxu0 0.0
  %1461 = vmatprep.subr.mxu0 0.0
  %1462 = vmatpush1.msra.mxu0 0.0
  %1463 = vmatprep.subr.mxu0 0.0
  %1464 = vmatpush1.msra.mxu0 0.0
  %1465 = vmatprep.subr.mxu0 0.0
  %1466 = vmatpush1.msra.mxu0 0.0
  %1467 = vmatprep.subr.mxu0 0.0
  %1468 = vmatpush1.msra.mxu0 0.0
  %1469 = vmatprep.subr.mxu0 0.0
  %1470 = vmatpush1.msra.mxu0 0.0
  %1471 = vmatprep.subr.mxu0 0.0
  %1472 = vmatpush1.msra.mxu0 0.0
  %1473 = vmatprep.subr.mxu0 0.0
  %1474 = vmatpush1.msra.mxu0 0.0
  %1475 = vmatprep.subr.mxu0 0.0
  %1476 = vmatpush1.msra.mxu0 0.0
  %1477 = vmatprep.subr.mxu0 0.0
  %1478 = vmatpush1.msra.mxu0 0.0
  %1479 = vmatprep.subr.mxu0 0.0
  %1480 = vmatpush1.msra.mxu0 0.0
  %1481 = vmatprep.subr.mxu0 0.0
  %1482 = vmatpush1.msra.mxu0 0.0
  %1483 = vmatprep.subr.mxu0 0.0
  %1484 = vmatpush1.msra.mxu0 0.0
  %1485 = vmatprep.subr.mxu0 0.0
  %1486 = vmatpush1.msra.mxu0 0.0
  %1487 = vmatprep.subr.mxu0 0.0
  %1488 = vmatpush1.msra.mxu0 0.0
  %1489 = vmatprep.subr.mxu0 0.0
  %1490 = vmatpush1.msra.mxu0 0.0
  %1491 = vmatprep.subr.mxu0 0.0
  %1492 = vmatpush1.msra.mxu0 0.0
  %1493 = vmatprep.subr.mxu0 0.0
  %1494 = vmatpush1.msra.mxu0 0.0
  %1495 = vmatprep.subr.mxu0 0.0
  %1496 = vmatpush1.msra.mxu0 0.0
  %1497 = vmatprep.subr.mxu0 0.0
  %1498 = vmatpush1.msra.mxu0 0.0
  %1499 = vmatprep.subr.mxu0 0.0
  %1500 = vmatpush1.msra.mxu0 0.0
  %1501 = vmatprep.subr.mxu0 0.0
  %1502 = vmatpush1.msra.mxu0 0.0
  %1503 = vmatprep.subr.mxu0 0.0
  %1504 = vmatpush1.msra.mxu0 0.0
  %1505 = vmatprep.subr.mxu0 0.0
  %1506 = vmatpush1.msra.mxu0 0.0
  %1507 = vmatprep.subr.mxu0 0.0
  %1508 = vmatpush1.msra.mxu0 0.0
  %1509 = vmatprep.subr.mxu0 0.0
  %1510 = vmatpush1.msra.mxu0 0.0
  %1511 = vmatprep.subr.mxu0 0.0
  %1512 = vmatpush1.msra.mxu0 0.0
  %1513 = vmatprep.subr.mxu0 0.0
  %1514 = vmatpush1.msra.mxu0 0.0
  %1515 = vmatprep.mubr.f32.mxu0 0.0
  %1516 = vmatmul.mubr.f32.gmra.mrb[0].mxu0 %v1428
  %v1517 = vpop.f32.mrb[0].mxu0
  %v1518 = vadd.f32 0.0, %v1517
  %v1519 = vpop.f32.mrb[0].mxu0
  %1520 = vmatprep.mubr.f32.mxu0 0.0
  %1521 = vmatmul.mubr.f32.gmra.mrb[0].mxu0 %v1431
  %v1522 = vpop.f32.mrb[0].mxu0
  %v1523 = vadd.f32 0.0, %v1522
  %v1524 = vpop.f32.mrb[0].mxu0
  %1525 = vmatprep.mubr.f32.mxu0 0.0
  %1526 = vmatmul.mubr.f32.gmra.mrb[0].mxu0 %v1434
  %v1527 = vpop.f32.mrb[0].mxu0
  %v1528 = vadd.f32 0.0, %v1527
  %v1529 = vpop.f32.mrb[0].mxu0
  %1530 = vmatprep.mubr.f32.mxu0 0.0
  %1531 = vmatmul.mubr.f32.gmra.mrb[0].mxu0 %v1437
  %v1532 = vpop.f32.mrb[0].mxu0
  %v1533 = vadd.f32 0.0, %v1532
  %v1534 = vpop.f32.mrb[0].mxu0
  %1535 = vmatprep.mubr.f32.mxu0 0.0
  %1536 = vmatmul.mubr.f32.gmra.mrb[0].mxu0 %v1440
  %v1537 = vpop.f32.mrb[0].mxu0
  %v1538 = vadd.f32 0.0, %v1537
  %v1539 = vpop.f32.mrb[0].mxu0
  %1540 = vmatprep.mubr.f32.mxu0 0.0
  %1541 = vmatmul.mubr.f32.gmra.mrb[0].mxu0 %v1443
  %v1542 = vpop.f32.mrb[0].mxu0
  %v1543 = vadd.f32 0.0, %v1542
  %v1544 = vpop.f32.mrb[0].mxu0
  %1545 = vmatprep.mubr.f32.mxu0 0.0
  %1546 = vmatmul.mubr.f32.gmra.mrb[0].mxu0 %v1446
  %v1547 = vpop.f32.mrb[0].mxu0
  %v1548 = vadd.f32 0.0, %v1547
  %v1549 = vpop.f32.mrb[0].mxu0
  %1550 = vmatprep.mubr.f32.mxu0 0.0
  %1551 = vmatmul.mubr.f32.gmra.mrb[0].mxu0 %v1449
  %v1552 = vpop.f32.mrb[0].mxu0
  %v1553 = vadd.f32 0.0, %v1552
  %v1554 = vpop.f32.mrb[0].mxu0
  %1555 = vdwg.mxu0
  %1560 = vrot.lane.b32.xlu0 %v1538, 127
  %v1561 = vpop.permute.xlu0 %1560
  %1562 = vrot.lane.b32.xlu0 %v1543, 127
  %v1563 = vpop.permute.xlu0 %1562
  %1564 = vrot.lane.b32.xlu0 %v1548, 127
  %v1565 = vpop.permute.xlu0 %1564
  %1566 = vrot.lane.b32.xlu0 %v1553, 127
  %v1567 = vpop.permute.xlu0 %1566
  %v1572 = vadd.f32 %v1518, %v1561
  %v1573 = vadd.f32 %v1523, %v1563
  %v1574 = vadd.f32 %v1528, %v1565
  %v1575 = vadd.f32 %v1533, %v1567
  %v1576 = vmax.f32 %v1572, 0.0
  %v1577 = vmax.f32 %v1573, 0.0
  %v1578 = vmax.f32 %v1574, 0.0
  %v1579 = vmax.f32 %v1575, 0.0
  %v1580 = vld [vmem:[%s7] sm:$0xff]
  %v1581 = vld [vmem:[%s7 + $0x8] sm:$0xff]
  %v1582 = vld [vmem:[%s7 + $0x10] sm:$0xff]
  %v1583 = vld [vmem:[%s7 + $0x18] sm:$0xff]
  %v1584 = vld [vmem:[%s7 + $0x20] sm:$0xff]
  %v1585 = vld [vmem:[%s7 + $0x28] sm:$0xff]
  %v1586 = vld [vmem:[%s7 + $0x30] sm:$0xff]
  %v1587 = vld [vmem:[%s7 + $0x38] sm:$0xff]
  %v1588 = vld [vmem:[%s8] sm:$0xff]
  %v1589 = vld [vmem:[%s8 + $0x8] sm:$0xff]
  %v1590 = vld [vmem:[%s8 + $0x10] sm:$0xff]
  %v1591 = vld [vmem:[%s8 + $0x18] sm:$0xff]
  %v1592 = vld [vmem:[%s8 + $0x20] sm:$0xff]
  %v1593 = vld [vmem:[%s8 + $0x28] sm:$0x1]
  %1598 = vrot.lane.b32.xlu0 %v1576, 1
  %v1599 = vpop.permute.xlu0 %1598
  %1600 = vrot.lane.b32.xlu0 %v1577, 1
  %v1601 = vpop.permute.xlu0 %1600
  %1602 = vrot.lane.b32.xlu0 %v1578, 1
  %v1603 = vpop.permute.xlu0 %1602
  %1604 = vrot.lane.b32.xlu0 %v1579, 1
  %v1605 = vpop.permute.xlu0 %1604
  %v1610 = vsel %vm161, 0.0, %v1599
  %v1611 = vsel %vm161, 0.0, %v1601
  %v1612 = vsel %vm161, 0.0, %v1603
  %v1613 = vsel %vm161, 0.0, %v1605
  %vm1614 = vcmask 343040
  %v1615 = vsel %vm1614, %v1610, 0.0
  %v1616 = vsel %vm1614, %v1611, 0.0
  %v1617 = vsel %vm1614, %v1612, 0.0
  %v1618 = vsel %vm1614, %v1613, 0.0
  %v1620 = vsel %vm899, %v1580, 0
  %v1623 = vsel %vm899, %v1581, 0
  %v1626 = vsel %vm899, %v1582, 0
  %v1629 = vsel %vm899, %v1583, 0
  %v1632 = vsel %vm899, %v1584, 0
  %v1635 = vsel %vm899, %v1585, 0
  %v1638 = vsel %vm899, %v1586, 0
  %v1641 = vsel %vm899, %v1587, 0
  %1643 = vmatprep.subr.mxu0 0.0
  %1644 = vmatpush1.msra.mxu0 %v1615
  %1645 = vmatprep.subr.mxu0 0.0
  %1646 = vmatpush1.msra.mxu0 %v1616
  %1647 = vmatprep.subr.mxu0 0.0
  %1648 = vmatpush1.msra.mxu0 %v1617
  %1649 = vmatprep.subr.mxu0 0.0
  %1650 = vmatpush1.msra.mxu0 %v1618
  %1651 = vmatprep.subr.mxu0 0.0
  %1652 = vmatpush1.msra.mxu0 0.0
  %1653 = vmatprep.subr.mxu0 0.0
  %1654 = vmatpush1.msra.mxu0 0.0
  %1655 = vmatprep.subr.mxu0 0.0
  %1656 = vmatpush1.msra.mxu0 0.0
  %1657 = vmatprep.subr.mxu0 0.0
  %1658 = vmatpush1.msra.mxu0 0.0
  %1659 = vmatprep.subr.mxu0 0.0
  %1660 = vmatpush1.msra.mxu0 0.0
  %1661 = vmatprep.subr.mxu0 0.0
  %1662 = vmatpush1.msra.mxu0 0.0
  %1663 = vmatprep.subr.mxu0 0.0
  %1664 = vmatpush1.msra.mxu0 0.0
  %1665 = vmatprep.subr.mxu0 0.0
  %1666 = vmatpush1.msra.mxu0 0.0
  %1667 = vmatprep.subr.mxu0 0.0
  %1668 = vmatpush1.msra.mxu0 0.0
  %1669 = vmatprep.subr.mxu0 0.0
  %1670 = vmatpush1.msra.mxu0 0.0
  %1671 = vmatprep.subr.mxu0 0.0
  %1672 = vmatpush1.msra.mxu0 0.0
  %1673 = vmatprep.subr.mxu0 0.0
  %1674 = vmatpush1.msra.mxu0 0.0
  %1675 = vmatprep.subr.mxu0 0.0
  %1676 = vmatpush1.msra.mxu0 0.0
  %1677 = vmatprep.subr.mxu0 0.0
  %1678 = vmatpush1.msra.mxu0 0.0
  %1679 = vmatprep.subr.mxu0 0.0
  %1680 = vmatpush1.msra.mxu0 0.0
  %1681 = vmatprep.subr.mxu0 0.0
  %1682 = vmatpush1.msra.mxu0 0.0
  %1683 = vmatprep.subr.mxu0 0.0
  %1684 = vmatpush1.msra.mxu0 0.0
  %1685 = vmatprep.subr.mxu0 0.0
  %1686 = vmatpush1.msra.mxu0 0.0
  %1687 = vmatprep.subr.mxu0 0.0
  %1688 = vmatpush1.msra.mxu0 0.0
  %1689 = vmatprep.subr.mxu0 0.0
  %1690 = vmatpush1.msra.mxu0 0.0
  %1691 = vmatprep.subr.mxu0 0.0
  %1692 = vmatpush1.msra.mxu0 0.0
  %1693 = vmatprep.subr.mxu0 0.0
  %1694 = vmatpush1.msra.mxu0 0.0
  %1695 = vmatprep.subr.mxu0 0.0
  %1696 = vmatpush1.msra.mxu0 0.0
  %1697 = vmatprep.subr.mxu0 0.0
  %1698 = vmatpush1.msra.mxu0 0.0
  %1699 = vmatprep.subr.mxu0 0.0
  %1700 = vmatpush1.msra.mxu0 0.0
  %1701 = vmatprep.subr.mxu0 0.0
  %1702 = vmatpush1.msra.mxu0 0.0
  %1703 = vmatprep.subr.mxu0 0.0
  %1704 = vmatpush1.msra.mxu0 0.0
  %1705 = vmatprep.subr.mxu0 0.0
  %1706 = vmatpush1.msra.mxu0 0.0
  %1707 = vmatprep.mubr.f32.mxu0 0.0
  %1708 = vmatmul.mubr.f32.gmra.mrb[0].mxu0 %v1620
  %v1709 = vpop.f32.mrb[0].mxu0
  %v1710 = vadd.f32 0.0, %v1709
  %v1711 = vpop.f32.mrb[0].mxu0
  %1712 = vmatprep.mubr.f32.mxu0 0.0
  %1713 = vmatmul.mubr.f32.gmra.mrb[0].mxu0 %v1623
  %v1714 = vpop.f32.mrb[0].mxu0
  %v1715 = vadd.f32 0.0, %v1714
  %v1716 = vpop.f32.mrb[0].mxu0
  %1717 = vmatprep.mubr.f32.mxu0 0.0
  %1718 = vmatmul.mubr.f32.gmra.mrb[0].mxu0 %v1626
  %v1719 = vpop.f32.mrb[0].mxu0
  %v1720 = vadd.f32 0.0, %v1719
  %v1721 = vpop.f32.mrb[0].mxu0
  %1722 = vmatprep.mubr.f32.mxu0 0.0
  %1723 = vmatmul.mubr.f32.gmra.mrb[0].mxu0 %v1629
  %v1724 = vpop.f32.mrb[0].mxu0
  %v1725 = vadd.f32 0.0, %v1724
  %v1726 = vpop.f32.mrb[0].mxu0
  %1727 = vmatprep.mubr.f32.mxu0 0.0
  %1728 = vmatmul.mubr.f32.gmra.mrb[0].mxu0 %v1632
  %v1729 = vpop.f32.mrb[0].mxu0
  %v1730 = vadd.f32 0.0, %v1729
  %v1731 = vpop.f32.mrb[0].mxu0
  %1732 = vmatprep.mubr.f32.mxu0 0.0
  %1733 = vmatmul.mubr.f32.gmra.mrb[0].mxu0 %v1635
  %v1734 = vpop.f32.mrb[0].mxu0
  %v1735 = vadd.f32 0.0, %v1734
  %v1736 = vpop.f32.mrb[0].mxu0
  %1737 = vmatprep.mubr.f32.mxu0 0.0
  %1738 = vmatmul.mubr.f32.gmra.mrb[0].mxu0 %v1638
  %v1739 = vpop.f32.mrb[0].mxu0
  %v1740 = vadd.f32 0.0, %v1739
  %v1741 = vpop.f32.mrb[0].mxu0
  %1742 = vmatprep.mubr.f32.mxu0 0.0
  %1743 = vmatmul.mubr.f32.gmra.mrb[0].mxu0 %v1641
  %v1744 = vpop.f32.mrb[0].mxu0
  %v1745 = vadd.f32 0.0, %v1744
  %v1746 = vpop.f32.mrb[0].mxu0
  %1747 = vdwg.mxu0
  %1752 = vrot.lane.b32.xlu0 %v1730, 127
  %v1753 = vpop.permute.xlu0 %1752
  %1754 = vrot.lane.b32.xlu0 %v1735, 127
  %v1755 = vpop.permute.xlu0 %1754
  %1756 = vrot.lane.b32.xlu0 %v1740, 127
  %v1757 = vpop.permute.xlu0 %1756
  %1758 = vrot.lane.b32.xlu0 %v1745, 127
  %v1759 = vpop.permute.xlu0 %1758
  %v1764 = vadd.f32 %v1710, %v1753
  %v1765 = vadd.f32 %v1715, %v1755
  %v1766 = vadd.f32 %v1720, %v1757
  %v1767 = vadd.f32 %v1725, %v1759
  %v1769 = vsel %vm1422, %v1764, 0
  %v1772 = vsel %vm1422, %v1765, 0
  %v1775 = vsel %vm1422, %v1766, 0
  %v1778 = vsel %vm1422, %v1767, 0
  %v1781 = vsel %vm628, %v1593, 0
  %1783 = vmatprep.subr.mxu0 0.0
  %1784 = vmatpush1.msra.mxu0 %v1588
  %1785 = vmatprep.subr.mxu0 0.0
  %1786 = vmatpush1.msra.mxu0 %v1589
  %1787 = vmatprep.subr.mxu0 0.0
  %1788 = vmatpush1.msra.mxu0 %v1590
  %1789 = vmatprep.subr.mxu0 0.0
  %1790 = vmatpush1.msra.mxu0 %v1591
  %1791 = vmatprep.subr.mxu0 0.0
  %1792 = vmatpush1.msra.mxu0 %v1592
  %1793 = vmatprep.subr.mxu0 0.0
  %1794 = vmatpush1.msra.mxu0 %v1781
  %1795 = vmatprep.subr.mxu0 0.0
  %1796 = vmatpush1.msra.mxu0 0.0
  %1797 = vmatprep.subr.mxu0 0.0
  %1798 = vmatpush1.msra.mxu0 0.0
  %1799 = vmatprep.subr.mxu0 0.0
  %1800 = vmatpush1.msra.mxu0 0.0
  %1801 = vmatprep.subr.mxu0 0.0
  %1802 = vmatpush1.msra.mxu0 0.0
  %1803 = vmatprep.subr.mxu0 0.0
  %1804 = vmatpush1.msra.mxu0 0.0
  %1805 = vmatprep.subr.mxu0 0.0
  %1806 = vmatpush1.msra.mxu0 0.0
  %1807 = vmatprep.subr.mxu0 0.0
  %1808 = vmatpush1.msra.mxu0 0.0
  %1809 = vmatprep.subr.mxu0 0.0
  %1810 = vmatpush1.msra.mxu0 0.0
  %1811 = vmatprep.subr.mxu0 0.0
  %1812 = vmatpush1.msra.mxu0 0.0
  %1813 = vmatprep.subr.mxu0 0.0
  %1814 = vmatpush1.msra.mxu0 0.0
  %1815 = vmatprep.subr.mxu0 0.0
  %1816 = vmatpush1.msra.mxu0 0.0
  %1817 = vmatprep.subr.mxu0 0.0
  %1818 = vmatpush1.msra.mxu0 0.0
  %1819 = vmatprep.subr.mxu0 0.0
  %1820 = vmatpush1.msra.mxu0 0.0
  %1821 = vmatprep.subr.mxu0 0.0
  %1822 = vmatpush1.msra.mxu0 0.0
  %1823 = vmatprep.subr.mxu0 0.0
  %1824 = vmatpush1.msra.mxu0 0.0
  %1825 = vmatprep.subr.mxu0 0.0
  %1826 = vmatpush1.msra.mxu0 0.0
  %1827 = vmatprep.subr.mxu0 0.0
  %1828 = vmatpush1.msra.mxu0 0.0
  %1829 = vmatprep.subr.mxu0 0.0
  %1830 = vmatpush1.msra.mxu0 0.0
  %1831 = vmatprep.subr.mxu0 0.0
  %1832 = vmatpush1.msra.mxu0 0.0
  %1833 = vmatprep.subr.mxu0 0.0
  %1834 = vmatpush1.msra.mxu0 0.0
  %1835 = vmatprep.subr.mxu0 0.0
  %1836 = vmatpush1.msra.mxu0 0.0
  %1837 = vmatprep.subr.mxu0 0.0
  %1838 = vmatpush1.msra.mxu0 0.0
  %1839 = vmatprep.subr.mxu0 0.0
  %1840 = vmatpush1.msra.mxu0 0.0
  %1841 = vmatprep.subr.mxu0 0.0
  %1842 = vmatpush1.msra.mxu0 0.0
  %1843 = vmatprep.subr.mxu0 0.0
  %1844 = vmatpush1.msra.mxu0 0.0
  %1845 = vmatprep.subr.mxu0 0.0
  %1846 = vmatpush1.msra.mxu0 0.0
  %1847 = vmatprep.mubr.f32.mxu0 0.0
  %1848 = vmatmul.mubr.f32.gmra.mrb[0].mxu0 %v1769
  %v1849 = vpop.f32.mrb[0].mxu0
  %v1850 = vadd.f32 0.0, %v1849
  %v1851 = vpop.f32.mrb[0].mxu0
  %1852 = vmatprep.mubr.f32.mxu0 0.0
  %1853 = vmatmul.mubr.f32.gmra.mrb[0].mxu0 %v1772
  %v1854 = vpop.f32.mrb[0].mxu0
  %v1855 = vadd.f32 0.0, %v1854
  %v1856 = vpop.f32.mrb[0].mxu0
  %1857 = vmatprep.mubr.f32.mxu0 0.0
  %1858 = vmatmul.mubr.f32.gmra.mrb[0].mxu0 %v1775
  %v1859 = vpop.f32.mrb[0].mxu0
  %v1860 = vadd.f32 0.0, %v1859
  %v1861 = vpop.f32.mrb[0].mxu0
  %1862 = vmatprep.mubr.f32.mxu0 0.0
  %1863 = vmatmul.mubr.f32.gmra.mrb[0].mxu0 %v1778
  %v1864 = vpop.f32.mrb[0].mxu0
  %v1865 = vadd.f32 0.0, %v1864
  %v1866 = vpop.f32.mrb[0].mxu0
  %1867 = vdwg.mxu0
  %v1868 = vmax.f32 %v1850, 0.0
  %v1869 = vmax.f32 %v1855, 0.0
  %v1870 = vmax.f32 %v1860, 0.0
  %v1871 = vmax.f32 %v1865, 0.0
  %v1872 = vld [vmem:[%s9] sm:$0xff]
  %v1873 = vld [vmem:[%s9 + $0x8] sm:$0xff]
  %v1874 = vld [vmem:[%s9 + $0x10] sm:$0xf]
  %1879 = vrot.lane.b32.xlu0 %v1868, 127
  %v1880 = vpop.permute.xlu0 %1879
  %1881 = vrot.lane.b32.xlu0 %v1869, 127
  %v1882 = vpop.permute.xlu0 %1881
  %1883 = vrot.lane.b32.xlu0 %v1870, 127
  %v1884 = vpop.permute.xlu0 %1883
  %1885 = vrot.lane.b32.xlu0 %v1871, 127
  %v1886 = vpop.permute.xlu0 %1885
  %v1891 = vmax.f32 %v1868, %v1880
  %v1892 = vmax.f32 %v1869, %v1882
  %v1893 = vmax.f32 %v1870, %v1884
  %v1894 = vmax.f32 %v1871, %v1886
  %vm1895 = vcmask 162816
  %v1897 = vsel %vm1895, %v1891, 0
  %v1900 = vsel %vm1895, %v1892, 0
  %v1903 = vsel %vm1895, %v1893, 0
  %v1906 = vsel %vm1895, %v1894, 0
  %v1909 = vsel %vm206, %v1874, 0
  %1911 = vmatprep.subr.mxu0 0.0
  %1912 = vmatpush1.msra.mxu0 %v1872
  %1913 = vmatprep.subr.mxu0 0.0
  %1914 = vmatpush1.msra.mxu0 %v1873
  %1915 = vmatprep.subr.mxu0 0.0
  %1916 = vmatpush1.msra.mxu0 %v1909
  %1917 = vmatprep.subr.mxu0 0.0
  %1918 = vmatpush1.msra.mxu0 0.0
  %1919 = vmatprep.subr.mxu0 0.0
  %1920 = vmatpush1.msra.mxu0 0.0
  %1921 = vmatprep.subr.mxu0 0.0
  %1922 = vmatpush1.msra.mxu0 0.0
  %1923 = vmatprep.subr.mxu0 0.0
  %1924 = vmatpush1.msra.mxu0 0.0
  %1925 = vmatprep.subr.mxu0 0.0
  %1926 = vmatpush1.msra.mxu0 0.0
  %1927 = vmatprep.subr.mxu0 0.0
  %1928 = vmatpush1.msra.mxu0 0.0
  %1929 = vmatprep.subr.mxu0 0.0
  %1930 = vmatpush1.msra.mxu0 0.0
  %1931 = vmatprep.subr.mxu0 0.0
  %1932 = vmatpush1.msra.mxu0 0.0
  %1933 = vmatprep.subr.mxu0 0.0
  %1934 = vmatpush1.msra.mxu0 0.0
  %1935 = vmatprep.subr.mxu0 0.0
  %1936 = vmatpush1.msra.mxu0 0.0
  %1937 = vmatprep.subr.mxu0 0.0
  %1938 = vmatpush1.msra.mxu0 0.0
  %1939 = vmatprep.subr.mxu0 0.0
  %1940 = vmatpush1.msra.mxu0 0.0
  %1941 = vmatprep.subr.mxu0 0.0
  %1942 = vmatpush1.msra.mxu0 0.0
  %1943 = vmatprep.subr.mxu0 0.0
  %1944 = vmatpush1.msra.mxu0 0.0
  %1945 = vmatprep.subr.mxu0 0.0
  %1946 = vmatpush1.msra.mxu0 0.0
  %1947 = vmatprep.subr.mxu0 0.0
  %1948 = vmatpush1.msra.mxu0 0.0
  %1949 = vmatprep.subr.mxu0 0.0
  %1950 = vmatpush1.msra.mxu0 0.0
  %1951 = vmatprep.subr.mxu0 0.0
  %1952 = vmatpush1.msra.mxu0 0.0
  %1953 = vmatprep.subr.mxu0 0.0
  %1954 = vmatpush1.msra.mxu0 0.0
  %1955 = vmatprep.subr.mxu0 0.0
  %1956 = vmatpush1.msra.mxu0 0.0
  %1957 = vmatprep.subr.mxu0 0.0
  %1958 = vmatpush1.msra.mxu0 0.0
  %1959 = vmatprep.subr.mxu0 0.0
  %1960 = vmatpush1.msra.mxu0 0.0
  %1961 = vmatprep.subr.mxu0 0.0
  %1962 = vmatpush1.msra.mxu0 0.0
  %1963 = vmatprep.subr.mxu0 0.0
  %1964 = vmatpush1.msra.mxu0 0.0
  %1965 = vmatprep.subr.mxu0 0.0
  %1966 = vmatpush1.msra.mxu0 0.0
  %1967 = vmatprep.subr.mxu0 0.0
  %1968 = vmatpush1.msra.mxu0 0.0
  %1969 = vmatprep.subr.mxu0 0.0
  %1970 = vmatpush1.msra.mxu0 0.0
  %1971 = vmatprep.subr.mxu0 0.0
  %1972 = vmatpush1.msra.mxu0 0.0
  %1973 = vmatprep.subr.mxu0 0.0
  %1974 = vmatpush1.msra.mxu0 0.0
  %1975 = vmatprep.mubr.f32.mxu0 0.0
  %1976 = vmatmul.mubr.f32.gmra.mrb[0].mxu0 %v1897
  %v1977 = vpop.f32.mrb[0].mxu0
  %v1978 = vadd.f32 0.0, %v1977
  %v1979 = vpop.f32.mrb[0].mxu0
  %1980 = vmatprep.mubr.f32.mxu0 0.0
  %1981 = vmatmul.mubr.f32.gmra.mrb[0].mxu0 %v1900
  %v1982 = vpop.f32.mrb[0].mxu0
  %v1983 = vadd.f32 0.0, %v1982
  %v1984 = vpop.f32.mrb[0].mxu0
  %1985 = vmatprep.mubr.f32.mxu0 0.0
  %1986 = vmatmul.mubr.f32.gmra.mrb[0].mxu0 %v1903
  %v1987 = vpop.f32.mrb[0].mxu0
  %v1988 = vadd.f32 0.0, %v1987
  %v1989 = vpop.f32.mrb[0].mxu0
  %1990 = vmatprep.mubr.f32.mxu0 0.0
  %1991 = vmatmul.mubr.f32.gmra.mrb[0].mxu0 %v1906
  %v1992 = vpop.f32.mrb[0].mxu0
  %v1993 = vadd.f32 0.0, %v1992
  %v1994 = vpop.f32.mrb[0].mxu0
  %1995 = vdwg.mxu0
  %v1996 = vld [vmem:[%s10] sm:$0xff]
  %v1997 = vld [vmem:[%s10 + $0x8] sm:$0xff]
  %v1998 = vld [vmem:[%s10 + $0x10] sm:$0xff]
  %v1999 = vld [vmem:[%s10 + $0x18] sm:$0xff]
  %v2000 = vld [vmem:[%s11] sm:$0xff]
  %v2001 = vld [vmem:[%s11 + $0x8] sm:$0xff]
  %v2002 = vld [vmem:[%s11 + $0x10] sm:$0xff]
  %v2003 = vld [vmem:[%s11 + $0x18] sm:$0xff]
  %2005 = vset.pattern.permute.xlu0 0
  %2006 = vperm.xlu0 %2005, %v2000
  %v2007 = vpop.permute.xlu0 %2006
  %2010 = vset.pattern.permute.xlu0 0
  %2011 = vperm.xlu0 %2010, %v2001
  %v2012 = vpop.permute.xlu0 %2011
  %2015 = vset.pattern.permute.xlu0 0
  %2016 = vperm.xlu0 %2015, %v2002
  %v2017 = vpop.permute.xlu0 %2016
  %2020 = vset.pattern.permute.xlu0 0
  %2021 = vperm.xlu0 %2020, %v2003
  %v2022 = vpop.permute.xlu0 %2021
  %v2025 = vsel %vm899, %v1996, 0
  %v2028 = vsel %vm899, %v1997, 0
  %v2031 = vsel %vm899, %v1998, 0
  %v2034 = vsel %vm899, %v1999, 0
  %2036 = vmatprep.subr.mxu0 0.0
  %2037 = vmatpush1.msra.mxu0 %v1978
  %2038 = vmatprep.subr.mxu0 0.0
  %2039 = vmatpush1.msra.mxu0 %v1983
  %2040 = vmatprep.subr.mxu0 0.0
  %2041 = vmatpush1.msra.mxu0 %v1988
  %2042 = vmatprep.subr.mxu0 0.0
  %2043 = vmatpush1.msra.mxu0 %v1993
  %2044 = vmatprep.subr.mxu0 0.0
  %2045 = vmatpush1.msra.mxu0 0.0
  %2046 = vmatprep.subr.mxu0 0.0
  %2047 = vmatpush1.msra.mxu0 0.0
  %2048 = vmatprep.subr.mxu0 0.0
  %2049 = vmatpush1.msra.mxu0 0.0
  %2050 = vmatprep.subr.mxu0 0.0
  %2051 = vmatpush1.msra.mxu0 0.0
  %2052 = vmatprep.subr.mxu0 0.0
  %2053 = vmatpush1.msra.mxu0 0.0
  %2054 = vmatprep.subr.mxu0 0.0
  %2055 = vmatpush1.msra.mxu0 0.0
  %2056 = vmatprep.subr.mxu0 0.0
  %2057 = vmatpush1.msra.mxu0 0.0
  %2058 = vmatprep.subr.mxu0 0.0
  %2059 = vmatpush1.msra.mxu0 0.0
  %2060 = vmatprep.subr.mxu0 0.0
  %2061 = vmatpush1.msra.mxu0 0.0
  %2062 = vmatprep.subr.mxu0 0.0
  %2063 = vmatpush1.msra.mxu0 0.0
  %2064 = vmatprep.subr.mxu0 0.0
  %2065 = vmatpush1.msra.mxu0 0.0
  %2066 = vmatprep.subr.mxu0 0.0
  %2067 = vmatpush1.msra.mxu0 0.0
  %2068 = vmatprep.subr.mxu0 0.0
  %2069 = vmatpush1.msra.mxu0 0.0
  %2070 = vmatprep.subr.mxu0 0.0
  %2071 = vmatpush1.msra.mxu0 0.0
  %2072 = vmatprep.subr.mxu0 0.0
  %2073 = vmatpush1.msra.mxu0 0.0
  %2074 = vmatprep.subr.mxu0 0.0
  %2075 = vmatpush1.msra.mxu0 0.0
  %2076 = vmatprep.subr.mxu0 0.0
  %2077 = vmatpush1.msra.mxu0 0.0
  %2078 = vmatprep.subr.mxu0 0.0
  %2079 = vmatpush1.msra.mxu0 0.0
  %2080 = vmatprep.subr.mxu0 0.0
  %2081 = vmatpush1.msra.mxu0 0.0
  %2082 = vmatprep.subr.mxu0 0.0
  %2083 = vmatpush1.msra.mxu0 0.0
  %2084 = vmatprep.subr.mxu0 0.0
  %2085 = vmatpush1.msra.mxu0 0.0
  %2086 = vmatprep.subr.mxu0 0.0
  %2087 = vmatpush1.msra.mxu0 0.0
  %2088 = vmatprep.subr.mxu0 0.0
  %2089 = vmatpush1.msra.mxu0 0.0
  %2090 = vmatprep.subr.mxu0 0.0
  %2091 = vmatpush1.msra.mxu0 0.0
  %2092 = vmatprep.subr.mxu0 0.0
  %2093 = vmatpush1.msra.mxu0 0.0
  %2094 = vmatprep.subr.mxu0 0.0
  %2095 = vmatpush1.msra.mxu0 0.0
  %2096 = vmatprep.subr.mxu0 0.0
  %2097 = vmatpush1.msra.mxu0 0.0
  %2098 = vmatprep.subr.mxu0 0.0
  %2099 = vmatpush1.msra.mxu0 0.0
  %2100 = vmatprep.mubr.f32.mxu0 0.0
  %2101 = vmatmul.mubr.f32.gmra.mrb[0].mxu0 %v2025
  %v2102 = vpop.f32.mrb[0].mxu0
  %v2103 = vadd.f32 %v2007, %v2102
  %v2104 = vpop.f32.mrb[0].mxu0
  %2105 = vmatprep.mubr.f32.mxu0 0.0
  %2106 = vmatmul.mubr.f32.gmra.mrb[0].mxu0 %v2028
  %v2107 = vpop.f32.mrb[0].mxu0
  %v2108 = vadd.f32 %v2012, %v2107
  %v2109 = vpop.f32.mrb[0].mxu0
  %2110 = vmatprep.mubr.f32.mxu0 0.0
  %2111 = vmatmul.mubr.f32.gmra.mrb[0].mxu0 %v2031
  %v2112 = vpop.f32.mrb[0].mxu0
  %v2113 = vadd.f32 %v2017, %v2112
  %v2114 = vpop.f32.mrb[0].mxu0
  %2115 = vmatprep.mubr.f32.mxu0 0.0
  %2116 = vmatmul.mubr.f32.gmra.mrb[0].mxu0 %v2034
  %v2117 = vpop.f32.mrb[0].mxu0
  %v2118 = vadd.f32 %v2022, %v2117
  %v2119 = vpop.f32.mrb[0].mxu0
  %2120 = vdwg.mxu0
  %v2121 = vmax.f32 %v2103, 0.0
  %v2122 = vmax.f32 %v2108, 0.0
  %v2123 = vmax.f32 %v2113, 0.0
  %v2124 = vmax.f32 %v2118, 0.0
  %v2125 = vld [vmem:[%s12] sm:$0xff]
  %v2126 = vld [vmem:[%s12 + $0x8] sm:$0x1]
  %2131 = vrot.lane.b32.xlu0 %v2121, 127
  %v2132 = vpop.permute.xlu0 %2131
  %2133 = vrot.lane.b32.xlu0 %v2122, 127
  %v2134 = vpop.permute.xlu0 %2133
  %2135 = vrot.lane.b32.xlu0 %v2123, 127
  %v2136 = vpop.permute.xlu0 %2135
  %2137 = vrot.lane.b32.xlu0 %v2124, 127
  %v2138 = vpop.permute.xlu0 %2137
  %v2143 = vmax.f32 %v2121, %v2132
  %v2144 = vmax.f32 %v2122, %v2134
  %v2145 = vmax.f32 %v2123, %v2136
  %v2146 = vmax.f32 %v2124, %v2138
  %v2147 = vld [vmem:[%s13] sm:$0xff]
  %v2148 = vld [vmem:[%s13 + $0x8] sm:$0xff]
  %v2149 = vld [vmem:[%s13 + $0x10] sm:$0xff]
  %v2150 = vld [vmem:[%s13 + $0x18] sm:$0xff]
  %vm2151 = vcmask 72704
  %v2153 = vsel %vm2151, %v2143, 0
  %v2156 = vsel %vm2151, %v2144, 0
  %v2159 = vsel %vm2151, %v2145, 0
  %v2162 = vsel %vm2151, %v2146, 0
  %v2165 = vsel %vm628, %v2126, 0
  %2167 = vmatprep.subr.mxu0 0.0
  %2168 = vmatpush1.msra.mxu0 %v2125
  %2169 = vmatprep.subr.mxu0 0.0
  %2170 = vmatpush1.msra.mxu0 %v2165
  %2171 = vmatprep.subr.mxu0 0.0
  %2172 = vmatpush1.msra.mxu0 0.0
  %2173 = vmatprep.subr.mxu0 0.0
  %2174 = vmatpush1.msra.mxu0 0.0
  %2175 = vmatprep.subr.mxu0 0.0
  %2176 = vmatpush1.msra.mxu0 0.0
  %2177 = vmatprep.subr.mxu0 0.0
  %2178 = vmatpush1.msra.mxu0 0.0
  %2179 = vmatprep.subr.mxu0 0.0
  %2180 = vmatpush1.msra.mxu0 0.0
  %2181 = vmatprep.subr.mxu0 0.0
  %2182 = vmatpush1.msra.mxu0 0.0
  %2183 = vmatprep.subr.mxu0 0.0
  %2184 = vmatpush1.msra.mxu0 0.0
  %2185 = vmatprep.subr.mxu0 0.0
  %2186 = vmatpush1.msra.mxu0 0.0
  %2187 = vmatprep.subr.mxu0 0.0
  %2188 = vmatpush1.msra.mxu0 0.0
  %2189 = vmatprep.subr.mxu0 0.0
  %2190 = vmatpush1.msra.mxu0 0.0
  %2191 = vmatprep.subr.mxu0 0.0
  %2192 = vmatpush1.msra.mxu0 0.0
  %2193 = vmatprep.subr.mxu0 0.0
  %2194 = vmatpush1.msra.mxu0 0.0
  %2195 = vmatprep.subr.mxu0 0.0
  %2196 = vmatpush1.msra.mxu0 0.0
  %2197 = vmatprep.subr.mxu0 0.0
  %2198 = vmatpush1.msra.mxu0 0.0
  %2199 = vmatprep.subr.mxu0 0.0
  %2200 = vmatpush1.msra.mxu0 0.0
  %2201 = vmatprep.subr.mxu0 0.0
  %2202 = vmatpush1.msra.mxu0 0.0
  %2203 = vmatprep.subr.mxu0 0.0
  %2204 = vmatpush1.msra.mxu0 0.0
  %2205 = vmatprep.subr.mxu0 0.0
  %2206 = vmatpush1.msra.mxu0 0.0
  %2207 = vmatprep.subr.mxu0 0.0
  %2208 = vmatpush1.msra.mxu0 0.0
  %2209 = vmatprep.subr.mxu0 0.0
  %2210 = vmatpush1.msra.mxu0 0.0
  %2211 = vmatprep.subr.mxu0 0.0
  %2212 = vmatpush1.msra.mxu0 0.0
  %2213 = vmatprep.subr.mxu0 0.0
  %2214 = vmatpush1.msra.mxu0 0.0
  %2215 = vmatprep.subr.mxu0 0.0
  %2216 = vmatpush1.msra.mxu0 0.0
  %2217 = vmatprep.subr.mxu0 0.0
  %2218 = vmatpush1.msra.mxu0 0.0
  %2219 = vmatprep.subr.mxu0 0.0
  %2220 = vmatpush1.msra.mxu0 0.0
  %2221 = vmatprep.subr.mxu0 0.0
  %2222 = vmatpush1.msra.mxu0 0.0
  %2223 = vmatprep.subr.mxu0 0.0
  %2224 = vmatpush1.msra.mxu0 0.0
  %2225 = vmatprep.subr.mxu0 0.0
  %2226 = vmatpush1.msra.mxu0 0.0
  %2227 = vmatprep.subr.mxu0 0.0
  %2228 = vmatpush1.msra.mxu0 0.0
  %2229 = vmatprep.subr.mxu0 0.0
  %2230 = vmatpush1.msra.mxu0 0.0
  %2231 = vmatprep.mubr.f32.mxu0 0.0
  %2232 = vmatmul.mubr.f32.gmra.mrb[0].mxu0 %v2153
  %v2233 = vpop.f32.mrb[0].mxu0
  %v2234 = vadd.f32 %v2147, %v2233
  %v2235 = vpop.f32.mrb[0].mxu0
  %2236 = vmatprep.mubr.f32.mxu0 0.0
  %2237 = vmatmul.mubr.f32.gmra.mrb[0].mxu0 %v2156
  %v2238 = vpop.f32.mrb[0].mxu0
  %v2239 = vadd.f32 %v2148, %v2238
  %v2240 = vpop.f32.mrb[0].mxu0
  %2241 = vmatprep.mubr.f32.mxu0 0.0
  %2242 = vmatmul.mubr.f32.gmra.mrb[0].mxu0 %v2159
  %v2243 = vpop.f32.mrb[0].mxu0
  %v2244 = vadd.f32 %v2149, %v2243
  %v2245 = vpop.f32.mrb[0].mxu0
  %2246 = vmatprep.mubr.f32.mxu0 0.0
  %2247 = vmatmul.mubr.f32.gmra.mrb[0].mxu0 %v2162
  %v2248 = vpop.f32.mrb[0].mxu0
  %v2249 = vadd.f32 %v2150, %v2248
  %v2250 = vpop.f32.mrb[0].mxu0
  %2251 = vdwg.mxu0
  %v2252 = vld [vmem:[%s14] sm:$0xff]
  %v2253 = vld [vmem:[%s14 + $0x8] sm:$0xff]
  %v2254 = vld [vmem:[%s14 + $0x10] sm:$0xff]
  %v2255 = vld [vmem:[%s14 + $0x18] sm:$0xff]
  %2257 = vset.pattern.permute.xlu0 0
  %2258 = vperm.xlu0 %2257, %v2234
  %v2259 = vpop.permute.xlu0 %2258
  %2262 = vset.pattern.permute.xlu0 0
  %2263 = vperm.xlu0 %2262, %v2239
  %v2264 = vpop.permute.xlu0 %2263
  %2267 = vset.pattern.permute.xlu0 0
  %2268 = vperm.xlu0 %2267, %v2244
  %v2269 = vpop.permute.xlu0 %2268
  %2272 = vset.pattern.permute.xlu0 0
  %2273 = vperm.xlu0 %2272, %v2249
  %v2274 = vpop.permute.xlu0 %2273
  %v2276 = vmul.f32 %v2259, %v2252
  %v2277 = vmul.f32 %v2264, %v2253
  %v2278 = vmul.f32 %v2269, %v2254
  %v2279 = vmul.f32 %v2274, %v2255
  %s2280 = scalar_lea.vmem %s14, 32
  %v2281 = vld [vmem:[%s2280] sm:$0xff]
  %v2282 = vld [vmem:[%s2280 + $0x8] sm:$0xff]
  %v2283 = vld [vmem:[%s2280 + $0x10] sm:$0xff]
  %v2284 = vld [vmem:[%s2280 + $0x18] sm:$0xff]
  %2285 = vset.pattern.permute.xlu0 1
  %2286 = vperm.xlu0 %2285, %v2234
  %v2287 = vpop.permute.xlu0 %2286
  %2289 = vset.pattern.permute.xlu0 1
  %2290 = vperm.xlu0 %2289, %v2239
  %v2291 = vpop.permute.xlu0 %2290
  %2293 = vset.pattern.permute.xlu0 1
  %2294 = vperm.xlu0 %2293, %v2244
  %v2295 = vpop.permute.xlu0 %2294
  %2297 = vset.pattern.permute.xlu0 1
  %2298 = vperm.xlu0 %2297, %v2249
  %v2299 = vpop.permute.xlu0 %2298
  %v2301 = vmul.f32 %v2287, %v2281
  %v2302 = vmul.f32 %v2291, %v2282
  %v2303 = vmul.f32 %v2295, %v2283
  %v2304 = vmul.f32 %v2299, %v2284
  %v2305 = vadd.f32 %v2276, %v2301
  %v2306 = vadd.f32 %v2277, %v2302
  %v2307 = vadd.f32 %v2278, %v2303
  %v2308 = vadd.f32 %v2279, %v2304
  %s2309 = scalar_lea.vmem %s14, 64
  %v2310 = vld [vmem:[%s2309] sm:$0xff]
  %v2311 = vld [vmem:[%s2309 + $0x8] sm:$0xff]
  %v2312 = vld [vmem:[%s2309 + $0x10] sm:$0xff]
  %v2313 = vld [vmem:[%s2309 + $0x18] sm:$0xff]
  %2314 = vset.pattern.permute.xlu0 2
  %2315 = vperm.xlu0 %2314, %v2234
  %v2316 = vpop.permute.xlu0 %2315
  %2318 = vset.pattern.permute.xlu0 2
  %2319 = vperm.xlu0 %2318, %v2239
  %v2320 = vpop.permute.xlu0 %2319
  %2322 = vset.pattern.permute.xlu0 2
  %2323 = vperm.xlu0 %2322, %v2244
  %v2324 = vpop.permute.xlu0 %2323
  %2326 = vset.pattern.permute.xlu0 2
  %2327 = vperm.xlu0 %2326, %v2249
  %v2328 = vpop.permute.xlu0 %2327
  %v2330 = vmul.f32 %v2316, %v2310
  %v2331 = vmul.f32 %v2320, %v2311
  %v2332 = vmul.f32 %v2324, %v2312
  %v2333 = vmul.f32 %v2328, %v2313
  %v2334 = vadd.f32 %v2305, %v2330
  %v2335 = vadd.f32 %v2306, %v2331
  %v2336 = vadd.f32 %v2307, %v2332
  %v2337 = vadd.f32 %v2308, %v2333
  %s2338 = scalar_lea.vmem %s14, 96
  %v2339 = vld [vmem:[%s2338] sm:$0xff]
  %v2340 = vld [vmem:[%s2338 + $0x8] sm:$0xff]
  %v2341 = vld [vmem:[%s2338 + $0x10] sm:$0xff]
  %v2342 = vld [vmem:[%s2338 + $0x18] sm:$0xff]
  %2343 = vset.pattern.permute.xlu0 3
  %2344 = vperm.xlu0 %2343, %v2234
  %v2345 = vpop.permute.xlu0 %2344
  %2347 = vset.pattern.permute.xlu0 3
  %2348 = vperm.xlu0 %2347, %v2239
  %v2349 = vpop.permute.xlu0 %2348
  %2351 = vset.pattern.permute.xlu0 3
  %2352 = vperm.xlu0 %2351, %v2244
  %v2353 = vpop.permute.xlu0 %2352
  %2355 = vset.pattern.permute.xlu0 3
  %2356 = vperm.xlu0 %2355, %v2249
  %v2357 = vpop.permute.xlu0 %2356
  %v2359 = vmul.f32 %v2345, %v2339
  %v2360 = vmul.f32 %v2349, %v2340
  %v2361 = vmul.f32 %v2353, %v2341
  %v2362 = vmul.f32 %v2357, %v2342
  %v2363 = vadd.f32 %v2334, %v2359
  %v2364 = vadd.f32 %v2335, %v2360
  %v2365 = vadd.f32 %v2336, %v2361
  %v2366 = vadd.f32 %v2337, %v2362
  %s2367 = scalar_lea.vmem %s14, 128
  %v2368 = vld [vmem:[%s2367] sm:$0xff]
  %v2369 = vld [vmem:[%s2367 + $0x8] sm:$0xff]
  %v2370 = vld [vmem:[%s2367 + $0x10] sm:$0xff]
  %v2371 = vld [vmem:[%s2367 + $0x18] sm:$0xff]
  %2372 = vset.pattern.permute.xlu0 4
  %2373 = vperm.xlu0 %2372, %v2234
  %v2374 = vpop.permute.xlu0 %2373
  %2376 = vset.pattern.permute.xlu0 4
  %2377 = vperm.xlu0 %2376, %v2239
  %v2378 = vpop.permute.xlu0 %2377
  %2380 = vset.pattern.permute.xlu0 4
  %2381 = vperm.xlu0 %2380, %v2244
  %v2382 = vpop.permute.xlu0 %2381
  %2384 = vset.pattern.permute.xlu0 4
  %2385 = vperm.xlu0 %2384, %v2249
  %v2386 = vpop.permute.xlu0 %2385
  %v2388 = vmul.f32 %v2374, %v2368
  %v2389 = vmul.f32 %v2378, %v2369
  %v2390 = vmul.f32 %v2382, %v2370
  %v2391 = vmul.f32 %v2386, %v2371
  %v2392 = vadd.f32 %v2363, %v2388
  %v2393 = vadd.f32 %v2364, %v2389
  %v2394 = vadd.f32 %v2365, %v2390
  %v2395 = vadd.f32 %v2366, %v2391
  %vm2396 = vcmask 130048
  %v2397 = vsel %vm2396, %v2392, 0.0
  %v2398 = vsel %vm2396, %v2393, 0.0
  %v2399 = vadd.f32 %v2397, %v2398
  %v2400 = vsel %vm2396, %v2394, 0.0
  %v2401 = vadd.f32 %v2399, %v2400
  %v2402 = vsel %vm2396, %v2395, 0.0
  %v2403 = vadd.f32 %v2401, %v2402
  %v2404 = vrot.slane %v2403, 4
  %v2405 = vadd.f32 %v2403, %v2404
  %v2406 = vrot.slane %v2405, 2
  %v2407 = vadd.f32 %v2405, %v2406
  %v2408 = vrot.slane %v2407, 1
  %v2409 = vadd.f32 %v2407, %v2408
  %v2410 = vld [vmem:[%s15] sm:$0xff]
  %v2411 = vld [vmem:[%s15 + $0x8] sm:$0xff]
  %v2412 = vld [vmem:[%s15 + $0x10] sm:$0xff]
  %v2413 = vld [vmem:[%s15 + $0x18] sm:$0xff]
  %v2414 = vld [vmem:[%s15 + $0x20] sm:$0xff]
  %v2415 = vld [vmem:[%s15 + $0x28] sm:$0xff]
  %v2416 = vld [vmem:[%s15 + $0x30] sm:$0xff]
  %v2417 = vld [vmem:[%s15 + $0x38] sm:$0xff]
  %v2418 = vld [vmem:[%s15 + $0x40] sm:$0xff]
  %v2419 = vld [vmem:[%s15 + $0x48] sm:$0xff]
  %v2420 = vld [vmem:[%s15 + $0x50] sm:$0xff]
  %v2421 = vld [vmem:[%s15 + $0x58] sm:$0xff]
  %v2422 = vld [vmem:[%s15 + $0x60] sm:$0xff]
  %v2423 = vld [vmem:[%s15 + $0x68] sm:$0xff]
  %v2424 = vld [vmem:[%s15 + $0x70] sm:$0xff]
  %v2425 = vld [vmem:[%s15 + $0x78] sm:$0xff]
  %v2426 = vld [vmem:[%s15 + $0x80] sm:$0xff]
  %v2427 = vld [vmem:[%s15 + $0x88] sm:$0xff]
  %v2428 = vld [vmem:[%s15 + $0x90] sm:$0xff]
  %v2429 = vld [vmem:[%s15 + $0x98] sm:$0xff]
  %v2430 = vld [vmem:[%s15 + $0xa0] sm:$0xff]
  %v2431 = vld [vmem:[%s15 + $0xa8] sm:$0xff]
  %v2432 = vld [vmem:[%s15 + $0xb0] sm:$0xff]
  %v2433 = vld [vmem:[%s15 + $0xb8] sm:$0xff]
  %v2434 = vld [vmem:[%s15 + $0xc0] sm:$0xff]
  %v2435 = vld [vmem:[%s15 + $0xc8] sm:$0xff]
  %v2436 = vld [vmem:[%s15 + $0xd0] sm:$0xff]
  %v2437 = vld [vmem:[%s15 + $0xd8] sm:$0xff]
  %v2438 = vld [vmem:[%s15 + $0xe0] sm:$0xff]
  %v2439 = vld [vmem:[%s15 + $0xe8] sm:$0xff]
  %v2440 = vld [vmem:[%s15 + $0xf0] sm:$0xff]
  %v2441 = vld [vmem:[%s15 + $0xf8] sm:$0xff]
  %v2442 = vld [vmem:[%s15 + $0x100] sm:$0xff]
  %v2443 = vld [vmem:[%s15 + $0x108] sm:$0xff]
  %v2444 = vld [vmem:[%s15 + $0x110] sm:$0xff]
  %v2445 = vld [vmem:[%s15 + $0x118] sm:$0xff]
  %v2446 = vld [vmem:[%s16] sm:$0xff]
  %v2447 = vld [vmem:[%s16 + $0x8] sm:$0xff]
  %v2448 = vld [vmem:[%s16 + $0x10] sm:$0x3]
  %v2452 = vlaneseq
  %v2453 = vshrl.u32 %v2452, 7
  %v2454 = vsub.s32 0, %v2453
  %v2455 = vrot.slane %v2446, %v2454
  %v2456 = vlaneseq
  %v2457 = vshrl.u32 %v2456, 7
  %v2458 = vsub.s32 1, %v2457
  %v2459 = vrot.slane %v2446, %v2458
  %v2460 = vlaneseq
  %v2461 = vshrl.u32 %v2460, 7
  %v2462 = vsub.s32 2, %v2461
  %v2463 = vrot.slane %v2446, %v2462
  %v2464 = vlaneseq
  %v2465 = vshrl.u32 %v2464, 7
  %v2466 = vsub.s32 3, %v2465
  %v2467 = vrot.slane %v2446, %v2466
  %v2468 = vlaneseq
  %v2469 = vshrl.u32 %v2468, 7
  %v2470 = vsub.s32 4, %v2469
  %v2471 = vrot.slane %v2446, %v2470
  %v2472 = vlaneseq
  %v2473 = vshrl.u32 %v2472, 7
  %v2474 = vsub.s32 5, %v2473
  %v2475 = vrot.slane %v2446, %v2474
  %v2476 = vlaneseq
  %v2477 = vshrl.u32 %v2476, 7
  %v2478 = vsub.s32 6, %v2477
  %v2479 = vrot.slane %v2446, %v2478
  %v2480 = vlaneseq
  %v2481 = vshrl.u32 %v2480, 7
  %v2482 = vsub.s32 7, %v2481
  %v2483 = vrot.slane %v2446, %v2482
  %v2484 = vlaneseq
  %v2485 = vshrl.u32 %v2484, 7
  %v2486 = vsub.s32 0, %v2485
  %v2487 = vrot.slane %v2447, %v2486
  %v2488 = vlaneseq
  %v2489 = vshrl.u32 %v2488, 7
  %v2490 = vsub.s32 1, %v2489
  %v2491 = vrot.slane %v2447, %v2490
  %v2492 = vlaneseq
  %v2493 = vshrl.u32 %v2492, 7
  %v2494 = vsub.s32 2, %v2493
  %v2495 = vrot.slane %v2447, %v2494
  %v2496 = vlaneseq
  %v2497 = vshrl.u32 %v2496, 7
  %v2498 = vsub.s32 3, %v2497
  %v2499 = vrot.slane %v2447, %v2498
  %v2500 = vlaneseq
  %v2501 = vshrl.u32 %v2500, 7
  %v2502 = vsub.s32 4, %v2501
  %v2503 = vrot.slane %v2447, %v2502
  %v2504 = vlaneseq
  %v2505 = vshrl.u32 %v2504, 7
  %v2506 = vsub.s32 5, %v2505
  %v2507 = vrot.slane %v2447, %v2506
  %v2508 = vlaneseq
  %v2509 = vshrl.u32 %v2508, 7
  %v2510 = vsub.s32 6, %v2509
  %v2511 = vrot.slane %v2447, %v2510
  %v2512 = vlaneseq
  %v2513 = vshrl.u32 %v2512, 7
  %v2514 = vsub.s32 7, %v2513
  %v2515 = vrot.slane %v2447, %v2514
  %v2516 = vlaneseq
  %v2517 = vshrl.u32 %v2516, 7
  %v2518 = vsub.s32 0, %v2517
  %v2519 = vrot.slane %v2448, %v2518
  %v2520 = vlaneseq
  %v2521 = vshrl.u32 %v2520, 7
  %v2522 = vsub.s32 1, %v2521
  %v2523 = vrot.slane %v2448, %v2522
  %v2543 = vsel %vm2396, %v2409, 0
  %2545 = vmatprep.subr.mxu0 %v2411
  %2546 = vmatpush1.msra.mxu0 %v2410
  %2547 = vmatprep.subr.mxu0 %v2429
  %2548 = vmatpush1.msra.mxu0 %v2428
  %2549 = vmatprep.subr.mxu0 0.0
  %2550 = vmatpush1.msra.mxu0 0.0
  %2551 = vmatprep.subr.mxu0 0.0
  %2552 = vmatpush1.msra.mxu0 0.0
  %2553 = vmatprep.subr.mxu0 0.0
  %2554 = vmatpush1.msra.mxu0 0.0
  %2555 = vmatprep.subr.mxu0 0.0
  %2556 = vmatpush1.msra.mxu0 0.0
  %2557 = vmatprep.subr.mxu0 0.0
  %2558 = vmatpush1.msra.mxu0 0.0
  %2559 = vmatprep.subr.mxu0 0.0
  %2560 = vmatpush1.msra.mxu0 0.0
  %2561 = vmatprep.subr.mxu0 0.0
  %2562 = vmatpush1.msra.mxu0 0.0
  %2563 = vmatprep.subr.mxu0 0.0
  %2564 = vmatpush1.msra.mxu0 0.0
  %2565 = vmatprep.subr.mxu0 0.0
  %2566 = vmatpush1.msra.mxu0 0.0
  %2567 = vmatprep.subr.mxu0 0.0
  %2568 = vmatpush1.msra.mxu0 0.0
  %2569 = vmatprep.subr.mxu0 0.0
  %2570 = vmatpush1.msra.mxu0 0.0
  %2571 = vmatprep.subr.mxu0 0.0
  %2572 = vmatpush1.msra.mxu0 0.0
  %2573 = vmatprep.subr.mxu0 0.0
  %2574 = vmatpush1.msra.mxu0 0.0
  %2575 = vmatprep.subr.mxu0 0.0
  %2576 = vmatpush1.msra.mxu0 0.0
  %2577 = vmatprep.subr.mxu0 0.0
  %2578 = vmatpush1.msra.mxu0 0.0
  %2579 = vmatprep.subr.mxu0 0.0
  %2580 = vmatpush1.msra.mxu0 0.0
  %2581 = vmatprep.subr.mxu0 0.0
  %2582 = vmatpush1.msra.mxu0 0.0
  %2583 = vmatprep.subr.mxu0 0.0
  %2584 = vmatpush1.msra.mxu0 0.0
  %2585 = vmatprep.subr.mxu0 0.0
  %2586 = vmatpush1.msra.mxu0 0.0
  %2587 = vmatprep.subr.mxu0 0.0
  %2588 = vmatpush1.msra.mxu0 0.0
  %2589 = vmatprep.subr.mxu0 0.0
  %2590 = vmatpush1.msra.mxu0 0.0
  %2591 = vmatprep.subr.mxu0 0.0
  %2592 = vmatpush1.msra.mxu0 0.0
  %2593 = vmatprep.subr.mxu0 0.0
  %2594 = vmatpush1.msra.mxu0 0.0
  %2595 = vmatprep.subr.mxu0 0.0
  %2596 = vmatpush1.msra.mxu0 0.0
  %2597 = vmatprep.subr.mxu0 0.0
  %2598 = vmatpush1.msra.mxu0 0.0
  %2599 = vmatprep.subr.mxu0 0.0
  %2600 = vmatpush1.msra.mxu0 0.0
  %2601 = vmatprep.subr.mxu0 0.0
  %2602 = vmatpush1.msra.mxu0 0.0
  %2603 = vmatprep.subr.mxu0 0.0
  %2604 = vmatpush1.msra.mxu0 0.0
  %2605 = vmatprep.subr.mxu0 0.0
  %2606 = vmatpush1.msra.mxu0 0.0
  %2607 = vmatprep.subr.mxu0 0.0
  %2608 = vmatpush1.msra.mxu0 0.0
  %2609 = vmatprep.mubr.f32.mxu0 0.0
  %2610 = vmatmul.mubr.f32.gmra.mrb[0].mxu0 %v2543
  %v2611 = vpop.f32.mrb[0].mxu0
  %v2612 = vadd.f32 %v2455, %v2611
  %v2613 = vpop.f32.mrb[0].mxu0
  %v2614 = vadd.f32 %v2459, %v2613
  %2615 = vdwg.mxu0
  %2616 = vmatprep.subr.mxu0 %v2413
  %2617 = vmatpush1.msra.mxu0 %v2412
  %2618 = vmatprep.subr.mxu0 %v2431
  %2619 = vmatpush1.msra.mxu0 %v2430
  %2620 = vmatprep.subr.mxu0 0.0
  %2621 = vmatpush1.msra.mxu0 0.0
  %2622 = vmatprep.subr.mxu0 0.0
  %2623 = vmatpush1.msra.mxu0 0.0
  %2624 = vmatprep.subr.mxu0 0.0
  %2625 = vmatpush1.msra.mxu0 0.0
  %2626 = vmatprep.subr.mxu0 0.0
  %2627 = vmatpush1.msra.mxu0 0.0
  %2628 = vmatprep.subr.mxu0 0.0
  %2629 = vmatpush1.msra.mxu0 0.0
  %2630 = vmatprep.subr.mxu0 0.0
  %2631 = vmatpush1.msra.mxu0 0.0
  %2632 = vmatprep.subr.mxu0 0.0
  %2633 = vmatpush1.msra.mxu0 0.0
  %2634 = vmatprep.subr.mxu0 0.0
  %2635 = vmatpush1.msra.mxu0 0.0
  %2636 = vmatprep.subr.mxu0 0.0
  %2637 = vmatpush1.msra.mxu0 0.0
  %2638 = vmatprep.subr.mxu0 0.0
  %2639 = vmatpush1.msra.mxu0 0.0
  %2640 = vmatprep.subr.mxu0 0.0
  %2641 = vmatpush1.msra.mxu0 0.0
  %2642 = vmatprep.subr.mxu0 0.0
  %2643 = vmatpush1.msra.mxu0 0.0
  %2644 = vmatprep.subr.mxu0 0.0
  %2645 = vmatpush1.msra.mxu0 0.0
  %2646 = vmatprep.subr.mxu0 0.0
  %2647 = vmatpush1.msra.mxu0 0.0
  %2648 = vmatprep.subr.mxu0 0.0
  %2649 = vmatpush1.msra.mxu0 0.0
  %2650 = vmatprep.subr.mxu0 0.0
  %2651 = vmatpush1.msra.mxu0 0.0
  %2652 = vmatprep.subr.mxu0 0.0
  %2653 = vmatpush1.msra.mxu0 0.0
  %2654 = vmatprep.subr.mxu0 0.0
  %2655 = vmatpush1.msra.mxu0 0.0
  %2656 = vmatprep.subr.mxu0 0.0
  %2657 = vmatpush1.msra.mxu0 0.0
  %2658 = vmatprep.subr.mxu0 0.0
  %2659 = vmatpush1.msra.mxu0 0.0
  %2660 = vmatprep.subr.mxu0 0.0
  %2661 = vmatpush1.msra.mxu0 0.0
  %2662 = vmatprep.subr.mxu0 0.0
  %2663 = vmatpush1.msra.mxu0 0.0
  %2664 = vmatprep.subr.mxu0 0.0
  %2665 = vmatpush1.msra.mxu0 0.0
  %2666 = vmatprep.subr.mxu0 0.0
  %2667 = vmatpush1.msra.mxu0 0.0
  %2668 = vmatprep.subr.mxu0 0.0
  %2669 = vmatpush1.msra.mxu0 0.0
  %2670 = vmatprep.subr.mxu0 0.0
  %2671 = vmatpush1.msra.mxu0 0.0
  %2672 = vmatprep.subr.mxu0 0.0
  %2673 = vmatpush1.msra.mxu0 0.0
  %2674 = vmatprep.subr.mxu0 0.0
  %2675 = vmatpush1.msra.mxu0 0.0
  %2676 = vmatprep.subr.mxu0 0.0
  %2677 = vmatpush1.msra.mxu0 0.0
  %2678 = vmatprep.subr.mxu0 0.0
  %2679 = vmatpush1.msra.mxu0 0.0
  %2680 = vmatprep.mubr.f32.mxu0 0.0
  %2681 = vmatmul.mubr.f32.gmra.mrb[0].mxu0 %v2543
  %v2682 = vpop.f32.mrb[0].mxu0
  %v2683 = vadd.f32 %v2463, %v2682
  %v2684 = vpop.f32.mrb[0].mxu0
  %v2685 = vadd.f32 %v2467, %v2684
  %2686 = vdwg.mxu0
  %2687 = vmatprep.subr.mxu0 %v2415
  %2688 = vmatpush1.msra.mxu0 %v2414
  %2689 = vmatprep.subr.mxu0 %v2433
  %2690 = vmatpush1.msra.mxu0 %v2432
  %2691 = vmatprep.subr.mxu0 0.0
  %2692 = vmatpush1.msra.mxu0 0.0
  %2693 = vmatprep.subr.mxu0 0.0
  %2694 = vmatpush1.msra.mxu0 0.0
  %2695 = vmatprep.subr.mxu0 0.0
  %2696 = vmatpush1.msra.mxu0 0.0
  %2697 = vmatprep.subr.mxu0 0.0
  %2698 = vmatpush1.msra.mxu0 0.0
  %2699 = vmatprep.subr.mxu0 0.0
  %2700 = vmatpush1.msra.mxu0 0.0
  %2701 = vmatprep.subr.mxu0 0.0
  %2702 = vmatpush1.msra.mxu0 0.0
  %2703 = vmatprep.subr.mxu0 0.0
  %2704 = vmatpush1.msra.mxu0 0.0
  %2705 = vmatprep.subr.mxu0 0.0
  %2706 = vmatpush1.msra.mxu0 0.0
  %2707 = vmatprep.subr.mxu0 0.0
  %2708 = vmatpush1.msra.mxu0 0.0
  %2709 = vmatprep.subr.mxu0 0.0
  %2710 = vmatpush1.msra.mxu0 0.0
  %2711 = vmatprep.subr.mxu0 0.0
  %2712 = vmatpush1.msra.mxu0 0.0
  %2713 = vmatprep.subr.mxu0 0.0
  %2714 = vmatpush1.msra.mxu0 0.0
  %2715 = vmatprep.subr.mxu0 0.0
  %2716 = vmatpush1.msra.mxu0 0.0
  %2717 = vmatprep.subr.mxu0 0.0
  %2718 = vmatpush1.msra.mxu0 0.0
  %2719 = vmatprep.subr.mxu0 0.0
  %2720 = vmatpush1.msra.mxu0 0.0
  %2721 = vmatprep.subr.mxu0 0.0
  %2722 = vmatpush1.msra.mxu0 0.0
  %2723 = vmatprep.subr.mxu0 0.0
  %2724 = vmatpush1.msra.mxu0 0.0
  %2725 = vmatprep.subr.mxu0 0.0
  %2726 = vmatpush1.msra.mxu0 0.0
  %2727 = vmatprep.subr.mxu0 0.0
  %2728 = vmatpush1.msra.mxu0 0.0
  %2729 = vmatprep.subr.mxu0 0.0
  %2730 = vmatpush1.msra.mxu0 0.0
  %2731 = vmatprep.subr.mxu0 0.0
  %2732 = vmatpush1.msra.mxu0 0.0
  %2733 = vmatprep.subr.mxu0 0.0
  %2734 = vmatpush1.msra.mxu0 0.0
  %2735 = vmatprep.subr.mxu0 0.0
  %2736 = vmatpush1.msra.mxu0 0.0
  %2737 = vmatprep.subr.mxu0 0.0
  %2738 = vmatpush1.msra.mxu0 0.0
  %2739 = vmatprep.subr.mxu0 0.0
  %2740 = vmatpush1.msra.mxu0 0.0
  %2741 = vmatprep.subr.mxu0 0.0
  %2742 = vmatpush1.msra.mxu0 0.0
  %2743 = vmatprep.subr.mxu0 0.0
  %2744 = vmatpush1.msra.mxu0 0.0
  %2745 = vmatprep.subr.mxu0 0.0
  %2746 = vmatpush1.msra.mxu0 0.0
  %2747 = vmatprep.subr.mxu0 0.0
  %2748 = vmatpush1.msra.mxu0 0.0
  %2749 = vmatprep.subr.mxu0 0.0
  %2750 = vmatpush1.msra.mxu0 0.0
  %2751 = vmatprep.mubr.f32.mxu0 0.0
  %2752 = vmatmul.mubr.f32.gmra.mrb[0].mxu0 %v2543
  %v2753 = vpop.f32.mrb[0].mxu0
  %v2754 = vadd.f32 %v2471, %v2753
  %v2755 = vpop.f32.mrb[0].mxu0
  %v2756 = vadd.f32 %v2475, %v2755
  %2757 = vdwg.mxu0
  %2758 = vmatprep.subr.mxu0 %v2417
  %2759 = vmatpush1.msra.mxu0 %v2416
  %2760 = vmatprep.subr.mxu0 %v2435
  %2761 = vmatpush1.msra.mxu0 %v2434
  %2762 = vmatprep.subr.mxu0 0.0
  %2763 = vmatpush1.msra.mxu0 0.0
  %2764 = vmatprep.subr.mxu0 0.0
  %2765 = vmatpush1.msra.mxu0 0.0
  %2766 = vmatprep.subr.mxu0 0.0
  %2767 = vmatpush1.msra.mxu0 0.0
  %2768 = vmatprep.subr.mxu0 0.0
  %2769 = vmatpush1.msra.mxu0 0.0
  %2770 = vmatprep.subr.mxu0 0.0
  %2771 = vmatpush1.msra.mxu0 0.0
  %2772 = vmatprep.subr.mxu0 0.0
  %2773 = vmatpush1.msra.mxu0 0.0
  %2774 = vmatprep.subr.mxu0 0.0
  %2775 = vmatpush1.msra.mxu0 0.0
  %2776 = vmatprep.subr.mxu0 0.0
  %2777 = vmatpush1.msra.mxu0 0.0
  %2778 = vmatprep.subr.mxu0 0.0
  %2779 = vmatpush1.msra.mxu0 0.0
  %2780 = vmatprep.subr.mxu0 0.0
  %2781 = vmatpush1.msra.mxu0 0.0
  %2782 = vmatprep.subr.mxu0 0.0
  %2783 = vmatpush1.msra.mxu0 0.0
  %2784 = vmatprep.subr.mxu0 0.0
  %2785 = vmatpush1.msra.mxu0 0.0
  %2786 = vmatprep.subr.mxu0 0.0
  %2787 = vmatpush1.msra.mxu0 0.0
  %2788 = vmatprep.subr.mxu0 0.0
  %2789 = vmatpush1.msra.mxu0 0.0
  %2790 = vmatprep.subr.mxu0 0.0
  %2791 = vmatpush1.msra.mxu0 0.0
  %2792 = vmatprep.subr.mxu0 0.0
  %2793 = vmatpush1.msra.mxu0 0.0
  %2794 = vmatprep.subr.mxu0 0.0
  %2795 = vmatpush1.msra.mxu0 0.0
  %2796 = vmatprep.subr.mxu0 0.0
  %2797 = vmatpush1.msra.mxu0 0.0
  %2798 = vmatprep.subr.mxu0 0.0
  %2799 = vmatpush1.msra.mxu0 0.0
  %2800 = vmatprep.subr.mxu0 0.0
  %2801 = vmatpush1.msra.mxu0 0.0
  %2802 = vmatprep.subr.mxu0 0.0
  %2803 = vmatpush1.msra.mxu0 0.0
  %2804 = vmatprep.subr.mxu0 0.0
  %2805 = vmatpush1.msra.mxu0 0.0
  %2806 = vmatprep.subr.mxu0 0.0
  %2807 = vmatpush1.msra.mxu0 0.0
  %2808 = vmatprep.subr.mxu0 0.0
  %2809 = vmatpush1.msra.mxu0 0.0
  %2810 = vmatprep.subr.mxu0 0.0
  %2811 = vmatpush1.msra.mxu0 0.0
  %2812 = vmatprep.subr.mxu0 0.0
  %2813 = vmatpush1.msra.mxu0 0.0
  %2814 = vmatprep.subr.mxu0 0.0
  %2815 = vmatpush1.msra.mxu0 0.0
  %2816 = vmatprep.subr.mxu0 0.0
  %2817 = vmatpush1.msra.mxu0 0.0
  %2818 = vmatprep.subr.mxu0 0.0
  %2819 = vmatpush1.msra.mxu0 0.0
  %2820 = vmatprep.subr.mxu0 0.0
  %2821 = vmatpush1.msra.mxu0 0.0
  %2822 = vmatprep.mubr.f32.mxu0 0.0
  %2823 = vmatmul.mubr.f32.gmra.mrb[0].mxu0 %v2543
  %v2824 = vpop.f32.mrb[0].mxu0
  %v2825 = vadd.f32 %v2479, %v2824
  %v2826 = vpop.f32.mrb[0].mxu0
  %v2827 = vadd.f32 %v2483, %v2826
  %2828 = vdwg.mxu0
  %2829 = vmatprep.subr.mxu0 %v2419
  %2830 = vmatpush1.msra.mxu0 %v2418
  %2831 = vmatprep.subr.mxu0 %v2437
  %2832 = vmatpush1.msra.mxu0 %v2436
  %2833 = vmatprep.subr.mxu0 0.0
  %2834 = vmatpush1.msra.mxu0 0.0
  %2835 = vmatprep.subr.mxu0 0.0
  %2836 = vmatpush1.msra.mxu0 0.0
  %2837 = vmatprep.subr.mxu0 0.0
  %2838 = vmatpush1.msra.mxu0 0.0
  %2839 = vmatprep.subr.mxu0 0.0
  %2840 = vmatpush1.msra.mxu0 0.0
  %2841 = vmatprep.subr.mxu0 0.0
  %2842 = vmatpush1.msra.mxu0 0.0
  %2843 = vmatprep.subr.mxu0 0.0
  %2844 = vmatpush1.msra.mxu0 0.0
  %2845 = vmatprep.subr.mxu0 0.0
  %2846 = vmatpush1.msra.mxu0 0.0
  %2847 = vmatprep.subr.mxu0 0.0
  %2848 = vmatpush1.msra.mxu0 0.0
  %2849 = vmatprep.subr.mxu0 0.0
  %2850 = vmatpush1.msra.mxu0 0.0
  %2851 = vmatprep.subr.mxu0 0.0
  %2852 = vmatpush1.msra.mxu0 0.0
  %2853 = vmatprep.subr.mxu0 0.0
  %2854 = vmatpush1.msra.mxu0 0.0
  %2855 = vmatprep.subr.mxu0 0.0
  %2856 = vmatpush1.msra.mxu0 0.0
  %2857 = vmatprep.subr.mxu0 0.0
  %2858 = vmatpush1.msra.mxu0 0.0
  %2859 = vmatprep.subr.mxu0 0.0
  %2860 = vmatpush1.msra.mxu0 0.0
  %2861 = vmatprep.subr.mxu0 0.0
  %2862 = vmatpush1.msra.mxu0 0.0
  %2863 = vmatprep.subr.mxu0 0.0
  %2864 = vmatpush1.msra.mxu0 0.0
  %2865 = vmatprep.subr.mxu0 0.0
  %2866 = vmatpush1.msra.mxu0 0.0
  %2867 = vmatprep.subr.mxu0 0.0
  %2868 = vmatpush1.msra.mxu0 0.0
  %2869 = vmatprep.subr.mxu0 0.0
  %2870 = vmatpush1.msra.mxu0 0.0
  %2871 = vmatprep.subr.mxu0 0.0
  %2872 = vmatpush1.msra.mxu0 0.0
  %2873 = vmatprep.subr.mxu0 0.0
  %2874 = vmatpush1.msra.mxu0 0.0
  %2875 = vmatprep.subr.mxu0 0.0
  %2876 = vmatpush1.msra.mxu0 0.0
  %2877 = vmatprep.subr.mxu0 0.0
  %2878 = vmatpush1.msra.mxu0 0.0
  %2879 = vmatprep.subr.mxu0 0.0
  %2880 = vmatpush1.msra.mxu0 0.0
  %2881 = vmatprep.subr.mxu0 0.0
  %2882 = vmatpush1.msra.mxu0 0.0
  %2883 = vmatprep.subr.mxu0 0.0
  %2884 = vmatpush1.msra.mxu0 0.0
  %2885 = vmatprep.subr.mxu0 0.0
  %2886 = vmatpush1.msra.mxu0 0.0
  %2887 = vmatprep.subr.mxu0 0.0
  %2888 = vmatpush1.msra.mxu0 0.0
  %2889 = vmatprep.subr.mxu0 0.0
  %2890 = vmatpush1.msra.mxu0 0.0
  %2891 = vmatprep.subr.mxu0 0.0
  %2892 = vmatpush1.msra.mxu0 0.0
  %2893 = vmatprep.mubr.f32.mxu0 0.0
  %2894 = vmatmul.mubr.f32.gmra.mrb[0].mxu0 %v2543
  %v2895 = vpop.f32.mrb[0].mxu0
  %v2896 = vadd.f32 %v2487, %v2895
  %v2897 = vpop.f32.mrb[0].mxu0
  %v2898 = vadd.f32 %v2491, %v2897
  %2899 = vdwg.mxu0
  %2900 = vmatprep.subr.mxu0 %v2421
  %2901 = vmatpush1.msra.mxu0 %v2420
  %2902 = vmatprep.subr.mxu0 %v2439
  %2903 = vmatpush1.msra.mxu0 %v2438
  %2904 = vmatprep.subr.mxu0 0.0
  %2905 = vmatpush1.msra.mxu0 0.0
  %2906 = vmatprep.subr.mxu0 0.0
  %2907 = vmatpush1.msra.mxu0 0.0
  %2908 = vmatprep.subr.mxu0 0.0
  %2909 = vmatpush1.msra.mxu0 0.0
  %2910 = vmatprep.subr.mxu0 0.0
  %2911 = vmatpush1.msra.mxu0 0.0
  %2912 = vmatprep.subr.mxu0 0.0
  %2913 = vmatpush1.msra.mxu0 0.0
  %2914 = vmatprep.subr.mxu0 0.0
  %2915 = vmatpush1.msra.mxu0 0.0
  %2916 = vmatprep.subr.mxu0 0.0
  %2917 = vmatpush1.msra.mxu0 0.0
  %2918 = vmatprep.subr.mxu0 0.0
  %2919 = vmatpush1.msra.mxu0 0.0
  %2920 = vmatprep.subr.mxu0 0.0
  %2921 = vmatpush1.msra.mxu0 0.0
  %2922 = vmatprep.subr.mxu0 0.0
  %2923 = vmatpush1.msra.mxu0 0.0
  %2924 = vmatprep.subr.mxu0 0.0
  %2925 = vmatpush1.msra.mxu0 0.0
  %2926 = vmatprep.subr.mxu0 0.0
  %2927 = vmatpush1.msra.mxu0 0.0
  %2928 = vmatprep.subr.mxu0 0.0
  %2929 = vmatpush1.msra.mxu0 0.0
  %2930 = vmatprep.subr.mxu0 0.0
  %2931 = vmatpush1.msra.mxu0 0.0
  %2932 = vmatprep.subr.mxu0 0.0
  %2933 = vmatpush1.msra.mxu0 0.0
  %2934 = vmatprep.subr.mxu0 0.0
  %2935 = vmatpush1.msra.mxu0 0.0
  %2936 = vmatprep.subr.mxu0 0.0
  %2937 = vmatpush1.msra.mxu0 0.0
  %2938 = vmatprep.subr.mxu0 0.0
  %2939 = vmatpush1.msra.mxu0 0.0
  %2940 = vmatprep.subr.mxu0 0.0
  %2941 = vmatpush1.msra.mxu0 0.0
  %2942 = vmatprep.subr.mxu0 0.0
  %2943 = vmatpush1.msra.mxu0 0.0
  %2944 = vmatprep.subr.mxu0 0.0
  %2945 = vmatpush1.msra.mxu0 0.0
  %2946 = vmatprep.subr.mxu0 0.0
  %2947 = vmatpush1.msra.mxu0 0.0
  %2948 = vmatprep.subr.mxu0 0.0
  %2949 = vmatpush1.msra.mxu0 0.0
  %2950 = vmatprep.subr.mxu0 0.0
  %2951 = vmatpush1.msra.mxu0 0.0
  %2952 = vmatprep.subr.mxu0 0.0
  %2953 = vmatpush1.msra.mxu0 0.0
  %2954 = vmatprep.subr.mxu0 0.0
  %2955 = vmatpush1.msra.mxu0 0.0
  %2956 = vmatprep.subr.mxu0 0.0
  %2957 = vmatpush1.msra.mxu0 0.0
  %2958 = vmatprep.subr.mxu0 0.0
  %2959 = vmatpush1.msra.mxu0 0.0
  %2960 = vmatprep.subr.mxu0 0.0
  %2961 = vmatpush1.msra.mxu0 0.0
  %2962 = vmatprep.subr.mxu0 0.0
  %2963 = vmatpush1.msra.mxu0 0.0
  %2964 = vmatprep.mubr.f32.mxu0 0.0
  %2965 = vmatmul.mubr.f32.gmra.mrb[0].mxu0 %v2543
  %v2966 = vpop.f32.mrb[0].mxu0
  %v2967 = vadd.f32 %v2495, %v2966
  %v2968 = vpop.f32.mrb[0].mxu0
  %v2969 = vadd.f32 %v2499, %v2968
  %2970 = vdwg.mxu0
  %2971 = vmatprep.subr.mxu0 %v2423
  %2972 = vmatpush1.msra.mxu0 %v2422
  %2973 = vmatprep.subr.mxu0 %v2441
  %2974 = vmatpush1.msra.mxu0 %v2440
  %2975 = vmatprep.subr.mxu0 0.0
  %2976 = vmatpush1.msra.mxu0 0.0
  %2977 = vmatprep.subr.mxu0 0.0
  %2978 = vmatpush1.msra.mxu0 0.0
  %2979 = vmatprep.subr.mxu0 0.0
  %2980 = vmatpush1.msra.mxu0 0.0
  %2981 = vmatprep.subr.mxu0 0.0
  %2982 = vmatpush1.msra.mxu0 0.0
  %2983 = vmatprep.subr.mxu0 0.0
  %2984 = vmatpush1.msra.mxu0 0.0
  %2985 = vmatprep.subr.mxu0 0.0
  %2986 = vmatpush1.msra.mxu0 0.0
  %2987 = vmatprep.subr.mxu0 0.0
  %2988 = vmatpush1.msra.mxu0 0.0
  %2989 = vmatprep.subr.mxu0 0.0
  %2990 = vmatpush1.msra.mxu0 0.0
  %2991 = vmatprep.subr.mxu0 0.0
  %2992 = vmatpush1.msra.mxu0 0.0
  %2993 = vmatprep.subr.mxu0 0.0
  %2994 = vmatpush1.msra.mxu0 0.0
  %2995 = vmatprep.subr.mxu0 0.0
  %2996 = vmatpush1.msra.mxu0 0.0
  %2997 = vmatprep.subr.mxu0 0.0
  %2998 = vmatpush1.msra.mxu0 0.0
  %2999 = vmatprep.subr.mxu0 0.0
  %3000 = vmatpush1.msra.mxu0 0.0
  %3001 = vmatprep.subr.mxu0 0.0
  %3002 = vmatpush1.msra.mxu0 0.0
  %3003 = vmatprep.subr.mxu0 0.0
  %3004 = vmatpush1.msra.mxu0 0.0
  %3005 = vmatprep.subr.mxu0 0.0
  %3006 = vmatpush1.msra.mxu0 0.0
  %3007 = vmatprep.subr.mxu0 0.0
  %3008 = vmatpush1.msra.mxu0 0.0
  %3009 = vmatprep.subr.mxu0 0.0
  %3010 = vmatpush1.msra.mxu0 0.0
  %3011 = vmatprep.subr.mxu0 0.0
  %3012 = vmatpush1.msra.mxu0 0.0
  %3013 = vmatprep.subr.mxu0 0.0
  %3014 = vmatpush1.msra.mxu0 0.0
  %3015 = vmatprep.subr.mxu0 0.0
  %3016 = vmatpush1.msra.mxu0 0.0
  %3017 = vmatprep.subr.mxu0 0.0
  %3018 = vmatpush1.msra.mxu0 0.0
  %3019 = vmatprep.subr.mxu0 0.0
  %3020 = vmatpush1.msra.mxu0 0.0
  %3021 = vmatprep.subr.mxu0 0.0
  %3022 = vmatpush1.msra.mxu0 0.0
  %3023 = vmatprep.subr.mxu0 0.0
  %3024 = vmatpush1.msra.mxu0 0.0
  %3025 = vmatprep.subr.mxu0 0.0
  %3026 = vmatpush1.msra.mxu0 0.0
  %3027 = vmatprep.subr.mxu0 0.0
  %3028 = vmatpush1.msra.mxu0 0.0
  %3029 = vmatprep.subr.mxu0 0.0
  %3030 = vmatpush1.msra.mxu0 0.0
  %3031 = vmatprep.subr.mxu0 0.0
  %3032 = vmatpush1.msra.mxu0 0.0
  %3033 = vmatprep.subr.mxu0 0.0
  %3034 = vmatpush1.msra.mxu0 0.0
  %3035 = vmatprep.mubr.f32.mxu0 0.0
  %3036 = vmatmul.mubr.f32.gmra.mrb[0].mxu0 %v2543
  %v3037 = vpop.f32.mrb[0].mxu0
  %v3038 = vadd.f32 %v2503, %v3037
  %v3039 = vpop.f32.mrb[0].mxu0
  %v3040 = vadd.f32 %v2507, %v3039
  %3041 = vdwg.mxu0
  %3042 = vmatprep.subr.mxu0 %v2425
  %3043 = vmatpush1.msra.mxu0 %v2424
  %3044 = vmatprep.subr.mxu0 %v2443
  %3045 = vmatpush1.msra.mxu0 %v2442
  %3046 = vmatprep.subr.mxu0 0.0
  %3047 = vmatpush1.msra.mxu0 0.0
  %3048 = vmatprep.subr.mxu0 0.0
  %3049 = vmatpush1.msra.mxu0 0.0
  %3050 = vmatprep.subr.mxu0 0.0
  %3051 = vmatpush1.msra.mxu0 0.0
  %3052 = vmatprep.subr.mxu0 0.0
  %3053 = vmatpush1.msra.mxu0 0.0
  %3054 = vmatprep.subr.mxu0 0.0
  %3055 = vmatpush1.msra.mxu0 0.0
  %3056 = vmatprep.subr.mxu0 0.0
  %3057 = vmatpush1.msra.mxu0 0.0
  %3058 = vmatprep.subr.mxu0 0.0
  %3059 = vmatpush1.msra.mxu0 0.0
  %3060 = vmatprep.subr.mxu0 0.0
  %3061 = vmatpush1.msra.mxu0 0.0
  %3062 = vmatprep.subr.mxu0 0.0
  %3063 = vmatpush1.msra.mxu0 0.0
  %3064 = vmatprep.subr.mxu0 0.0
  %3065 = vmatpush1.msra.mxu0 0.0
  %3066 = vmatprep.subr.mxu0 0.0
  %3067 = vmatpush1.msra.mxu0 0.0
  %3068 = vmatprep.subr.mxu0 0.0
  %3069 = vmatpush1.msra.mxu0 0.0
  %3070 = vmatprep.subr.mxu0 0.0
  %3071 = vmatpush1.msra.mxu0 0.0
  %3072 = vmatprep.subr.mxu0 0.0
  %3073 = vmatpush1.msra.mxu0 0.0
  %3074 = vmatprep.subr.mxu0 0.0
  %3075 = vmatpush1.msra.mxu0 0.0
  %3076 = vmatprep.subr.mxu0 0.0
  %3077 = vmatpush1.msra.mxu0 0.0
  %3078 = vmatprep.subr.mxu0 0.0
  %3079 = vmatpush1.msra.mxu0 0.0
  %3080 = vmatprep.subr.mxu0 0.0
  %3081 = vmatpush1.msra.mxu0 0.0
  %3082 = vmatprep.subr.mxu0 0.0
  %3083 = vmatpush1.msra.mxu0 0.0
  %3084 = vmatprep.subr.mxu0 0.0
  %3085 = vmatpush1.msra.mxu0 0.0
  %3086 = vmatprep.subr.mxu0 0.0
  %3087 = vmatpush1.msra.mxu0 0.0
  %3088 = vmatprep.subr.mxu0 0.0
  %3089 = vmatpush1.msra.mxu0 0.0
  %3090 = vmatprep.subr.mxu0 0.0
  %3091 = vmatpush1.msra.mxu0 0.0
  %3092 = vmatprep.subr.mxu0 0.0
  %3093 = vmatpush1.msra.mxu0 0.0
  %3094 = vmatprep.subr.mxu0 0.0
  %3095 = vmatpush1.msra.mxu0 0.0
  %3096 = vmatprep.subr.mxu0 0.0
  %3097 = vmatpush1.msra.mxu0 0.0
  %3098 = vmatprep.subr.mxu0 0.0
  %3099 = vmatpush1.msra.mxu0 0.0
  %3100 = vmatprep.subr.mxu0 0.0
  %3101 = vmatpush1.msra.mxu0 0.0
  %3102 = vmatprep.subr.mxu0 0.0
  %3103 = vmatpush1.msra.mxu0 0.0
  %3104 = vmatprep.subr.mxu0 0.0
  %3105 = vmatpush1.msra.mxu0 0.0
  %3106 = vmatprep.mubr.f32.mxu0 0.0
  %3107 = vmatmul.mubr.f32.gmra.mrb[0].mxu0 %v2543
  %v3108 = vpop.f32.mrb[0].mxu0
  %v3109 = vadd.f32 %v2511, %v3108
  %v3110 = vpop.f32.mrb[0].mxu0
  %v3111 = vadd.f32 %v2515, %v3110
  %3112 = vdwg.mxu0
  %3113 = vmatprep.subr.mxu0 %v2427
  %3114 = vmatpush1.msra.mxu0 %v2426
  %3115 = vmatprep.subr.mxu0 %v2445
  %3116 = vmatpush1.msra.mxu0 %v2444
  %3117 = vmatprep.subr.mxu0 0.0
  %3118 = vmatpush1.msra.mxu0 0.0
  %3119 = vmatprep.subr.mxu0 0.0
  %3120 = vmatpush1.msra.mxu0 0.0
  %3121 = vmatprep.subr.mxu0 0.0
  %3122 = vmatpush1.msra.mxu0 0.0
  %3123 = vmatprep.subr.mxu0 0.0
  %3124 = vmatpush1.msra.mxu0 0.0
  %3125 = vmatprep.subr.mxu0 0.0
  %3126 = vmatpush1.msra.mxu0 0.0
  %3127 = vmatprep.subr.mxu0 0.0
  %3128 = vmatpush1.msra.mxu0 0.0
  %3129 = vmatprep.subr.mxu0 0.0
  %3130 = vmatpush1.msra.mxu0 0.0
  %3131 = vmatprep.subr.mxu0 0.0
  %3132 = vmatpush1.msra.mxu0 0.0
  %3133 = vmatprep.subr.mxu0 0.0
  %3134 = vmatpush1.msra.mxu0 0.0
  %3135 = vmatprep.subr.mxu0 0.0
  %3136 = vmatpush1.msra.mxu0 0.0
  %3137 = vmatprep.subr.mxu0 0.0
  %3138 = vmatpush1.msra.mxu0 0.0
  %3139 = vmatprep.subr.mxu0 0.0
  %3140 = vmatpush1.msra.mxu0 0.0
  %3141 = vmatprep.subr.mxu0 0.0
  %3142 = vmatpush1.msra.mxu0 0.0
  %3143 = vmatprep.subr.mxu0 0.0
  %3144 = vmatpush1.msra.mxu0 0.0
  %3145 = vmatprep.subr.mxu0 0.0
  %3146 = vmatpush1.msra.mxu0 0.0
  %3147 = vmatprep.subr.mxu0 0.0
  %3148 = vmatpush1.msra.mxu0 0.0
  %3149 = vmatprep.subr.mxu0 0.0
  %3150 = vmatpush1.msra.mxu0 0.0
  %3151 = vmatprep.subr.mxu0 0.0
  %3152 = vmatpush1.msra.mxu0 0.0
  %3153 = vmatprep.subr.mxu0 0.0
  %3154 = vmatpush1.msra.mxu0 0.0
  %3155 = vmatprep.subr.mxu0 0.0
  %3156 = vmatpush1.msra.mxu0 0.0
  %3157 = vmatprep.subr.mxu0 0.0
  %3158 = vmatpush1.msra.mxu0 0.0
  %3159 = vmatprep.subr.mxu0 0.0
  %3160 = vmatpush1.msra.mxu0 0.0
  %3161 = vmatprep.subr.mxu0 0.0
  %3162 = vmatpush1.msra.mxu0 0.0
  %3163 = vmatprep.subr.mxu0 0.0
  %3164 = vmatpush1.msra.mxu0 0.0
  %3165 = vmatprep.subr.mxu0 0.0
  %3166 = vmatpush1.msra.mxu0 0.0
  %3167 = vmatprep.subr.mxu0 0.0
  %3168 = vmatpush1.msra.mxu0 0.0
  %3169 = vmatprep.subr.mxu0 0.0
  %3170 = vmatpush1.msra.mxu0 0.0
  %3171 = vmatprep.subr.mxu0 0.0
  %3172 = vmatpush1.msra.mxu0 0.0
  %3173 = vmatprep.subr.mxu0 0.0
  %3174 = vmatpush1.msra.mxu0 0.0
  %3175 = vmatprep.subr.mxu0 0.0
  %3176 = vmatpush1.msra.mxu0 0.0
  %3177 = vmatprep.mubr.f32.mxu0 0.0
  %3178 = vmatmul.mubr.f32.gmra.mrb[0].mxu0 %v2543
  %v3179 = vpop.f32.mrb[0].mxu0
  %v3180 = vadd.f32 %v2519, %v3179
  %v3181 = vpop.f32.mrb[0].mxu0
  %v3182 = vadd.f32 %v2523, %v3181
  %3183 = vdwg.mxu0
  %v3202 = vcombine.low %v2612, %v2614
  %v3203 = vcombine.low %v2683, %v2685
  %v3204 = vcombine.low %v2754, %v2756
  %v3205 = vcombine.low %v2825, %v2827
  %v3207 = vunpack.c.l.s4 1966171168
  %v3208 = vunpack.c.0.s8 %v3207
  %v3209 = vlaneseq
  %v3210 = vshrl.u32 %v3209, 7
  %v3211 = vsub.s32 %v3208, %v3210
  %v3212 = vrot.slane %v3202, %v3211
  %v3214 = vunpack.c.l.s4 1966171168
  %v3215 = vunpack.c.0.s8 %v3214
  %v3216 = vlaneseq
  %v3217 = vshrl.u32 %v3216, 7
  %v3218 = vsub.s32 %v3215, %v3217
  %v3219 = vrot.slane %v3203, %v3218
  %v3221 = vunpack.c.l.s4 1966171168
  %v3222 = vunpack.c.0.s8 %v3221
  %v3223 = vlaneseq
  %v3224 = vshrl.u32 %v3223, 7
  %v3225 = vsub.s32 %v3222, %v3224
  %v3226 = vrot.slane %v3204, %v3225
  %v3228 = vunpack.c.l.s4 1966171168
  %v3229 = vunpack.c.0.s8 %v3228
  %v3230 = vlaneseq
  %v3231 = vshrl.u32 %v3230, 7
  %v3232 = vsub.s32 %v3229, %v3231
  %v3233 = vrot.slane %v3205, %v3232
  %v3234 = vcombine.low %v3212, %v3219
  %v3235 = vcombine.low %v3226, %v3233
  %v3237 = vunpack.c.l.s4 1966171168
  %v3238 = vunpack.c.0.s8 %v3237
  %v3239 = vlaneseq
  %v3240 = vshrl.u32 %v3239, 7
  %v3241 = vsub.s32 %v3238, %v3240
  %v3242 = vrot.slane %v3234, %v3241
  %v3244 = vunpack.c.l.s4 1966171168
  %v3245 = vunpack.c.0.s8 %v3244
  %v3246 = vlaneseq
  %v3247 = vshrl.u32 %v3246, 7
  %v3248 = vsub.s32 %v3245, %v3247
  %v3249 = vrot.slane %v3235, %v3248
  %v3250 = vcombine.low %v3242, %v3249
  %v3251 = vcombine.low %v2896, %v2898
  %v3252 = vcombine.low %v2967, %v2969
  %v3253 = vcombine.low %v3038, %v3040
  %v3254 = vcombine.low %v3109, %v3111
  %v3256 = vunpack.c.l.s4 1966171168
  %v3257 = vunpack.c.0.s8 %v3256
  %v3258 = vlaneseq
  %v3259 = vshrl.u32 %v3258, 7
  %v3260 = vsub.s32 %v3257, %v3259
  %v3261 = vrot.slane %v3251, %v3260
  %v3263 = vunpack.c.l.s4 1966171168
  %v3264 = vunpack.c.0.s8 %v3263
  %v3265 = vlaneseq
  %v3266 = vshrl.u32 %v3265, 7
  %v3267 = vsub.s32 %v3264, %v3266
  %v3268 = vrot.slane %v3252, %v3267
  %v3270 = vunpack.c.l.s4 1966171168
  %v3271 = vunpack.c.0.s8 %v3270
  %v3272 = vlaneseq
  %v3273 = vshrl.u32 %v3272, 7
  %v3274 = vsub.s32 %v3271, %v3273
  %v3275 = vrot.slane %v3253, %v3274
  %v3277 = vunpack.c.l.s4 1966171168
  %v3278 = vunpack.c.0.s8 %v3277
  %v3279 = vlaneseq
  %v3280 = vshrl.u32 %v3279, 7
  %v3281 = vsub.s32 %v3278, %v3280
  %v3282 = vrot.slane %v3254, %v3281
  %v3283 = vcombine.low %v3261, %v3268
  %v3284 = vcombine.low %v3275, %v3282
  %v3286 = vunpack.c.l.s4 1966171168
  %v3287 = vunpack.c.0.s8 %v3286
  %v3288 = vlaneseq
  %v3289 = vshrl.u32 %v3288, 7
  %v3290 = vsub.s32 %v3287, %v3289
  %v3291 = vrot.slane %v3283, %v3290
  %v3293 = vunpack.c.l.s4 1966171168
  %v3294 = vunpack.c.0.s8 %v3293
  %v3295 = vlaneseq
  %v3296 = vshrl.u32 %v3295, 7
  %v3297 = vsub.s32 %v3294, %v3296
  %v3298 = vrot.slane %v3284, %v3297
  %v3299 = vcombine.low %v3291, %v3298
  %v3300 = vcombine.low %v3180, %v3182
  %v3302 = vunpack.c.l.s4 1966171168
  %v3303 = vunpack.c.0.s8 %v3302
  %v3304 = vlaneseq
  %v3305 = vshrl.u32 %v3304, 7
  %v3306 = vsub.s32 %v3303, %v3305
  %v3307 = vrot.slane %v3300, %v3306
  %v3309 = vunpack.c.l.s4 1966171168
  %v3310 = vunpack.c.0.s8 %v3309
  %v3311 = vlaneseq
  %v3312 = vshrl.u32 %v3311, 7
  %v3313 = vsub.s32 %v3310, %v3312
  %v3314 = vrot.slane %v3307, %v3313
  %3318 = vst [vmem:[%s17] sm:$0xff] %v3250
  %3319 = vst [vmem:[%s17 + $0x8] sm:$0xff] %v3299
  %v3320 = vlaneseq
  %vm3321 = vcmp.ge.s32.totalorder %v3320, 0
  %vm3322 = vcmp.lt.s32.totalorder %v3320, 199
  %vm3323 = vmand %vm3321, %vm3322
  %3324 = vst.msk [vmem:[%s17 + $0x10] sm:$0x3] %vm3323, %v3314
  // Predicated region
  $region70: #{rans_forward.1} parent=0 // pred_check
    _
  $region71: #{rans_forward.1} parent=0 // pred_check_branch
    %3326 = sbr.rel (0) target = $region73
  $region72: #{rans_forward.1} parent=0 // pred_region
    _
  $region73: #{rans_forward.1} parent=0 // pred_fallthru
    _
  // Predicated region
  $region74: #{rans_forward.1} parent=0 // pred_check
    _
  $region75: #{rans_forward.1} parent=0 // pred_check_branch
    %3328 = sbr.rel (0) target = $region77
  $region76: #{rans_forward.1} parent=0 // pred_region
    _
  $region77: #{rans_forward.1} parent=0 // pred_fallthru
    _

</llo_original>
